<compile_context>
chip_gen: v7x
topology: tpu7x:2x2x1
jax: 0.10.0
libtpu: 0.0.40
codegen_flags: <defaults>
</compile_context>

<pallas_src>
import jax
import jax.numpy as jnp
from jax.experimental import pallas as pl
from jax.experimental.pallas import tpu as pltpu


def _make_rnn_kernel(mode: str):
    """Single-grid-step recurrence kernel.  Refs:
       gx_ref  [G, T, Bb, H]  precomputed x@W_ih + b (gate-major, time-major)
       m_ref   [T, Bb, 1]     float 0/1 prefix mask
       whh_ref [G, H, H]      recurrent weights, one block per gate
       out_ref [Bb, T, H]     per-step hidden states, batch-major (zeros at pads)
       hn_ref  [Bb, H]        final hidden state (state at last valid step)
    """

    def kernel(gx_ref, m_ref, whh_ref, out_ref, hn_ref):
        Bb, T, H = out_ref.shape
        h = jnp.zeros((Bb, H), jnp.float32)
        c = jnp.zeros((Bb, H), jnp.float32)

        def rec_dot(hv, g):
            return jnp.dot(hv, whh_ref[g], preferred_element_type=jnp.float32)

        # T is a trace-time constant -> fully static unrolled recurrence; every
        # index below is a static view (no dynamic address math in the hot loop).
        for t in range(T):
            m = m_ref[t]                                            # (Bb, 1)
            if mode == "lstm":
                i = jax.nn.sigmoid(gx_ref[0, t] + rec_dot(h, 0))
                f = jax.nn.sigmoid(gx_ref[1, t] + rec_dot(h, 1))
                g = jnp.tanh(gx_ref[2, t] + rec_dot(h, 2))
                o = jax.nn.sigmoid(gx_ref[3, t] + rec_dot(h, 3))
                c_new = f * c + i * g
                h_new = o * jnp.tanh(c_new)
                # packed-sequence semantics: padded steps carry the old state
                c = c + m * (c_new - c)
            else:  # 'rnn' (tanh nonlinearity, PyTorch default); no cell state
                h_new = jnp.tanh(gx_ref[0, t] + rec_dot(h, 0))
            # pad_packed_sequence pads with zeros -> write m * h_new
            out_ref[:, t, :] = (m * h_new).astype(out_ref.dtype)
            h = h + m * (h_new - h)

        hn_ref[...] = h.astype(hn_ref.dtype)

    return kernel


def rnn_encoder_forward(hidden_states, mask, params, mode="lstm", batch_blocks=1):
    """RNNEncoder forward.  hidden_states [B,T,D], mask [B,T] (prefix 0/1).
    Returns (output [B,T,H], h_n [B,H])."""
    B, T, D = hidden_states.shape
    W_ih, W_hh, b = params              # (D, G*H), (H, G*H), (1, G*H) or (G*H,)
    H = W_hh.shape[0]
    G = W_ih.shape[1] // H
    assert (mode == "lstm" and G == 4) or (mode == "rnn" and G == 1)
    assert B % batch_blocks == 0
    Bb = B // batch_blocks              # for batch_blocks>1, Bb must be a multiple of 8

    # ---- Hoisted input projection: one large matmul, gate-major / time-major. ----
    gx = (jnp.einsum("btd,dgh->gtbh", hidden_states, W_ih.reshape(D, G, H),
                     preferred_element_type=jnp.float32)
          + jnp.reshape(b, (G, H)).astype(jnp.float32)[:, None, None, :])     # [G,T,B,H]

    whh_g = jnp.transpose(W_hh.reshape(H, G, H), (1, 0, 2)).astype(jnp.float32)  # [G,H,H]
    m_tm = jnp.transpose(mask.astype(jnp.float32), (1, 0))[:, :, None]           # [T,B,1]

    output, h_n = pl.pallas_call(
        _make_rnn_kernel(mode),
        out_shape=(jax.ShapeDtypeStruct((B, T, H), jnp.float32),   # batch-major directly
                   jax.ShapeDtypeStruct((B, H), jnp.float32)),
        grid_spec=pltpu.PrefetchScalarGridSpec(
            num_scalar_prefetch=0,
            grid=(batch_blocks,),                         # time loop lives inside the kernel
            in_specs=[
                pl.BlockSpec((G, T, Bb, H), lambda bb: (0, 0, bb, 0)),  # gx (one DMA in)
                pl.BlockSpec((T, Bb, 1), lambda bb: (0, bb, 0)),        # mask (resident)
                pl.BlockSpec((G, H, H), lambda bb: (0, 0, 0)),          # W_hh (resident)
            ],
            out_specs=[
                pl.BlockSpec((Bb, T, H), lambda bb: (bb, 0, 0)),        # output slab (one DMA out)
                pl.BlockSpec((Bb, H), lambda bb: (bb, 0)),              # h_n
            ],
        ),
        compiler_params=pltpu.CompilerParams(
            # batch axis is embarrassingly parallel -> TensorCore sharding on v7x
            dimension_semantics=("parallel",)),
    )(gx, m_tm, whh_g)

    return output, h_n                  # h_n: [B, num_layers*dirs*H] = [B, H]


def _reference(hidden_states, mask, params, mode):
    """Pure-JAX reference of the masked (packed-sequence) recurrence."""
    W_ih, W_hh, b = params
    H = W_hh.shape[0]
    B, T, _ = hidden_states.shape
    h = jnp.zeros((B, H), jnp.float32)
    c = jnp.zeros((B, H), jnp.float32)
    outs = []
    for t in range(T):
        x_t = hidden_states[:, t, :].astype(jnp.float32)
        m_t = mask[:, t].astype(jnp.float32)[:, None]
        gates = x_t @ W_ih + h @ W_hh + jnp.reshape(b, (1, -1))
        if mode == "lstm":
            i = jax.nn.sigmoid(gates[:, :H])
            f = jax.nn.sigmoid(gates[:, H:2 * H])
            g = jnp.tanh(gates[:, 2 * H:3 * H])
            o = jax.nn.sigmoid(gates[:, 3 * H:])
            c_new = f * c + i * g
            h_new = o * jnp.tanh(c_new)
        else:
            c_new = c
            h_new = jnp.tanh(gates)
        c = m_t * c_new + (1.0 - m_t) * c
        h = m_t * h_new + (1.0 - m_t) * h
        outs.append(m_t * h_new)
    return jnp.stack(outs, axis=1), h


def _make_params(key, mode, D, H):
    G = 4 if mode == "lstm" else 1
    k1, k2, k3, k4 = jax.random.split(key, 4)
    bound = 1.0 / (H ** 0.5)      # PyTorch nn.LSTM/nn.RNN init: U(-1/sqrt(H), 1/sqrt(H))
    W_ih = jax.random.uniform(k1, (D, G * H), jnp.float32, -bound, bound)
    W_hh = jax.random.uniform(k2, (H, G * H), jnp.float32, -bound, bound)
    b_ih = jax.random.uniform(k3, (G * H,), jnp.float32, -bound, bound)
    b_hh = jax.random.uniform(k4, (G * H,), jnp.float32, -bound, bound)
    return (W_ih, W_hh, (b_ih + b_hh)[None, :])


if __name__ == "__main__":
    B, T, D, H = 2, 8, 16, 32     # batch, seq, input_size, hidden_size
    key = jax.random.PRNGKey(0)
    kx, kp_lstm, kp_rnn = jax.random.split(key, 3)

    hidden_states = jax.random.normal(kx, (B, T, D), jnp.float32)
    # prefix mask; at least one full-length sequence so max(lengths) == T
    lengths = jnp.array([T, T - 3], dtype=jnp.int32)
    mask = (jnp.arange(T)[None, :] < lengths[:, None]).astype(jnp.float32)

    for mode, kp in (("lstm", kp_lstm), ("rnn", kp_rnn)):
        params = _make_params(kp, mode, D, H)
        output, h_n = rnn_encoder_forward(hidden_states, mask, params, mode=mode)
        jax.block_until_ready((output, h_n))

        ref_out, ref_hn = _reference(hidden_states, mask, params, mode)
        assert output.shape == (B, T, H) and h_n.shape == (B, H)
        assert jnp.allclose(output, ref_out, atol=1e-5, rtol=1e-5), mode
        assert jnp.allclose(h_n, ref_hn, atol=1e-5, rtol=1e-5), mode

    print("KERNEL_OK")
</pallas_src>

<mosaic_0001>
module attributes {stable_mosaic.version = 11 : i64} {
  func.func @kernel(%arg0: i32, %arg1: memref<4x8x2x32xf32, #tpu.memory_space<vmem>>, %arg2: memref<8x2x1xf32, #tpu.memory_space<vmem>>, %arg3: memref<4x32x32xf32, #tpu.memory_space<vmem>>, %arg4: memref<2x8x32xf32, #tpu.memory_space<vmem>>, %arg5: memref<2x32xf32, #tpu.memory_space<vmem>>) attributes {dimension_semantics = [#tpu.dimension_semantics<parallel>], iteration_bounds = array<i64: 1>, scalar_prefetch = 0 : i64, scratch_operands = 0 : i64, tpu.core_type = #tpu.core_type<tc>, window_params = [{transform_indices = @transform_0, window_bounds = array<i64: 4, 8, 2, 32>}, {transform_indices = @transform_1, window_bounds = array<i64: 8, 2, 1>}, {pipeline_mode = #tpu.pipeline_mode<synchronous>, transform_indices = @transform_2, window_bounds = array<i64: 4, 32, 32>}, {transform_indices = @transform_3, window_bounds = array<i64: 2, 8, 32>}, {transform_indices = @transform_4, window_bounds = array<i64: 2, 32>}]} {
    %cst = arith.constant 0.000000e+00 : f32
    %0 = vector.broadcast %cst : f32 to vector<2x32xf32>
    %cst_0 = arith.constant 0.000000e+00 : f32
    %1 = vector.broadcast %cst_0 : f32 to vector<2x32xf32>
    %c0 = arith.constant 0 : index
    %c0_1 = arith.constant 0 : index
    %c0_2 = arith.constant 0 : index
    %2 = vector.load %arg2[%c0, %c0_1, %c0_2] : memref<8x2x1xf32, #tpu.memory_space<vmem>>, vector<1x2x1xf32>
    %3 = vector.shape_cast %2 : vector<1x2x1xf32> to vector<2x1xf32>
    %c0_3 = arith.constant 0 : index
    %c0_4 = arith.constant 0 : index
    %c0_5 = arith.constant 0 : index
    %c0_6 = arith.constant 0 : index
    %4 = vector.load %arg1[%c0_3, %c0_4, %c0_5, %c0_6] : memref<4x8x2x32xf32, #tpu.memory_space<vmem>>, vector<1x1x2x32xf32>
    %5 = vector.shape_cast %4 : vector<1x1x2x32xf32> to vector<2x32xf32>
    %c0_7 = arith.constant 0 : index
    %c0_8 = arith.constant 0 : index
    %c0_9 = arith.constant 0 : index
    %6 = vector.load %arg3[%c0_7, %c0_8, %c0_9] : memref<4x32x32xf32, #tpu.memory_space<vmem>>, vector<1x32x32xf32>
    %7 = vector.shape_cast %6 : vector<1x32x32xf32> to vector<32x32xf32>
    %cst_10 = arith.constant dense<0.000000e+00> : vector<2x32xf32>
    %8 = tpu.matmul %0, %7, %cst_10 {dimension_numbers = #tpu.dot_dimension_numbers<[1], [0], [0], [1], [0, 0, 1, 1], [], []>} : vector<2x32xf32>, vector<32x32xf32>, vector<2x32xf32> -> vector<2x32xf32>
    %9 = arith.addf %5, %8 : vector<2x32xf32>
    %10 = arith.negf %9 : vector<2x32xf32>
    %11 = math.exp %10 : vector<2x32xf32>
    %cst_11 = arith.constant 1.000000e+00 : f32
    %12 = vector.broadcast %cst_11 : f32 to vector<2x32xf32>
    %13 = arith.addf %12, %11 : vector<2x32xf32>
    %14 = arith.divf %12, %13 : vector<2x32xf32>
    %c1 = arith.constant 1 : index
    %c0_12 = arith.constant 0 : index
    %c0_13 = arith.constant 0 : index
    %c0_14 = arith.constant 0 : index
    %15 = vector.load %arg1[%c1, %c0_12, %c0_13, %c0_14] : memref<4x8x2x32xf32, #tpu.memory_space<vmem>>, vector<1x1x2x32xf32>
    %16 = vector.shape_cast %15 : vector<1x1x2x32xf32> to vector<2x32xf32>
    %c1_15 = arith.constant 1 : index
    %c0_16 = arith.constant 0 : index
    %c0_17 = arith.constant 0 : index
    %17 = vector.load %arg3[%c1_15, %c0_16, %c0_17] : memref<4x32x32xf32, #tpu.memory_space<vmem>>, vector<1x32x32xf32>
    %18 = vector.shape_cast %17 : vector<1x32x32xf32> to vector<32x32xf32>
    %cst_18 = arith.constant dense<0.000000e+00> : vector<2x32xf32>
    %19 = tpu.matmul %0, %18, %cst_18 {dimension_numbers = #tpu.dot_dimension_numbers<[1], [0], [0], [1], [0, 0, 1, 1], [], []>} : vector<2x32xf32>, vector<32x32xf32>, vector<2x32xf32> -> vector<2x32xf32>
    %20 = arith.addf %16, %19 : vector<2x32xf32>
    %21 = arith.negf %20 : vector<2x32xf32>
    %22 = math.exp %21 : vector<2x32xf32>
    %cst_19 = arith.constant 1.000000e+00 : f32
    %23 = vector.broadcast %cst_19 : f32 to vector<2x32xf32>
    %24 = arith.addf %23, %22 : vector<2x32xf32>
    %25 = arith.divf %23, %24 : vector<2x32xf32>
    %c2 = arith.constant 2 : index
    %c0_20 = arith.constant 0 : index
    %c0_21 = arith.constant 0 : index
    %c0_22 = arith.constant 0 : index
    %26 = vector.load %arg1[%c2, %c0_20, %c0_21, %c0_22] : memref<4x8x2x32xf32, #tpu.memory_space<vmem>>, vector<1x1x2x32xf32>
    %27 = vector.shape_cast %26 : vector<1x1x2x32xf32> to vector<2x32xf32>
    %c2_23 = arith.constant 2 : index
    %c0_24 = arith.constant 0 : index
    %c0_25 = arith.constant 0 : index
    %28 = vector.load %arg3[%c2_23, %c0_24, %c0_25] : memref<4x32x32xf32, #tpu.memory_space<vmem>>, vector<1x32x32xf32>
    %29 = vector.shape_cast %28 : vector<1x32x32xf32> to vector<32x32xf32>
    %cst_26 = arith.constant dense<0.000000e+00> : vector<2x32xf32>
    %30 = tpu.matmul %0, %29, %cst_26 {dimension_numbers = #tpu.dot_dimension_numbers<[1], [0], [0], [1], [0, 0, 1, 1], [], []>} : vector<2x32xf32>, vector<32x32xf32>, vector<2x32xf32> -> vector<2x32xf32>
    %31 = arith.addf %27, %30 : vector<2x32xf32>
    %32 = math.tanh %31 : vector<2x32xf32>
    %c3 = arith.constant 3 : index
    %c0_27 = arith.constant 0 : index
    %c0_28 = arith.constant 0 : index
    %c0_29 = arith.constant 0 : index
    %33 = vector.load %arg1[%c3, %c0_27, %c0_28, %c0_29] : memref<4x8x2x32xf32, #tpu.memory_space<vmem>>, vector<1x1x2x32xf32>
    %34 = vector.shape_cast %33 : vector<1x1x2x32xf32> to vector<2x32xf32>
    %c3_30 = arith.constant 3 : index
    %c0_31 = arith.constant 0 : index
    %c0_32 = arith.constant 0 : index
    %35 = vector.load %arg3[%c3_30, %c0_31, %c0_32] : memref<4x32x32xf32, #tpu.memory_space<vmem>>, vector<1x32x32xf32>
    %36 = vector.shape_cast %35 : vector<1x32x32xf32> to vector<32x32xf32>
    %cst_33 = arith.constant dense<0.000000e+00> : vector<2x32xf32>
    %37 = tpu.matmul %0, %36, %cst_33 {dimension_numbers = #tpu.dot_dimension_numbers<[1], [0], [0], [1], [0, 0, 1, 1], [], []>} : vector<2x32xf32>, vector<32x32xf32>, vector<2x32xf32> -> vector<2x32xf32>
    %38 = arith.addf %34, %37 : vector<2x32xf32>
    %39 = arith.negf %38 : vector<2x32xf32>
    %40 = math.exp %39 : vector<2x32xf32>
    %cst_34 = arith.constant 1.000000e+00 : f32
    %41 = vector.broadcast %cst_34 : f32 to vector<2x32xf32>
    %42 = arith.addf %41, %40 : vector<2x32xf32>
    %43 = arith.divf %41, %42 : vector<2x32xf32>
    %44 = arith.mulf %25, %1 : vector<2x32xf32>
    %45 = arith.mulf %14, %32 : vector<2x32xf32>
    %46 = arith.addf %44, %45 : vector<2x32xf32>
    %47 = math.tanh %46 : vector<2x32xf32>
    %48 = arith.mulf %43, %47 : vector<2x32xf32>
    %49 = arith.subf %46, %1 : vector<2x32xf32>
    %50 = vector.broadcast %3 : vector<2x1xf32> to vector<2x32xf32>
    %51 = arith.mulf %50, %49 : vector<2x32xf32>
    %52 = arith.addf %1, %51 : vector<2x32xf32>
    %53 = vector.broadcast %3 : vector<2x1xf32> to vector<2x32xf32>
    %54 = arith.mulf %53, %48 : vector<2x32xf32>
    %c0_35 = arith.constant 0 : index
    %c0_36 = arith.constant 0 : index
    %c0_37 = arith.constant 0 : index
    %55 = vector.load %arg4[%c0_35, %c0_36, %c0_37] : memref<2x8x32xf32, #tpu.memory_space<vmem>>, vector<2x1x32xf32>
    %56 = vector.shape_cast %55 : vector<2x1x32xf32> to vector<2x32xf32>
    %57 = vector.shape_cast %54 : vector<2x32xf32> to vector<2x1x32xf32>
    tpu.vector_store %arg4[%c0_35, %c0_36, %c0_37], %57 {strides = array<i32>} : memref<2x8x32xf32, #tpu.memory_space<vmem>>, vector<2x1x32xf32>,
    %58 = arith.subf %48, %0 : vector<2x32xf32>
    %59 = vector.broadcast %3 : vector<2x1xf32> to vector<2x32xf32>
    %60 = arith.mulf %59, %58 : vector<2x32xf32>
    %61 = arith.addf %0, %60 : vector<2x32xf32>
    %c1_38 = arith.constant 1 : index
    %c0_39 = arith.constant 0 : index
    %c0_40 = arith.constant 0 : index
    %62 = vector.load %arg2[%c1_38, %c0_39, %c0_40] : memref<8x2x1xf32, #tpu.memory_space<vmem>>, vector<1x2x1xf32>
    %63 = vector.shape_cast %62 : vector<1x2x1xf32> to vector<2x1xf32>
    %c0_41 = arith.constant 0 : index
    %c1_42 = arith.constant 1 : index
    %c0_43 = arith.constant 0 : index
    %c0_44 = arith.constant 0 : index
    %64 = vector.load %arg1[%c0_41, %c1_42, %c0_43, %c0_44] : memref<4x8x2x32xf32, #tpu.memory_space<vmem>>, vector<1x1x2x32xf32>
    %65 = vector.shape_cast %64 : vector<1x1x2x32xf32> to vector<2x32xf32>
    %c0_45 = arith.constant 0 : index
    %c0_46 = arith.constant 0 : index
    %c0_47 = arith.constant 0 : index
    %66 = vector.load %arg3[%c0_45, %c0_46, %c0_47] : memref<4x32x32xf32, #tpu.memory_space<vmem>>, vector<1x32x32xf32>
    %67 = vector.shape_cast %66 : vector<1x32x32xf32> to vector<32x32xf32>
    %cst_48 = arith.constant dense<0.000000e+00> : vector<2x32xf32>
    %68 = tpu.matmul %61, %67, %cst_48 {dimension_numbers = #tpu.dot_dimension_numbers<[1], [0], [0], [1], [0, 0, 1, 1], [], []>} : vector<2x32xf32>, vector<32x32xf32>, vector<2x32xf32> -> vector<2x32xf32>
    %69 = arith.addf %65, %68 : vector<2x32xf32>
    %70 = arith.negf %69 : vector<2x32xf32>
    %71 = math.exp %70 : vector<2x32xf32>
    %cst_49 = arith.constant 1.000000e+00 : f32
    %72 = vector.broadcast %cst_49 : f32 to vector<2x32xf32>
    %73 = arith.addf %72, %71 : vector<2x32xf32>
    %74 = arith.divf %72, %73 : vector<2x32xf32>
    %c1_50 = arith.constant 1 : index
    %c1_51 = arith.constant 1 : index
    %c0_52 = arith.constant 0 : index
    %c0_53 = arith.constant 0 : index
    %75 = vector.load %arg1[%c1_50, %c1_51, %c0_52, %c0_53] : memref<4x8x2x32xf32, #tpu.memory_space<vmem>>, vector<1x1x2x32xf32>
    %76 = vector.shape_cast %75 : vector<1x1x2x32xf32> to vector<2x32xf32>
    %c1_54 = arith.constant 1 : index
    %c0_55 = arith.constant 0 : index
    %c0_56 = arith.constant 0 : index
    %77 = vector.load %arg3[%c1_54, %c0_55, %c0_56] : memref<4x32x32xf32, #tpu.memory_space<vmem>>, vector<1x32x32xf32>
    %78 = vector.shape_cast %77 : vector<1x32x32xf32> to vector<32x32xf32>
    %cst_57 = arith.constant dense<0.000000e+00> : vector<2x32xf32>
    %79 = tpu.matmul %61, %78, %cst_57 {dimension_numbers = #tpu.dot_dimension_numbers<[1], [0], [0], [1], [0, 0, 1, 1], [], []>} : vector<2x32xf32>, vector<32x32xf32>, vector<2x32xf32> -> vector<2x32xf32>
    %80 = arith.addf %76, %79 : vector<2x32xf32>
    %81 = arith.negf %80 : vector<2x32xf32>
    %82 = math.exp %81 : vector<2x32xf32>
    %cst_58 = arith.constant 1.000000e+00 : f32
    %83 = vector.broadcast %cst_58 : f32 to vector<2x32xf32>
    %84 = arith.addf %83, %82 : vector<2x32xf32>
    %85 = arith.divf %83, %84 : vector<2x32xf32>
    %c2_59 = arith.constant 2 : index
    %c1_60 = arith.constant 1 : index
    %c0_61 = arith.constant 0 : index
    %c0_62 = arith.constant 0 : index
    %86 = vector.load %arg1[%c2_59, %c1_60, %c0_61, %c0_62] : memref<4x8x2x32xf32, #tpu.memory_space<vmem>>, vector<1x1x2x32xf32>
    %87 = vector.shape_cast %86 : vector<1x1x2x32xf32> to vector<2x32xf32>
    %c2_63 = arith.constant 2 : index
    %c0_64 = arith.constant 0 : index
    %c0_65 = arith.constant 0 : index
    %88 = vector.load %arg3[%c2_63, %c0_64, %c0_65] : memref<4x32x32xf32, #tpu.memory_space<vmem>>, vector<1x32x32xf32>
    %89 = vector.shape_cast %88 : vector<1x32x32xf32> to vector<32x32xf32>
    %cst_66 = arith.constant dense<0.000000e+00> : vector<2x32xf32>
    %90 = tpu.matmul %61, %89, %cst_66 {dimension_numbers = #tpu.dot_dimension_numbers<[1], [0], [0], [1], [0, 0, 1, 1], [], []>} : vector<2x32xf32>, vector<32x32xf32>, vector<2x32xf32> -> vector<2x32xf32>
    %91 = arith.addf %87, %90 : vector<2x32xf32>
    %92 = math.tanh %91 : vector<2x32xf32>
    %c3_67 = arith.constant 3 : index
    %c1_68 = arith.constant 1 : index
    %c0_69 = arith.constant 0 : index
    %c0_70 = arith.constant 0 : index
    %93 = vector.load %arg1[%c3_67, %c1_68, %c0_69, %c0_70] : memref<4x8x2x32xf32, #tpu.memory_space<vmem>>, vector<1x1x2x32xf32>
    %94 = vector.shape_cast %93 : vector<1x1x2x32xf32> to vector<2x32xf32>
    %c3_71 = arith.constant 3 : index
    %c0_72 = arith.constant 0 : index
    %c0_73 = arith.constant 0 : index
    %95 = vector.load %arg3[%c3_71, %c0_72, %c0_73] : memref<4x32x32xf32, #tpu.memory_space<vmem>>, vector<1x32x32xf32>
    %96 = vector.shape_cast %95 : vector<1x32x32xf32> to vector<32x32xf32>
    %cst_74 = arith.constant dense<0.000000e+00> : vector<2x32xf32>
    %97 = tpu.matmul %61, %96, %cst_74 {dimension_numbers = #tpu.dot_dimension_numbers<[1], [0], [0], [1], [0, 0, 1, 1], [], []>} : vector<2x32xf32>, vector<32x32xf32>, vector<2x32xf32> -> vector<2x32xf32>
    %98 = arith.addf %94, %97 : vector<2x32xf32>
    %99 = arith.negf %98 : vector<2x32xf32>
    %100 = math.exp %99 : vector<2x32xf32>
    %cst_75 = arith.constant 1.000000e+00 : f32
    %101 = vector.broadcast %cst_75 : f32 to vector<2x32xf32>
    %102 = arith.addf %101, %100 : vector<2x32xf32>
    %103 = arith.divf %101, %102 : vector<2x32xf32>
    %104 = arith.mulf %85, %52 : vector<2x32xf32>
    %105 = arith.mulf %74, %92 : vector<2x32xf32>
    %106 = arith.addf %104, %105 : vector<2x32xf32>
    %107 = math.tanh %106 : vector<2x32xf32>
    %108 = arith.mulf %103, %107 : vector<2x32xf32>
    %109 = arith.subf %106, %52 : vector<2x32xf32>
    %110 = vector.broadcast %63 : vector<2x1xf32> to vector<2x32xf32>
    %111 = arith.mulf %110, %109 : vector<2x32xf32>
    %112 = arith.addf %52, %111 : vector<2x32xf32>
    %113 = vector.broadcast %63 : vector<2x1xf32> to vector<2x32xf32>
    %114 = arith.mulf %113, %108 : vector<2x32xf32>
    %c0_76 = arith.constant 0 : index
    %c1_77 = arith.constant 1 : index
    %c0_78 = arith.constant 0 : index
    %115 = vector.load %arg4[%c0_76, %c1_77, %c0_78] : memref<2x8x32xf32, #tpu.memory_space<vmem>>, vector<2x1x32xf32>
    %116 = vector.shape_cast %115 : vector<2x1x32xf32> to vector<2x32xf32>
    %117 = vector.shape_cast %114 : vector<2x32xf32> to vector<2x1x32xf32>
    tpu.vector_store %arg4[%c0_76, %c1_77, %c0_78], %117 {strides = array<i32>} : memref<2x8x32xf32, #tpu.memory_space<vmem>>, vector<2x1x32xf32>,
    %118 = arith.subf %108, %61 : vector<2x32xf32>
    %119 = vector.broadcast %63 : vector<2x1xf32> to vector<2x32xf32>
    %120 = arith.mulf %119, %118 : vector<2x32xf32>
    %121 = arith.addf %61, %120 : vector<2x32xf32>
    %c2_79 = arith.constant 2 : index
    %c0_80 = arith.constant 0 : index
    %c0_81 = arith.constant 0 : index
    %122 = vector.load %arg2[%c2_79, %c0_80, %c0_81] : memref<8x2x1xf32, #tpu.memory_space<vmem>>, vector<1x2x1xf32>
    %123 = vector.shape_cast %122 : vector<1x2x1xf32> to vector<2x1xf32>
    %c0_82 = arith.constant 0 : index
    %c2_83 = arith.constant 2 : index
    %c0_84 = arith.constant 0 : index
    %c0_85 = arith.constant 0 : index
    %124 = vector.load %arg1[%c0_82, %c2_83, %c0_84, %c0_85] : memref<4x8x2x32xf32, #tpu.memory_space<vmem>>, vector<1x1x2x32xf32>
    %125 = vector.shape_cast %124 : vector<1x1x2x32xf32> to vector<2x32xf32>
    %c0_86 = arith.constant 0 : index
    %c0_87 = arith.constant 0 : index
    %c0_88 = arith.constant 0 : index
    %126 = vector.load %arg3[%c0_86, %c0_87, %c0_88] : memref<4x32x32xf32, #tpu.memory_space<vmem>>, vector<1x32x32xf32>
    %127 = vector.shape_cast %126 : vector<1x32x32xf32> to vector<32x32xf32>
    %cst_89 = arith.constant dense<0.000000e+00> : vector<2x32xf32>
    %128 = tpu.matmul %121, %127, %cst_89 {dimension_numbers = #tpu.dot_dimension_numbers<[1], [0], [0], [1], [0, 0, 1, 1], [], []>} : vector<2x32xf32>, vector<32x32xf32>, vector<2x32xf32> -> vector<2x32xf32>
    %129 = arith.addf %125, %128 : vector<2x32xf32>
    %130 = arith.negf %129 : vector<2x32xf32>
    %131 = math.exp %130 : vector<2x32xf32>
    %cst_90 = arith.constant 1.000000e+00 : f32
    %132 = vector.broadcast %cst_90 : f32 to vector<2x32xf32>
    %133 = arith.addf %132, %131 : vector<2x32xf32>
    %134 = arith.divf %132, %133 : vector<2x32xf32>
    %c1_91 = arith.constant 1 : index
    %c2_92 = arith.constant 2 : index
    %c0_93 = arith.constant 0 : index
    %c0_94 = arith.constant 0 : index
    %135 = vector.load %arg1[%c1_91, %c2_92, %c0_93, %c0_94] : memref<4x8x2x32xf32, #tpu.memory_space<vmem>>, vector<1x1x2x32xf32>
    %136 = vector.shape_cast %135 : vector<1x1x2x32xf32> to vector<2x32xf32>
    %c1_95 = arith.constant 1 : index
    %c0_96 = arith.constant 0 : index
    %c0_97 = arith.constant 0 : index
    %137 = vector.load %arg3[%c1_95, %c0_96, %c0_97] : memref<4x32x32xf32, #tpu.memory_space<vmem>>, vector<1x32x32xf32>
    %138 = vector.shape_cast %137 : vector<1x32x32xf32> to vector<32x32xf32>
    %cst_98 = arith.constant dense<0.000000e+00> : vector<2x32xf32>
    %139 = tpu.matmul %121, %138, %cst_98 {dimension_numbers = #tpu.dot_dimension_numbers<[1], [0], [0], [1], [0, 0, 1, 1], [], []>} : vector<2x32xf32>, vector<32x32xf32>, vector<2x32xf32> -> vector<2x32xf32>
    %140 = arith.addf %136, %139 : vector<2x32xf32>
    %141 = arith.negf %140 : vector<2x32xf32>
    %142 = math.exp %141 : vector<2x32xf32>
    %cst_99 = arith.constant 1.000000e+00 : f32
    %143 = vector.broadcast %cst_99 : f32 to vector<2x32xf32>
    %144 = arith.addf %143, %142 : vector<2x32xf32>
    %145 = arith.divf %143, %144 : vector<2x32xf32>
    %c2_100 = arith.constant 2 : index
    %c2_101 = arith.constant 2 : index
    %c0_102 = arith.constant 0 : index
    %c0_103 = arith.constant 0 : index
    %146 = vector.load %arg1[%c2_100, %c2_101, %c0_102, %c0_103] : memref<4x8x2x32xf32, #tpu.memory_space<vmem>>, vector<1x1x2x32xf32>
    %147 = vector.shape_cast %146 : vector<1x1x2x32xf32> to vector<2x32xf32>
    %c2_104 = arith.constant 2 : index
    %c0_105 = arith.constant 0 : index
    %c0_106 = arith.constant 0 : index
    %148 = vector.load %arg3[%c2_104, %c0_105, %c0_106] : memref<4x32x32xf32, #tpu.memory_space<vmem>>, vector<1x32x32xf32>
    %149 = vector.shape_cast %148 : vector<1x32x32xf32> to vector<32x32xf32>
    %cst_107 = arith.constant dense<0.000000e+00> : vector<2x32xf32>
    %150 = tpu.matmul %121, %149, %cst_107 {dimension_numbers = #tpu.dot_dimension_numbers<[1], [0], [0], [1], [0, 0, 1, 1], [], []>} : vector<2x32xf32>, vector<32x32xf32>, vector<2x32xf32> -> vector<2x32xf32>
    %151 = arith.addf %147, %150 : vector<2x32xf32>
    %152 = math.tanh %151 : vector<2x32xf32>
    %c3_108 = arith.constant 3 : index
    %c2_109 = arith.constant 2 : index
    %c0_110 = arith.constant 0 : index
    %c0_111 = arith.constant 0 : index
    %153 = vector.load %arg1[%c3_108, %c2_109, %c0_110, %c0_111] : memref<4x8x2x32xf32, #tpu.memory_space<vmem>>, vector<1x1x2x32xf32>
    %154 = vector.shape_cast %153 : vector<1x1x2x32xf32> to vector<2x32xf32>
    %c3_112 = arith.constant 3 : index
    %c0_113 = arith.constant 0 : index
    %c0_114 = arith.constant 0 : index
    %155 = vector.load %arg3[%c3_112, %c0_113, %c0_114] : memref<4x32x32xf32, #tpu.memory_space<vmem>>, vector<1x32x32xf32>
    %156 = vector.shape_cast %155 : vector<1x32x32xf32> to vector<32x32xf32>
    %cst_115 = arith.constant dense<0.000000e+00> : vector<2x32xf32>
    %157 = tpu.matmul %121, %156, %cst_115 {dimension_numbers = #tpu.dot_dimension_numbers<[1], [0], [0], [1], [0, 0, 1, 1], [], []>} : vector<2x32xf32>, vector<32x32xf32>, vector<2x32xf32> -> vector<2x32xf32>
    %158 = arith.addf %154, %157 : vector<2x32xf32>
    %159 = arith.negf %158 : vector<2x32xf32>
    %160 = math.exp %159 : vector<2x32xf32>
    %cst_116 = arith.constant 1.000000e+00 : f32
    %161 = vector.broadcast %cst_116 : f32 to vector<2x32xf32>
    %162 = arith.addf %161, %160 : vector<2x32xf32>
    %163 = arith.divf %161, %162 : vector<2x32xf32>
    %164 = arith.mulf %145, %112 : vector<2x32xf32>
    %165 = arith.mulf %134, %152 : vector<2x32xf32>
    %166 = arith.addf %164, %165 : vector<2x32xf32>
    %167 = math.tanh %166 : vector<2x32xf32>
    %168 = arith.mulf %163, %167 : vector<2x32xf32>
    %169 = arith.subf %166, %112 : vector<2x32xf32>
    %170 = vector.broadcast %123 : vector<2x1xf32> to vector<2x32xf32>
    %171 = arith.mulf %170, %169 : vector<2x32xf32>
    %172 = arith.addf %112, %171 : vector<2x32xf32>
    %173 = vector.broadcast %123 : vector<2x1xf32> to vector<2x32xf32>
    %174 = arith.mulf %173, %168 : vector<2x32xf32>
    %c0_117 = arith.constant 0 : index
    %c2_118 = arith.constant 2 : index
    %c0_119 = arith.constant 0 : index
    %175 = vector.load %arg4[%c0_117, %c2_118, %c0_119] : memref<2x8x32xf32, #tpu.memory_space<vmem>>, vector<2x1x32xf32>
    %176 = vector.shape_cast %175 : vector<2x1x32xf32> to vector<2x32xf32>
    %177 = vector.shape_cast %174 : vector<2x32xf32> to vector<2x1x32xf32>
    tpu.vector_store %arg4[%c0_117, %c2_118, %c0_119], %177 {strides = array<i32>} : memref<2x8x32xf32, #tpu.memory_space<vmem>>, vector<2x1x32xf32>,
    %178 = arith.subf %168, %121 : vector<2x32xf32>
    %179 = vector.broadcast %123 : vector<2x1xf32> to vector<2x32xf32>
    %180 = arith.mulf %179, %178 : vector<2x32xf32>
    %181 = arith.addf %121, %180 : vector<2x32xf32>
    %c3_120 = arith.constant 3 : index
    %c0_121 = arith.constant 0 : index
    %c0_122 = arith.constant 0 : index
    %182 = vector.load %arg2[%c3_120, %c0_121, %c0_122] : memref<8x2x1xf32, #tpu.memory_space<vmem>>, vector<1x2x1xf32>
    %183 = vector.shape_cast %182 : vector<1x2x1xf32> to vector<2x1xf32>
    %c0_123 = arith.constant 0 : index
    %c3_124 = arith.constant 3 : index
    %c0_125 = arith.constant 0 : index
    %c0_126 = arith.constant 0 : index
    %184 = vector.load %arg1[%c0_123, %c3_124, %c0_125, %c0_126] : memref<4x8x2x32xf32, #tpu.memory_space<vmem>>, vector<1x1x2x32xf32>
    %185 = vector.shape_cast %184 : vector<1x1x2x32xf32> to vector<2x32xf32>
    %c0_127 = arith.constant 0 : index
    %c0_128 = arith.constant 0 : index
    %c0_129 = arith.constant 0 : index
    %186 = vector.load %arg3[%c0_127, %c0_128, %c0_129] : memref<4x32x32xf32, #tpu.memory_space<vmem>>, vector<1x32x32xf32>
    %187 = vector.shape_cast %186 : vector<1x32x32xf32> to vector<32x32xf32>
    %cst_130 = arith.constant dense<0.000000e+00> : vector<2x32xf32>
    %188 = tpu.matmul %181, %187, %cst_130 {dimension_numbers = #tpu.dot_dimension_numbers<[1], [0], [0], [1], [0, 0, 1, 1], [], []>} : vector<2x32xf32>, vector<32x32xf32>, vector<2x32xf32> -> vector<2x32xf32>
    %189 = arith.addf %185, %188 : vector<2x32xf32>
    %190 = arith.negf %189 : vector<2x32xf32>
    %191 = math.exp %190 : vector<2x32xf32>
    %cst_131 = arith.constant 1.000000e+00 : f32
    %192 = vector.broadcast %cst_131 : f32 to vector<2x32xf32>
    %193 = arith.addf %192, %191 : vector<2x32xf32>
    %194 = arith.divf %192, %193 : vector<2x32xf32>
    %c1_132 = arith.constant 1 : index
    %c3_133 = arith.constant 3 : index
    %c0_134 = arith.constant 0 : index
    %c0_135 = arith.constant 0 : index
    %195 = vector.load %arg1[%c1_132, %c3_133, %c0_134, %c0_135] : memref<4x8x2x32xf32, #tpu.memory_space<vmem>>, vector<1x1x2x32xf32>
    %196 = vector.shape_cast %195 : vector<1x1x2x32xf32> to vector<2x32xf32>
    %c1_136 = arith.constant 1 : index
    %c0_137 = arith.constant 0 : index
    %c0_138 = arith.constant 0 : index
    %197 = vector.load %arg3[%c1_136, %c0_137, %c0_138] : memref<4x32x32xf32, #tpu.memory_space<vmem>>, vector<1x32x32xf32>
    %198 = vector.shape_cast %197 : vector<1x32x32xf32> to vector<32x32xf32>
    %cst_139 = arith.constant dense<0.000000e+00> : vector<2x32xf32>
    %199 = tpu.matmul %181, %198, %cst_139 {dimension_numbers = #tpu.dot_dimension_numbers<[1], [0], [0], [1], [0, 0, 1, 1], [], []>} : vector<2x32xf32>, vector<32x32xf32>, vector<2x32xf32> -> vector<2x32xf32>
    %200 = arith.addf %196, %199 : vector<2x32xf32>
    %201 = arith.negf %200 : vector<2x32xf32>
    %202 = math.exp %201 : vector<2x32xf32>
    %cst_140 = arith.constant 1.000000e+00 : f32
    %203 = vector.broadcast %cst_140 : f32 to vector<2x32xf32>
    %204 = arith.addf %203, %202 : vector<2x32xf32>
    %205 = arith.divf %203, %204 : vector<2x32xf32>
    %c2_141 = arith.constant 2 : index
    %c3_142 = arith.constant 3 : index
    %c0_143 = arith.constant 0 : index
    %c0_144 = arith.constant 0 : index
    %206 = vector.load %arg1[%c2_141, %c3_142, %c0_143, %c0_144] : memref<4x8x2x32xf32, #tpu.memory_space<vmem>>, vector<1x1x2x32xf32>
    %207 = vector.shape_cast %206 : vector<1x1x2x32xf32> to vector<2x32xf32>
    %c2_145 = arith.constant 2 : index
    %c0_146 = arith.constant 0 : index
    %c0_147 = arith.constant 0 : index
    %208 = vector.load %arg3[%c2_145, %c0_146, %c0_147] : memref<4x32x32xf32, #tpu.memory_space<vmem>>, vector<1x32x32xf32>
    %209 = vector.shape_cast %208 : vector<1x32x32xf32> to vector<32x32xf32>
    %cst_148 = arith.constant dense<0.000000e+00> : vector<2x32xf32>
    %210 = tpu.matmul %181, %209, %cst_148 {dimension_numbers = #tpu.dot_dimension_numbers<[1], [0], [0], [1], [0, 0, 1, 1], [], []>} : vector<2x32xf32>, vector<32x32xf32>, vector<2x32xf32> -> vector<2x32xf32>
    %211 = arith.addf %207, %210 : vector<2x32xf32>
    %212 = math.tanh %211 : vector<2x32xf32>
    %c3_149 = arith.constant 3 : index
    %c3_150 = arith.constant 3 : index
    %c0_151 = arith.constant 0 : index
    %c0_152 = arith.constant 0 : index
    %213 = vector.load %arg1[%c3_149, %c3_150, %c0_151, %c0_152] : memref<4x8x2x32xf32, #tpu.memory_space<vmem>>, vector<1x1x2x32xf32>
    %214 = vector.shape_cast %213 : vector<1x1x2x32xf32> to vector<2x32xf32>
    %c3_153 = arith.constant 3 : index
    %c0_154 = arith.constant 0 : index
    %c0_155 = arith.constant 0 : index
    %215 = vector.load %arg3[%c3_153, %c0_154, %c0_155] : memref<4x32x32xf32, #tpu.memory_space<vmem>>, vector<1x32x32xf32>
    %216 = vector.shape_cast %215 : vector<1x32x32xf32> to vector<32x32xf32>
    %cst_156 = arith.constant dense<0.000000e+00> : vector<2x32xf32>
    %217 = tpu.matmul %181, %216, %cst_156 {dimension_numbers = #tpu.dot_dimension_numbers<[1], [0], [0], [1], [0, 0, 1, 1], [], []>} : vector<2x32xf32>, vector<32x32xf32>, vector<2x32xf32> -> vector<2x32xf32>
    %218 = arith.addf %214, %217 : vector<2x32xf32>
    %219 = arith.negf %218 : vector<2x32xf32>
    %220 = math.exp %219 : vector<2x32xf32>
    %cst_157 = arith.constant 1.000000e+00 : f32
    %221 = vector.broadcast %cst_157 : f32 to vector<2x32xf32>
    %222 = arith.addf %221, %220 : vector<2x32xf32>
    %223 = arith.divf %221, %222 : vector<2x32xf32>
    %224 = arith.mulf %205, %172 : vector<2x32xf32>
    %225 = arith.mulf %194, %212 : vector<2x32xf32>
    %226 = arith.addf %224, %225 : vector<2x32xf32>
    %227 = math.tanh %226 : vector<2x32xf32>
    %228 = arith.mulf %223, %227 : vector<2x32xf32>
    %229 = arith.subf %226, %172 : vector<2x32xf32>
    %230 = vector.broadcast %183 : vector<2x1xf32> to vector<2x32xf32>
    %231 = arith.mulf %230, %229 : vector<2x32xf32>
    %232 = arith.addf %172, %231 : vector<2x32xf32>
    %233 = vector.broadcast %183 : vector<2x1xf32> to vector<2x32xf32>
    %234 = arith.mulf %233, %228 : vector<2x32xf32>
    %c0_158 = arith.constant 0 : index
    %c3_159 = arith.constant 3 : index
    %c0_160 = arith.constant 0 : index
    %235 = vector.load %arg4[%c0_158, %c3_159, %c0_160] : memref<2x8x32xf32, #tpu.memory_space<vmem>>, vector<2x1x32xf32>
    %236 = vector.shape_cast %235 : vector<2x1x32xf32> to vector<2x32xf32>
    %237 = vector.shape_cast %234 : vector<2x32xf32> to vector<2x1x32xf32>
    tpu.vector_store %arg4[%c0_158, %c3_159, %c0_160], %237 {strides = array<i32>} : memref<2x8x32xf32, #tpu.memory_space<vmem>>, vector<2x1x32xf32>,
    %238 = arith.subf %228, %181 : vector<2x32xf32>
    %239 = vector.broadcast %183 : vector<2x1xf32> to vector<2x32xf32>
    %240 = arith.mulf %239, %238 : vector<2x32xf32>
    %241 = arith.addf %181, %240 : vector<2x32xf32>
    %c4 = arith.constant 4 : index
    %c0_161 = arith.constant 0 : index
    %c0_162 = arith.constant 0 : index
    %242 = vector.load %arg2[%c4, %c0_161, %c0_162] : memref<8x2x1xf32, #tpu.memory_space<vmem>>, vector<1x2x1xf32>
    %243 = vector.shape_cast %242 : vector<1x2x1xf32> to vector<2x1xf32>
    %c0_163 = arith.constant 0 : index
    %c4_164 = arith.constant 4 : index
    %c0_165 = arith.constant 0 : index
    %c0_166 = arith.constant 0 : index
    %244 = vector.load %arg1[%c0_163, %c4_164, %c0_165, %c0_166] : memref<4x8x2x32xf32, #tpu.memory_space<vmem>>, vector<1x1x2x32xf32>
    %245 = vector.shape_cast %244 : vector<1x1x2x32xf32> to vector<2x32xf32>
    %c0_167 = arith.constant 0 : index
    %c0_168 = arith.constant 0 : index
    %c0_169 = arith.constant 0 : index
    %246 = vector.load %arg3[%c0_167, %c0_168, %c0_169] : memref<4x32x32xf32, #tpu.memory_space<vmem>>, vector<1x32x32xf32>
    %247 = vector.shape_cast %246 : vector<1x32x32xf32> to vector<32x32xf32>
    %cst_170 = arith.constant dense<0.000000e+00> : vector<2x32xf32>
    %248 = tpu.matmul %241, %247, %cst_170 {dimension_numbers = #tpu.dot_dimension_numbers<[1], [0], [0], [1], [0, 0, 1, 1], [], []>} : vector<2x32xf32>, vector<32x32xf32>, vector<2x32xf32> -> vector<2x32xf32>
    %249 = arith.addf %245, %248 : vector<2x32xf32>
    %250 = arith.negf %249 : vector<2x32xf32>
    %251 = math.exp %250 : vector<2x32xf32>
    %cst_171 = arith.constant 1.000000e+00 : f32
    %252 = vector.broadcast %cst_171 : f32 to vector<2x32xf32>
    %253 = arith.addf %252, %251 : vector<2x32xf32>
    %254 = arith.divf %252, %253 : vector<2x32xf32>
    %c1_172 = arith.constant 1 : index
    %c4_173 = arith.constant 4 : index
    %c0_174 = arith.constant 0 : index
    %c0_175 = arith.constant 0 : index
    %255 = vector.load %arg1[%c1_172, %c4_173, %c0_174, %c0_175] : memref<4x8x2x32xf32, #tpu.memory_space<vmem>>, vector<1x1x2x32xf32>
    %256 = vector.shape_cast %255 : vector<1x1x2x32xf32> to vector<2x32xf32>
    %c1_176 = arith.constant 1 : index
    %c0_177 = arith.constant 0 : index
    %c0_178 = arith.constant 0 : index
    %257 = vector.load %arg3[%c1_176, %c0_177, %c0_178] : memref<4x32x32xf32, #tpu.memory_space<vmem>>, vector<1x32x32xf32>
    %258 = vector.shape_cast %257 : vector<1x32x32xf32> to vector<32x32xf32>
    %cst_179 = arith.constant dense<0.000000e+00> : vector<2x32xf32>
    %259 = tpu.matmul %241, %258, %cst_179 {dimension_numbers = #tpu.dot_dimension_numbers<[1], [0], [0], [1], [0, 0, 1, 1], [], []>} : vector<2x32xf32>, vector<32x32xf32>, vector<2x32xf32> -> vector<2x32xf32>
    %260 = arith.addf %256, %259 : vector<2x32xf32>
    %261 = arith.negf %260 : vector<2x32xf32>
    %262 = math.exp %261 : vector<2x32xf32>
    %cst_180 = arith.constant 1.000000e+00 : f32
    %263 = vector.broadcast %cst_180 : f32 to vector<2x32xf32>
    %264 = arith.addf %263, %262 : vector<2x32xf32>
    %265 = arith.divf %263, %264 : vector<2x32xf32>
    %c2_181 = arith.constant 2 : index
    %c4_182 = arith.constant 4 : index
    %c0_183 = arith.constant 0 : index
    %c0_184 = arith.constant 0 : index
    %266 = vector.load %arg1[%c2_181, %c4_182, %c0_183, %c0_184] : memref<4x8x2x32xf32, #tpu.memory_space<vmem>>, vector<1x1x2x32xf32>
    %267 = vector.shape_cast %266 : vector<1x1x2x32xf32> to vector<2x32xf32>
    %c2_185 = arith.constant 2 : index
    %c0_186 = arith.constant 0 : index
    %c0_187 = arith.constant 0 : index
    %268 = vector.load %arg3[%c2_185, %c0_186, %c0_187] : memref<4x32x32xf32, #tpu.memory_space<vmem>>, vector<1x32x32xf32>
    %269 = vector.shape_cast %268 : vector<1x32x32xf32> to vector<32x32xf32>
    %cst_188 = arith.constant dense<0.000000e+00> : vector<2x32xf32>
    %270 = tpu.matmul %241, %269, %cst_188 {dimension_numbers = #tpu.dot_dimension_numbers<[1], [0], [0], [1], [0, 0, 1, 1], [], []>} : vector<2x32xf32>, vector<32x32xf32>, vector<2x32xf32> -> vector<2x32xf32>
    %271 = arith.addf %267, %270 : vector<2x32xf32>
    %272 = math.tanh %271 : vector<2x32xf32>
    %c3_189 = arith.constant 3 : index
    %c4_190 = arith.constant 4 : index
    %c0_191 = arith.constant 0 : index
    %c0_192 = arith.constant 0 : index
    %273 = vector.load %arg1[%c3_189, %c4_190, %c0_191, %c0_192] : memref<4x8x2x32xf32, #tpu.memory_space<vmem>>, vector<1x1x2x32xf32>
    %274 = vector.shape_cast %273 : vector<1x1x2x32xf32> to vector<2x32xf32>
    %c3_193 = arith.constant 3 : index
    %c0_194 = arith.constant 0 : index
    %c0_195 = arith.constant 0 : index
    %275 = vector.load %arg3[%c3_193, %c0_194, %c0_195] : memref<4x32x32xf32, #tpu.memory_space<vmem>>, vector<1x32x32xf32>
    %276 = vector.shape_cast %275 : vector<1x32x32xf32> to vector<32x32xf32>
    %cst_196 = arith.constant dense<0.000000e+00> : vector<2x32xf32>
    %277 = tpu.matmul %241, %276, %cst_196 {dimension_numbers = #tpu.dot_dimension_numbers<[1], [0], [0], [1], [0, 0, 1, 1], [], []>} : vector<2x32xf32>, vector<32x32xf32>, vector<2x32xf32> -> vector<2x32xf32>
    %278 = arith.addf %274, %277 : vector<2x32xf32>
    %279 = arith.negf %278 : vector<2x32xf32>
    %280 = math.exp %279 : vector<2x32xf32>
    %cst_197 = arith.constant 1.000000e+00 : f32
    %281 = vector.broadcast %cst_197 : f32 to vector<2x32xf32>
    %282 = arith.addf %281, %280 : vector<2x32xf32>
    %283 = arith.divf %281, %282 : vector<2x32xf32>
    %284 = arith.mulf %265, %232 : vector<2x32xf32>
    %285 = arith.mulf %254, %272 : vector<2x32xf32>
    %286 = arith.addf %284, %285 : vector<2x32xf32>
    %287 = math.tanh %286 : vector<2x32xf32>
    %288 = arith.mulf %283, %287 : vector<2x32xf32>
    %289 = arith.subf %286, %232 : vector<2x32xf32>
    %290 = vector.broadcast %243 : vector<2x1xf32> to vector<2x32xf32>
    %291 = arith.mulf %290, %289 : vector<2x32xf32>
    %292 = arith.addf %232, %291 : vector<2x32xf32>
    %293 = vector.broadcast %243 : vector<2x1xf32> to vector<2x32xf32>
    %294 = arith.mulf %293, %288 : vector<2x32xf32>
    %c0_198 = arith.constant 0 : index
    %c4_199 = arith.constant 4 : index
    %c0_200 = arith.constant 0 : index
    %295 = vector.load %arg4[%c0_198, %c4_199, %c0_200] : memref<2x8x32xf32, #tpu.memory_space<vmem>>, vector<2x1x32xf32>
    %296 = vector.shape_cast %295 : vector<2x1x32xf32> to vector<2x32xf32>
    %297 = vector.shape_cast %294 : vector<2x32xf32> to vector<2x1x32xf32>
    tpu.vector_store %arg4[%c0_198, %c4_199, %c0_200], %297 {strides = array<i32>} : memref<2x8x32xf32, #tpu.memory_space<vmem>>, vector<2x1x32xf32>,
    %298 = arith.subf %288, %241 : vector<2x32xf32>
    %299 = vector.broadcast %243 : vector<2x1xf32> to vector<2x32xf32>
    %300 = arith.mulf %299, %298 : vector<2x32xf32>
    %301 = arith.addf %241, %300 : vector<2x32xf32>
    %c5 = arith.constant 5 : index
    %c0_201 = arith.constant 0 : index
    %c0_202 = arith.constant 0 : index
    %302 = vector.load %arg2[%c5, %c0_201, %c0_202] : memref<8x2x1xf32, #tpu.memory_space<vmem>>, vector<1x2x1xf32>
    %303 = vector.shape_cast %302 : vector<1x2x1xf32> to vector<2x1xf32>
    %c0_203 = arith.constant 0 : index
    %c5_204 = arith.constant 5 : index
    %c0_205 = arith.constant 0 : index
    %c0_206 = arith.constant 0 : index
    %304 = vector.load %arg1[%c0_203, %c5_204, %c0_205, %c0_206] : memref<4x8x2x32xf32, #tpu.memory_space<vmem>>, vector<1x1x2x32xf32>
    %305 = vector.shape_cast %304 : vector<1x1x2x32xf32> to vector<2x32xf32>
    %c0_207 = arith.constant 0 : index
    %c0_208 = arith.constant 0 : index
    %c0_209 = arith.constant 0 : index
    %306 = vector.load %arg3[%c0_207, %c0_208, %c0_209] : memref<4x32x32xf32, #tpu.memory_space<vmem>>, vector<1x32x32xf32>
    %307 = vector.shape_cast %306 : vector<1x32x32xf32> to vector<32x32xf32>
    %cst_210 = arith.constant dense<0.000000e+00> : vector<2x32xf32>
    %308 = tpu.matmul %301, %307, %cst_210 {dimension_numbers = #tpu.dot_dimension_numbers<[1], [0], [0], [1], [0, 0, 1, 1], [], []>} : vector<2x32xf32>, vector<32x32xf32>, vector<2x32xf32> -> vector<2x32xf32>
    %309 = arith.addf %305, %308 : vector<2x32xf32>
    %310 = arith.negf %309 : vector<2x32xf32>
    %311 = math.exp %310 : vector<2x32xf32>
    %cst_211 = arith.constant 1.000000e+00 : f32
    %312 = vector.broadcast %cst_211 : f32 to vector<2x32xf32>
    %313 = arith.addf %312, %311 : vector<2x32xf32>
    %314 = arith.divf %312, %313 : vector<2x32xf32>
    %c1_212 = arith.constant 1 : index
    %c5_213 = arith.constant 5 : index
    %c0_214 = arith.constant 0 : index
    %c0_215 = arith.constant 0 : index
    %315 = vector.load %arg1[%c1_212, %c5_213, %c0_214, %c0_215] : memref<4x8x2x32xf32, #tpu.memory_space<vmem>>, vector<1x1x2x32xf32>
    %316 = vector.shape_cast %315 : vector<1x1x2x32xf32> to vector<2x32xf32>
    %c1_216 = arith.constant 1 : index
    %c0_217 = arith.constant 0 : index
    %c0_218 = arith.constant 0 : index
    %317 = vector.load %arg3[%c1_216, %c0_217, %c0_218] : memref<4x32x32xf32, #tpu.memory_space<vmem>>, vector<1x32x32xf32>
    %318 = vector.shape_cast %317 : vector<1x32x32xf32> to vector<32x32xf32>
    %cst_219 = arith.constant dense<0.000000e+00> : vector<2x32xf32>
    %319 = tpu.matmul %301, %318, %cst_219 {dimension_numbers = #tpu.dot_dimension_numbers<[1], [0], [0], [1], [0, 0, 1, 1], [], []>} : vector<2x32xf32>, vector<32x32xf32>, vector<2x32xf32> -> vector<2x32xf32>
    %320 = arith.addf %316, %319 : vector<2x32xf32>
    %321 = arith.negf %320 : vector<2x32xf32>
    %322 = math.exp %321 : vector<2x32xf32>
    %cst_220 = arith.constant 1.000000e+00 : f32
    %323 = vector.broadcast %cst_220 : f32 to vector<2x32xf32>
    %324 = arith.addf %323, %322 : vector<2x32xf32>
    %325 = arith.divf %323, %324 : vector<2x32xf32>
    %c2_221 = arith.constant 2 : index
    %c5_222 = arith.constant 5 : index
    %c0_223 = arith.constant 0 : index
    %c0_224 = arith.constant 0 : index
    %326 = vector.load %arg1[%c2_221, %c5_222, %c0_223, %c0_224] : memref<4x8x2x32xf32, #tpu.memory_space<vmem>>, vector<1x1x2x32xf32>
    %327 = vector.shape_cast %326 : vector<1x1x2x32xf32> to vector<2x32xf32>
    %c2_225 = arith.constant 2 : index
    %c0_226 = arith.constant 0 : index
    %c0_227 = arith.constant 0 : index
    %328 = vector.load %arg3[%c2_225, %c0_226, %c0_227] : memref<4x32x32xf32, #tpu.memory_space<vmem>>, vector<1x32x32xf32>
    %329 = vector.shape_cast %328 : vector<1x32x32xf32> to vector<32x32xf32>
    %cst_228 = arith.constant dense<0.000000e+00> : vector<2x32xf32>
    %330 = tpu.matmul %301, %329, %cst_228 {dimension_numbers = #tpu.dot_dimension_numbers<[1], [0], [0], [1], [0, 0, 1, 1], [], []>} : vector<2x32xf32>, vector<32x32xf32>, vector<2x32xf32> -> vector<2x32xf32>
    %331 = arith.addf %327, %330 : vector<2x32xf32>
    %332 = math.tanh %331 : vector<2x32xf32>
    %c3_229 = arith.constant 3 : index
    %c5_230 = arith.constant 5 : index
    %c0_231 = arith.constant 0 : index
    %c0_232 = arith.constant 0 : index
    %333 = vector.load %arg1[%c3_229, %c5_230, %c0_231, %c0_232] : memref<4x8x2x32xf32, #tpu.memory_space<vmem>>, vector<1x1x2x32xf32>
    %334 = vector.shape_cast %333 : vector<1x1x2x32xf32> to vector<2x32xf32>
    %c3_233 = arith.constant 3 : index
    %c0_234 = arith.constant 0 : index
    %c0_235 = arith.constant 0 : index
    %335 = vector.load %arg3[%c3_233, %c0_234, %c0_235] : memref<4x32x32xf32, #tpu.memory_space<vmem>>, vector<1x32x32xf32>
    %336 = vector.shape_cast %335 : vector<1x32x32xf32> to vector<32x32xf32>
    %cst_236 = arith.constant dense<0.000000e+00> : vector<2x32xf32>
    %337 = tpu.matmul %301, %336, %cst_236 {dimension_numbers = #tpu.dot_dimension_numbers<[1], [0], [0], [1], [0, 0, 1, 1], [], []>} : vector<2x32xf32>, vector<32x32xf32>, vector<2x32xf32> -> vector<2x32xf32>
    %338 = arith.addf %334, %337 : vector<2x32xf32>
    %339 = arith.negf %338 : vector<2x32xf32>
    %340 = math.exp %339 : vector<2x32xf32>
    %cst_237 = arith.constant 1.000000e+00 : f32
    %341 = vector.broadcast %cst_237 : f32 to vector<2x32xf32>
    %342 = arith.addf %341, %340 : vector<2x32xf32>
    %343 = arith.divf %341, %342 : vector<2x32xf32>
    %344 = arith.mulf %325, %292 : vector<2x32xf32>
    %345 = arith.mulf %314, %332 : vector<2x32xf32>
    %346 = arith.addf %344, %345 : vector<2x32xf32>
    %347 = math.tanh %346 : vector<2x32xf32>
    %348 = arith.mulf %343, %347 : vector<2x32xf32>
    %349 = arith.subf %346, %292 : vector<2x32xf32>
    %350 = vector.broadcast %303 : vector<2x1xf32> to vector<2x32xf32>
    %351 = arith.mulf %350, %349 : vector<2x32xf32>
    %352 = arith.addf %292, %351 : vector<2x32xf32>
    %353 = vector.broadcast %303 : vector<2x1xf32> to vector<2x32xf32>
    %354 = arith.mulf %353, %348 : vector<2x32xf32>
    %c0_238 = arith.constant 0 : index
    %c5_239 = arith.constant 5 : index
    %c0_240 = arith.constant 0 : index
    %355 = vector.load %arg4[%c0_238, %c5_239, %c0_240] : memref<2x8x32xf32, #tpu.memory_space<vmem>>, vector<2x1x32xf32>
    %356 = vector.shape_cast %355 : vector<2x1x32xf32> to vector<2x32xf32>
    %357 = vector.shape_cast %354 : vector<2x32xf32> to vector<2x1x32xf32>
    tpu.vector_store %arg4[%c0_238, %c5_239, %c0_240], %357 {strides = array<i32>} : memref<2x8x32xf32, #tpu.memory_space<vmem>>, vector<2x1x32xf32>,
    %358 = arith.subf %348, %301 : vector<2x32xf32>
    %359 = vector.broadcast %303 : vector<2x1xf32> to vector<2x32xf32>
    %360 = arith.mulf %359, %358 : vector<2x32xf32>
    %361 = arith.addf %301, %360 : vector<2x32xf32>
    %c6 = arith.constant 6 : index
    %c0_241 = arith.constant 0 : index
    %c0_242 = arith.constant 0 : index
    %362 = vector.load %arg2[%c6, %c0_241, %c0_242] : memref<8x2x1xf32, #tpu.memory_space<vmem>>, vector<1x2x1xf32>
    %363 = vector.shape_cast %362 : vector<1x2x1xf32> to vector<2x1xf32>
    %c0_243 = arith.constant 0 : index
    %c6_244 = arith.constant 6 : index
    %c0_245 = arith.constant 0 : index
    %c0_246 = arith.constant 0 : index
    %364 = vector.load %arg1[%c0_243, %c6_244, %c0_245, %c0_246] : memref<4x8x2x32xf32, #tpu.memory_space<vmem>>, vector<1x1x2x32xf32>
    %365 = vector.shape_cast %364 : vector<1x1x2x32xf32> to vector<2x32xf32>
    %c0_247 = arith.constant 0 : index
    %c0_248 = arith.constant 0 : index
    %c0_249 = arith.constant 0 : index
    %366 = vector.load %arg3[%c0_247, %c0_248, %c0_249] : memref<4x32x32xf32, #tpu.memory_space<vmem>>, vector<1x32x32xf32>
    %367 = vector.shape_cast %366 : vector<1x32x32xf32> to vector<32x32xf32>
    %cst_250 = arith.constant dense<0.000000e+00> : vector<2x32xf32>
    %368 = tpu.matmul %361, %367, %cst_250 {dimension_numbers = #tpu.dot_dimension_numbers<[1], [0], [0], [1], [0, 0, 1, 1], [], []>} : vector<2x32xf32>, vector<32x32xf32>, vector<2x32xf32> -> vector<2x32xf32>
    %369 = arith.addf %365, %368 : vector<2x32xf32>
    %370 = arith.negf %369 : vector<2x32xf32>
    %371 = math.exp %370 : vector<2x32xf32>
    %cst_251 = arith.constant 1.000000e+00 : f32
    %372 = vector.broadcast %cst_251 : f32 to vector<2x32xf32>
    %373 = arith.addf %372, %371 : vector<2x32xf32>
    %374 = arith.divf %372, %373 : vector<2x32xf32>
    %c1_252 = arith.constant 1 : index
    %c6_253 = arith.constant 6 : index
    %c0_254 = arith.constant 0 : index
    %c0_255 = arith.constant 0 : index
    %375 = vector.load %arg1[%c1_252, %c6_253, %c0_254, %c0_255] : memref<4x8x2x32xf32, #tpu.memory_space<vmem>>, vector<1x1x2x32xf32>
    %376 = vector.shape_cast %375 : vector<1x1x2x32xf32> to vector<2x32xf32>
    %c1_256 = arith.constant 1 : index
    %c0_257 = arith.constant 0 : index
    %c0_258 = arith.constant 0 : index
    %377 = vector.load %arg3[%c1_256, %c0_257, %c0_258] : memref<4x32x32xf32, #tpu.memory_space<vmem>>, vector<1x32x32xf32>
    %378 = vector.shape_cast %377 : vector<1x32x32xf32> to vector<32x32xf32>
    %cst_259 = arith.constant dense<0.000000e+00> : vector<2x32xf32>
    %379 = tpu.matmul %361, %378, %cst_259 {dimension_numbers = #tpu.dot_dimension_numbers<[1], [0], [0], [1], [0, 0, 1, 1], [], []>} : vector<2x32xf32>, vector<32x32xf32>, vector<2x32xf32> -> vector<2x32xf32>
    %380 = arith.addf %376, %379 : vector<2x32xf32>
    %381 = arith.negf %380 : vector<2x32xf32>
    %382 = math.exp %381 : vector<2x32xf32>
    %cst_260 = arith.constant 1.000000e+00 : f32
    %383 = vector.broadcast %cst_260 : f32 to vector<2x32xf32>
    %384 = arith.addf %383, %382 : vector<2x32xf32>
    %385 = arith.divf %383, %384 : vector<2x32xf32>
    %c2_261 = arith.constant 2 : index
    %c6_262 = arith.constant 6 : index
    %c0_263 = arith.constant 0 : index
    %c0_264 = arith.constant 0 : index
    %386 = vector.load %arg1[%c2_261, %c6_262, %c0_263, %c0_264] : memref<4x8x2x32xf32, #tpu.memory_space<vmem>>, vector<1x1x2x32xf32>
    %387 = vector.shape_cast %386 : vector<1x1x2x32xf32> to vector<2x32xf32>
    %c2_265 = arith.constant 2 : index
    %c0_266 = arith.constant 0 : index
    %c0_267 = arith.constant 0 : index
    %388 = vector.load %arg3[%c2_265, %c0_266, %c0_267] : memref<4x32x32xf32, #tpu.memory_space<vmem>>, vector<1x32x32xf32>
    %389 = vector.shape_cast %388 : vector<1x32x32xf32> to vector<32x32xf32>
    %cst_268 = arith.constant dense<0.000000e+00> : vector<2x32xf32>
    %390 = tpu.matmul %361, %389, %cst_268 {dimension_numbers = #tpu.dot_dimension_numbers<[1], [0], [0], [1], [0, 0, 1, 1], [], []>} : vector<2x32xf32>, vector<32x32xf32>, vector<2x32xf32> -> vector<2x32xf32>
    %391 = arith.addf %387, %390 : vector<2x32xf32>
    %392 = math.tanh %391 : vector<2x32xf32>
    %c3_269 = arith.constant 3 : index
    %c6_270 = arith.constant 6 : index
    %c0_271 = arith.constant 0 : index
    %c0_272 = arith.constant 0 : index
    %393 = vector.load %arg1[%c3_269, %c6_270, %c0_271, %c0_272] : memref<4x8x2x32xf32, #tpu.memory_space<vmem>>, vector<1x1x2x32xf32>
    %394 = vector.shape_cast %393 : vector<1x1x2x32xf32> to vector<2x32xf32>
    %c3_273 = arith.constant 3 : index
    %c0_274 = arith.constant 0 : index
    %c0_275 = arith.constant 0 : index
    %395 = vector.load %arg3[%c3_273, %c0_274, %c0_275] : memref<4x32x32xf32, #tpu.memory_space<vmem>>, vector<1x32x32xf32>
    %396 = vector.shape_cast %395 : vector<1x32x32xf32> to vector<32x32xf32>
    %cst_276 = arith.constant dense<0.000000e+00> : vector<2x32xf32>
    %397 = tpu.matmul %361, %396, %cst_276 {dimension_numbers = #tpu.dot_dimension_numbers<[1], [0], [0], [1], [0, 0, 1, 1], [], []>} : vector<2x32xf32>, vector<32x32xf32>, vector<2x32xf32> -> vector<2x32xf32>
    %398 = arith.addf %394, %397 : vector<2x32xf32>
    %399 = arith.negf %398 : vector<2x32xf32>
    %400 = math.exp %399 : vector<2x32xf32>
    %cst_277 = arith.constant 1.000000e+00 : f32
    %401 = vector.broadcast %cst_277 : f32 to vector<2x32xf32>
    %402 = arith.addf %401, %400 : vector<2x32xf32>
    %403 = arith.divf %401, %402 : vector<2x32xf32>
    %404 = arith.mulf %385, %352 : vector<2x32xf32>
    %405 = arith.mulf %374, %392 : vector<2x32xf32>
    %406 = arith.addf %404, %405 : vector<2x32xf32>
    %407 = math.tanh %406 : vector<2x32xf32>
    %408 = arith.mulf %403, %407 : vector<2x32xf32>
    %409 = arith.subf %406, %352 : vector<2x32xf32>
    %410 = vector.broadcast %363 : vector<2x1xf32> to vector<2x32xf32>
    %411 = arith.mulf %410, %409 : vector<2x32xf32>
    %412 = arith.addf %352, %411 : vector<2x32xf32>
    %413 = vector.broadcast %363 : vector<2x1xf32> to vector<2x32xf32>
    %414 = arith.mulf %413, %408 : vector<2x32xf32>
    %c0_278 = arith.constant 0 : index
    %c6_279 = arith.constant 6 : index
    %c0_280 = arith.constant 0 : index
    %415 = vector.load %arg4[%c0_278, %c6_279, %c0_280] : memref<2x8x32xf32, #tpu.memory_space<vmem>>, vector<2x1x32xf32>
    %416 = vector.shape_cast %415 : vector<2x1x32xf32> to vector<2x32xf32>
    %417 = vector.shape_cast %414 : vector<2x32xf32> to vector<2x1x32xf32>
    tpu.vector_store %arg4[%c0_278, %c6_279, %c0_280], %417 {strides = array<i32>} : memref<2x8x32xf32, #tpu.memory_space<vmem>>, vector<2x1x32xf32>,
    %418 = arith.subf %408, %361 : vector<2x32xf32>
    %419 = vector.broadcast %363 : vector<2x1xf32> to vector<2x32xf32>
    %420 = arith.mulf %419, %418 : vector<2x32xf32>
    %421 = arith.addf %361, %420 : vector<2x32xf32>
    %c7 = arith.constant 7 : index
    %c0_281 = arith.constant 0 : index
    %c0_282 = arith.constant 0 : index
    %422 = vector.load %arg2[%c7, %c0_281, %c0_282] : memref<8x2x1xf32, #tpu.memory_space<vmem>>, vector<1x2x1xf32>
    %423 = vector.shape_cast %422 : vector<1x2x1xf32> to vector<2x1xf32>
    %c0_283 = arith.constant 0 : index
    %c7_284 = arith.constant 7 : index
    %c0_285 = arith.constant 0 : index
    %c0_286 = arith.constant 0 : index
    %424 = vector.load %arg1[%c0_283, %c7_284, %c0_285, %c0_286] : memref<4x8x2x32xf32, #tpu.memory_space<vmem>>, vector<1x1x2x32xf32>
    %425 = vector.shape_cast %424 : vector<1x1x2x32xf32> to vector<2x32xf32>
    %c0_287 = arith.constant 0 : index
    %c0_288 = arith.constant 0 : index
    %c0_289 = arith.constant 0 : index
    %426 = vector.load %arg3[%c0_287, %c0_288, %c0_289] : memref<4x32x32xf32, #tpu.memory_space<vmem>>, vector<1x32x32xf32>
    %427 = vector.shape_cast %426 : vector<1x32x32xf32> to vector<32x32xf32>
    %cst_290 = arith.constant dense<0.000000e+00> : vector<2x32xf32>
    %428 = tpu.matmul %421, %427, %cst_290 {dimension_numbers = #tpu.dot_dimension_numbers<[1], [0], [0], [1], [0, 0, 1, 1], [], []>} : vector<2x32xf32>, vector<32x32xf32>, vector<2x32xf32> -> vector<2x32xf32>
    %429 = arith.addf %425, %428 : vector<2x32xf32>
    %430 = arith.negf %429 : vector<2x32xf32>
    %431 = math.exp %430 : vector<2x32xf32>
    %cst_291 = arith.constant 1.000000e+00 : f32
    %432 = vector.broadcast %cst_291 : f32 to vector<2x32xf32>
    %433 = arith.addf %432, %431 : vector<2x32xf32>
    %434 = arith.divf %432, %433 : vector<2x32xf32>
    %c1_292 = arith.constant 1 : index
    %c7_293 = arith.constant 7 : index
    %c0_294 = arith.constant 0 : index
    %c0_295 = arith.constant 0 : index
    %435 = vector.load %arg1[%c1_292, %c7_293, %c0_294, %c0_295] : memref<4x8x2x32xf32, #tpu.memory_space<vmem>>, vector<1x1x2x32xf32>
    %436 = vector.shape_cast %435 : vector<1x1x2x32xf32> to vector<2x32xf32>
    %c1_296 = arith.constant 1 : index
    %c0_297 = arith.constant 0 : index
    %c0_298 = arith.constant 0 : index
    %437 = vector.load %arg3[%c1_296, %c0_297, %c0_298] : memref<4x32x32xf32, #tpu.memory_space<vmem>>, vector<1x32x32xf32>
    %438 = vector.shape_cast %437 : vector<1x32x32xf32> to vector<32x32xf32>
    %cst_299 = arith.constant dense<0.000000e+00> : vector<2x32xf32>
    %439 = tpu.matmul %421, %438, %cst_299 {dimension_numbers = #tpu.dot_dimension_numbers<[1], [0], [0], [1], [0, 0, 1, 1], [], []>} : vector<2x32xf32>, vector<32x32xf32>, vector<2x32xf32> -> vector<2x32xf32>
    %440 = arith.addf %436, %439 : vector<2x32xf32>
    %441 = arith.negf %440 : vector<2x32xf32>
    %442 = math.exp %441 : vector<2x32xf32>
    %cst_300 = arith.constant 1.000000e+00 : f32
    %443 = vector.broadcast %cst_300 : f32 to vector<2x32xf32>
    %444 = arith.addf %443, %442 : vector<2x32xf32>
    %445 = arith.divf %443, %444 : vector<2x32xf32>
    %c2_301 = arith.constant 2 : index
    %c7_302 = arith.constant 7 : index
    %c0_303 = arith.constant 0 : index
    %c0_304 = arith.constant 0 : index
    %446 = vector.load %arg1[%c2_301, %c7_302, %c0_303, %c0_304] : memref<4x8x2x32xf32, #tpu.memory_space<vmem>>, vector<1x1x2x32xf32>
    %447 = vector.shape_cast %446 : vector<1x1x2x32xf32> to vector<2x32xf32>
    %c2_305 = arith.constant 2 : index
    %c0_306 = arith.constant 0 : index
    %c0_307 = arith.constant 0 : index
    %448 = vector.load %arg3[%c2_305, %c0_306, %c0_307] : memref<4x32x32xf32, #tpu.memory_space<vmem>>, vector<1x32x32xf32>
    %449 = vector.shape_cast %448 : vector<1x32x32xf32> to vector<32x32xf32>
    %cst_308 = arith.constant dense<0.000000e+00> : vector<2x32xf32>
    %450 = tpu.matmul %421, %449, %cst_308 {dimension_numbers = #tpu.dot_dimension_numbers<[1], [0], [0], [1], [0, 0, 1, 1], [], []>} : vector<2x32xf32>, vector<32x32xf32>, vector<2x32xf32> -> vector<2x32xf32>
    %451 = arith.addf %447, %450 : vector<2x32xf32>
    %452 = math.tanh %451 : vector<2x32xf32>
    %c3_309 = arith.constant 3 : index
    %c7_310 = arith.constant 7 : index
    %c0_311 = arith.constant 0 : index
    %c0_312 = arith.constant 0 : index
    %453 = vector.load %arg1[%c3_309, %c7_310, %c0_311, %c0_312] : memref<4x8x2x32xf32, #tpu.memory_space<vmem>>, vector<1x1x2x32xf32>
    %454 = vector.shape_cast %453 : vector<1x1x2x32xf32> to vector<2x32xf32>
    %c3_313 = arith.constant 3 : index
    %c0_314 = arith.constant 0 : index
    %c0_315 = arith.constant 0 : index
    %455 = vector.load %arg3[%c3_313, %c0_314, %c0_315] : memref<4x32x32xf32, #tpu.memory_space<vmem>>, vector<1x32x32xf32>
    %456 = vector.shape_cast %455 : vector<1x32x32xf32> to vector<32x32xf32>
    %cst_316 = arith.constant dense<0.000000e+00> : vector<2x32xf32>
    %457 = tpu.matmul %421, %456, %cst_316 {dimension_numbers = #tpu.dot_dimension_numbers<[1], [0], [0], [1], [0, 0, 1, 1], [], []>} : vector<2x32xf32>, vector<32x32xf32>, vector<2x32xf32> -> vector<2x32xf32>
    %458 = arith.addf %454, %457 : vector<2x32xf32>
    %459 = arith.negf %458 : vector<2x32xf32>
    %460 = math.exp %459 : vector<2x32xf32>
    %cst_317 = arith.constant 1.000000e+00 : f32
    %461 = vector.broadcast %cst_317 : f32 to vector<2x32xf32>
    %462 = arith.addf %461, %460 : vector<2x32xf32>
    %463 = arith.divf %461, %462 : vector<2x32xf32>
    %464 = arith.mulf %445, %412 : vector<2x32xf32>
    %465 = arith.mulf %434, %452 : vector<2x32xf32>
    %466 = arith.addf %464, %465 : vector<2x32xf32>
    %467 = math.tanh %466 : vector<2x32xf32>
    %468 = arith.mulf %463, %467 : vector<2x32xf32>
    %469 = vector.broadcast %423 : vector<2x1xf32> to vector<2x32xf32>
    %470 = arith.mulf %469, %468 : vector<2x32xf32>
    %c0_318 = arith.constant 0 : index
    %c7_319 = arith.constant 7 : index
    %c0_320 = arith.constant 0 : index
    %471 = vector.load %arg4[%c0_318, %c7_319, %c0_320] : memref<2x8x32xf32, #tpu.memory_space<vmem>>, vector<2x1x32xf32>
    %472 = vector.shape_cast %471 : vector<2x1x32xf32> to vector<2x32xf32>
    %473 = vector.shape_cast %470 : vector<2x32xf32> to vector<2x1x32xf32>
    tpu.vector_store %arg4[%c0_318, %c7_319, %c0_320], %473 {strides = array<i32>} : memref<2x8x32xf32, #tpu.memory_space<vmem>>, vector<2x1x32xf32>,
    %474 = arith.subf %468, %421 : vector<2x32xf32>
    %475 = vector.broadcast %423 : vector<2x1xf32> to vector<2x32xf32>
    %476 = arith.mulf %475, %474 : vector<2x32xf32>
    %477 = arith.addf %421, %476 : vector<2x32xf32>
    %c0_321 = arith.constant 0 : index
    %c0_322 = arith.constant 0 : index
    %478 = vector.load %arg5[%c0_321, %c0_322] : memref<2x32xf32, #tpu.memory_space<vmem>>, vector<2x32xf32>
    tpu.vector_store %arg5[%c0_321, %c0_322], %477 {strides = array<i32>} : memref<2x32xf32, #tpu.memory_space<vmem>>, vector<2x32xf32>,
    return
  }
  func.func @transform_0(%arg0: i32) -> (i32, i32, i32, i32) {
    %c0_i32 = arith.constant 0 : i32
    %c0_i32_0 = arith.constant 0 : i32
    %c0_i32_1 = arith.constant 0 : i32
    %c0_i32_2 = arith.constant 0 : i32
    return %c0_i32, %c0_i32_0, %arg0, %c0_i32_1 : i32, i32, i32, i32
  }
  func.func @transform_1(%arg0: i32) -> (i32, i32, i32) {
    %c0_i32 = arith.constant 0 : i32
    %c0_i32_0 = arith.constant 0 : i32
    %c0_i32_1 = arith.constant 0 : i32
    return %c0_i32, %arg0, %c0_i32_0 : i32, i32, i32
  }
  func.func @transform_2(%arg0: i32) -> (i32, i32, i32) {
    %c0_i32 = arith.constant 0 : i32
    %c0_i32_0 = arith.constant 0 : i32
    %c0_i32_1 = arith.constant 0 : i32
    %c0_i32_2 = arith.constant 0 : i32
    return %c0_i32, %c0_i32_0, %c0_i32_1 : i32, i32, i32
  }
  func.func @transform_3(%arg0: i32) -> (i32, i32, i32) {
    %c0_i32 = arith.constant 0 : i32
    %c0_i32_0 = arith.constant 0 : i32
    %c0_i32_1 = arith.constant 0 : i32
    return %arg0, %c0_i32, %c0_i32_0 : i32, i32, i32
  }
  func.func @transform_4(%arg0: i32) -> (i32, i32) {
    %c0_i32 = arith.constant 0 : i32
    %c0_i32_0 = arith.constant 0 : i32
    return %arg0, %c0_i32 : i32, i32
  }
}

</mosaic_0001>

<llo_original>
// kernel: tpu_custom_call.1
$region0: #{tpu_custom_call.1}
  #allocation0 [shape = 'u32[]', space=smem, size = 0x4, offset = 0x4, fixed_abs, tag = 'smem constant byte address 0x4 - core index']
  #allocation1 [shape = 'u32[144,128]{1,0:T(1,128)}', space=vmem, size = 0x12000, scoped, tag = 'internal scratch']
  %s0 = inlined_call_operand.hbm [shape: f32[4,8,2,32], index: 0, kind: input, shape index: {}]
  %s1 = inlined_call_operand.vmem [shape: f32[8,2,1], index: 1, kind: input, shape index: {}]
  %s2 = inlined_call_operand.hbm [shape: f32[4,32,32], index: 2, kind: input, shape index: {}]
  %s3 = inlined_call_operand.hbm [shape: f32[2,8,32], index: 3, kind: output, shape index: {0}]
  %s4 = inlined_call_operand.hbm [shape: f32[2,32], index: 4, kind: output, shape index: {1}]
  %5 = xla_tuple %s3, %s4
  %s6 = sld [smem:[#allocation0]]
  $region38: #{tpu_custom_call.1} parent=0
    _
  %s8 = ssub.s32 1, %s6
  %s9 = scalar_select 0, %s8, %s6
  $region1: #{tpu_custom_call.1} parent=0
    #allocation2 [shape = 'u8[32768]{0}', space=vmem, size = 0x8000, scoped, tag = 'input window, operand 0, single buffered']
    #allocation3 [shape = 's32[1]{0}', space=sflag, size = 0x4, scoped, tag = 'scoped memory for tpu_custom_call.1']
    #allocation4 [shape = 's32[1]{0}', space=sflag, size = 0x4, scoped, tag = 'scoped memory for tpu_custom_call.1']
    #allocation5 [shape = 'u8[65536]{0}', space=vmem, size = 0x10000, scoped, tag = 'input window, operand 2, single buffered']
    #allocation6 [shape = 's32[1]{0}', space=sflag, size = 0x4, scoped, tag = 'scoped memory for tpu_custom_call.1']
    #allocation7 [shape = 'u8[8192]{0}', space=vmem, size = 0x2000, scoped, tag = 'output window, operand 0, single buffered']
    #allocation8 [shape = 'u8[1024]{0}', space=vmem, size = 0x400, scoped, tag = 'output window, operand 1, single buffered']
    #allocation9 [shape = 's32[1]{0}', space=sflag, size = 0x4, scoped, tag = 'scoped memory for tpu_custom_call.1']
    %10 = vsyncpa [#allocation3], 0
    %11 = vsyncpa [#allocation6], 0
    %12 = vsyncpa [#allocation4], 0
    %13 = vsyncpa [#allocation9], 0
    // Predicated region
    $region2: #{tpu_custom_call.1} parent=1 // pred_check
      _
    $region3: #{tpu_custom_call.1} parent=1 // pred_check_branch
      %15 = sbr.rel (0) target = $region5
    $region4: #{tpu_custom_call.1} parent=1 // pred_region
      %s17 = ssub.s32 1024, 1024
      %18 = vsyncadd [#allocation3], %s17
      %s19 = sshll.u32 [#allocation2], 4
      %s20 = int_to_ptr.vmem [resolvable:$true] %s19
      %25 = dma.hbm_to_vmem [thread:$0]  %s0, 1024, %s20, [#allocation3], 32, 32, 2
    $region5: #{tpu_custom_call.1} parent=1 // pred_fallthru
      _
    // Predicated region
    $region6: #{tpu_custom_call.1} parent=1 // pred_check
      _
    $region7: #{tpu_custom_call.1} parent=1 // pred_check_branch
      %27 = sbr.rel (0) target = $region9
    $region8: #{tpu_custom_call.1} parent=1 // pred_region
      _
    $region9: #{tpu_custom_call.1} parent=1 // pred_fallthru
      _
    // Predicated region
    $region10: #{tpu_custom_call.1} parent=1 // pred_check
      _
    $region11: #{tpu_custom_call.1} parent=1 // pred_check_branch
      %29 = sbr.rel (0) target = $region13
    $region12: #{tpu_custom_call.1} parent=1 // pred_region
      %s31 = ssub.s32 2048, 2048
      %32 = vsyncadd [#allocation6], %s31
      %s33 = sshll.u32 [#allocation5], 4
      %s34 = int_to_ptr.vmem [resolvable:$true] %s33
      %39 = dma.hbm_to_vmem [thread:$0]  %s2, 2048, %s34, [#allocation6], 128, 128, 8
    $region13: #{tpu_custom_call.1} parent=1 // pred_fallthru
      _
    // Predicated region
    $region14: #{tpu_custom_call.1} parent=1 // pred_check
      _
    $region15: #{tpu_custom_call.1} parent=1 // pred_check_branch
      %41 = sbr.rel (0) target = $region17
    $region16: #{tpu_custom_call.1} parent=1 // pred_region
      %42 = dma.done [#allocation3], 1024
    $region17: #{tpu_custom_call.1} parent=1 // pred_fallthru
      _
    // Predicated region
    $region18: #{tpu_custom_call.1} parent=1 // pred_check
      _
    $region19: #{tpu_custom_call.1} parent=1 // pred_check_branch
      %44 = sbr.rel (0) target = $region21
    $region20: #{tpu_custom_call.1} parent=1 // pred_region
      %45 = dma.done [#allocation6], 2048
    $region21: #{tpu_custom_call.1} parent=1 // pred_fallthru
      _
    %v46 = vld [vmem:[%s1] sm:$0x3]
    %v47 = vld [vmem:[#allocation2] sm:$0x3]
    %v48 = vld [vmem:[#allocation5] sm:$0xff]
    %v49 = vld [vmem:[#allocation5 + $0x8] sm:$0xff]
    %v50 = vld [vmem:[#allocation5 + $0x10] sm:$0xff]
    %v51 = vld [vmem:[#allocation5 + $0x18] sm:$0xff]
    %vm52 = vcmask 261120
    %v54 = vsel %vm52, 0.0, 0
    %56 = vmatprep.subr.mxu0 0.0
    %57 = vmatpush1.msra.mxu0 %v48
    %58 = vmatprep.subr.mxu0 0.0
    %59 = vmatpush1.msra.mxu0 %v49
    %60 = vmatprep.subr.mxu0 0.0
    %61 = vmatpush1.msra.mxu0 %v50
    %62 = vmatprep.subr.mxu0 0.0
    %63 = vmatpush1.msra.mxu0 %v51
    %64 = vmatprep.subr.mxu0 0.0
    %65 = vmatpush1.msra.mxu0 0.0
    %66 = vmatprep.subr.mxu0 0.0
    %67 = vmatpush1.msra.mxu0 0.0
    %68 = vmatprep.subr.mxu0 0.0
    %69 = vmatpush1.msra.mxu0 0.0
    %70 = vmatprep.subr.mxu0 0.0
    %71 = vmatpush1.msra.mxu0 0.0
    %72 = vmatprep.subr.mxu0 0.0
    %73 = vmatpush1.msra.mxu0 0.0
    %74 = vmatprep.subr.mxu0 0.0
    %75 = vmatpush1.msra.mxu0 0.0
    %76 = vmatprep.subr.mxu0 0.0
    %77 = vmatpush1.msra.mxu0 0.0
    %78 = vmatprep.subr.mxu0 0.0
    %79 = vmatpush1.msra.mxu0 0.0
    %80 = vmatprep.subr.mxu0 0.0
    %81 = vmatpush1.msra.mxu0 0.0
    %82 = vmatprep.subr.mxu0 0.0
    %83 = vmatpush1.msra.mxu0 0.0
    %84 = vmatprep.subr.mxu0 0.0
    %85 = vmatpush1.msra.mxu0 0.0
    %86 = vmatprep.subr.mxu0 0.0
    %87 = vmatpush1.msra.mxu0 0.0
    %88 = vmatprep.subr.mxu0 0.0
    %89 = vmatpush1.msra.mxu0 0.0
    %90 = vmatprep.subr.mxu0 0.0
    %91 = vmatpush1.msra.mxu0 0.0
    %92 = vmatprep.subr.mxu0 0.0
    %93 = vmatpush1.msra.mxu0 0.0
    %94 = vmatprep.subr.mxu0 0.0
    %95 = vmatpush1.msra.mxu0 0.0
    %96 = vmatprep.subr.mxu0 0.0
    %97 = vmatpush1.msra.mxu0 0.0
    %98 = vmatprep.subr.mxu0 0.0
    %99 = vmatpush1.msra.mxu0 0.0
    %100 = vmatprep.subr.mxu0 0.0
    %101 = vmatpush1.msra.mxu0 0.0
    %102 = vmatprep.subr.mxu0 0.0
    %103 = vmatpush1.msra.mxu0 0.0
    %104 = vmatprep.subr.mxu0 0.0
    %105 = vmatpush1.msra.mxu0 0.0
    %106 = vmatprep.subr.mxu0 0.0
    %107 = vmatpush1.msra.mxu0 0.0
    %108 = vmatprep.subr.mxu0 0.0
    %109 = vmatpush1.msra.mxu0 0.0
    %110 = vmatprep.subr.mxu0 0.0
    %111 = vmatpush1.msra.mxu0 0.0
    %112 = vmatprep.subr.mxu0 0.0
    %113 = vmatpush1.msra.mxu0 0.0
    %114 = vmatprep.subr.mxu0 0.0
    %115 = vmatpush1.msra.mxu0 0.0
    %116 = vmatprep.subr.mxu0 0.0
    %117 = vmatpush1.msra.mxu0 0.0
    %118 = vmatprep.subr.mxu0 0.0
    %119 = vmatpush1.msra.mxu0 0.0
    %120 = vmatprep.mubr.f32.mxu0 0.0
    %121 = vmatmul.mubr.f32.gmra.mrb[0].mxu0 %v54
    %v122 = vpop.f32.mrb[0].mxu0
    %v123 = vadd.f32 0.0, %v122
    %v124 = vpop.f32.mrb[0].mxu0
    %125 = vdwg.mxu0
    %v126 = vadd.f32 %v47, %v123
    %v127 = vxor.u32 %v126, 2147483648
    %v128 = vmul.f32 %v127, 1.442695
    %v129 = vpow.pop %v128
    %v130 = vadd.f32 %v129, 1.0
    %v131 = vrcp.pop %v130
    %v132 = vmul.f32 1.0, %v131
    %s133 = scalar_lea.vmem [#allocation2], 16
    %v134 = vld [vmem:[%s133] sm:$0x3]
    %s135 = scalar_lea.vmem [#allocation5], 32
    %v136 = vld [vmem:[%s135] sm:$0xff]
    %v137 = vld [vmem:[%s135 + $0x8] sm:$0xff]
    %v138 = vld [vmem:[%s135 + $0x10] sm:$0xff]
    %v139 = vld [vmem:[%s135 + $0x18] sm:$0xff]
    %140 = vmatprep.subr.mxu0 0.0
    %141 = vmatpush1.msra.mxu0 %v136
    %142 = vmatprep.subr.mxu0 0.0
    %143 = vmatpush1.msra.mxu0 %v137
    %144 = vmatprep.subr.mxu0 0.0
    %145 = vmatpush1.msra.mxu0 %v138
    %146 = vmatprep.subr.mxu0 0.0
    %147 = vmatpush1.msra.mxu0 %v139
    %148 = vmatprep.subr.mxu0 0.0
    %149 = vmatpush1.msra.mxu0 0.0
    %150 = vmatprep.subr.mxu0 0.0
    %151 = vmatpush1.msra.mxu0 0.0
    %152 = vmatprep.subr.mxu0 0.0
    %153 = vmatpush1.msra.mxu0 0.0
    %154 = vmatprep.subr.mxu0 0.0
    %155 = vmatpush1.msra.mxu0 0.0
    %156 = vmatprep.subr.mxu0 0.0
    %157 = vmatpush1.msra.mxu0 0.0
    %158 = vmatprep.subr.mxu0 0.0
    %159 = vmatpush1.msra.mxu0 0.0
    %160 = vmatprep.subr.mxu0 0.0
    %161 = vmatpush1.msra.mxu0 0.0
    %162 = vmatprep.subr.mxu0 0.0
    %163 = vmatpush1.msra.mxu0 0.0
    %164 = vmatprep.subr.mxu0 0.0
    %165 = vmatpush1.msra.mxu0 0.0
    %166 = vmatprep.subr.mxu0 0.0
    %167 = vmatpush1.msra.mxu0 0.0
    %168 = vmatprep.subr.mxu0 0.0
    %169 = vmatpush1.msra.mxu0 0.0
    %170 = vmatprep.subr.mxu0 0.0
    %171 = vmatpush1.msra.mxu0 0.0
    %172 = vmatprep.subr.mxu0 0.0
    %173 = vmatpush1.msra.mxu0 0.0
    %174 = vmatprep.subr.mxu0 0.0
    %175 = vmatpush1.msra.mxu0 0.0
    %176 = vmatprep.subr.mxu0 0.0
    %177 = vmatpush1.msra.mxu0 0.0
    %178 = vmatprep.subr.mxu0 0.0
    %179 = vmatpush1.msra.mxu0 0.0
    %180 = vmatprep.subr.mxu0 0.0
    %181 = vmatpush1.msra.mxu0 0.0
    %182 = vmatprep.subr.mxu0 0.0
    %183 = vmatpush1.msra.mxu0 0.0
    %184 = vmatprep.subr.mxu0 0.0
    %185 = vmatpush1.msra.mxu0 0.0
    %186 = vmatprep.subr.mxu0 0.0
    %187 = vmatpush1.msra.mxu0 0.0
    %188 = vmatprep.subr.mxu0 0.0
    %189 = vmatpush1.msra.mxu0 0.0
    %190 = vmatprep.subr.mxu0 0.0
    %191 = vmatpush1.msra.mxu0 0.0
    %192 = vmatprep.subr.mxu0 0.0
    %193 = vmatpush1.msra.mxu0 0.0
    %194 = vmatprep.subr.mxu0 0.0
    %195 = vmatpush1.msra.mxu0 0.0
    %196 = vmatprep.subr.mxu0 0.0
    %197 = vmatpush1.msra.mxu0 0.0
    %198 = vmatprep.subr.mxu0 0.0
    %199 = vmatpush1.msra.mxu0 0.0
    %200 = vmatprep.subr.mxu0 0.0
    %201 = vmatpush1.msra.mxu0 0.0
    %202 = vmatprep.subr.mxu0 0.0
    %203 = vmatpush1.msra.mxu0 0.0
    %204 = vmatprep.mubr.f32.mxu0 0.0
    %205 = vmatmul.mubr.f32.gmra.mrb[0].mxu0 %v54
    %v206 = vpop.f32.mrb[0].mxu0
    %v207 = vadd.f32 0.0, %v206
    %v208 = vpop.f32.mrb[0].mxu0
    %209 = vdwg.mxu0
    %v210 = vadd.f32 %v134, %v207
    %v211 = vxor.u32 %v210, 2147483648
    %v212 = vmul.f32 %v211, 1.442695
    %v213 = vpow.pop %v212
    %v214 = vadd.f32 %v213, 1.0
    %v215 = vrcp.pop %v214
    %v216 = vmul.f32 1.0, %v215
    %s217 = scalar_lea.vmem [#allocation2], 32
    %v218 = vld [vmem:[%s217] sm:$0x3]
    %s219 = scalar_lea.vmem [#allocation5], 64
    %v220 = vld [vmem:[%s219] sm:$0xff]
    %v221 = vld [vmem:[%s219 + $0x8] sm:$0xff]
    %v222 = vld [vmem:[%s219 + $0x10] sm:$0xff]
    %v223 = vld [vmem:[%s219 + $0x18] sm:$0xff]
    %224 = vmatprep.subr.mxu0 0.0
    %225 = vmatpush1.msra.mxu0 %v220
    %226 = vmatprep.subr.mxu0 0.0
    %227 = vmatpush1.msra.mxu0 %v221
    %228 = vmatprep.subr.mxu0 0.0
    %229 = vmatpush1.msra.mxu0 %v222
    %230 = vmatprep.subr.mxu0 0.0
    %231 = vmatpush1.msra.mxu0 %v223
    %232 = vmatprep.subr.mxu0 0.0
    %233 = vmatpush1.msra.mxu0 0.0
    %234 = vmatprep.subr.mxu0 0.0
    %235 = vmatpush1.msra.mxu0 0.0
    %236 = vmatprep.subr.mxu0 0.0
    %237 = vmatpush1.msra.mxu0 0.0
    %238 = vmatprep.subr.mxu0 0.0
    %239 = vmatpush1.msra.mxu0 0.0
    %240 = vmatprep.subr.mxu0 0.0
    %241 = vmatpush1.msra.mxu0 0.0
    %242 = vmatprep.subr.mxu0 0.0
    %243 = vmatpush1.msra.mxu0 0.0
    %244 = vmatprep.subr.mxu0 0.0
    %245 = vmatpush1.msra.mxu0 0.0
    %246 = vmatprep.subr.mxu0 0.0
    %247 = vmatpush1.msra.mxu0 0.0
    %248 = vmatprep.subr.mxu0 0.0
    %249 = vmatpush1.msra.mxu0 0.0
    %250 = vmatprep.subr.mxu0 0.0
    %251 = vmatpush1.msra.mxu0 0.0
    %252 = vmatprep.subr.mxu0 0.0
    %253 = vmatpush1.msra.mxu0 0.0
    %254 = vmatprep.subr.mxu0 0.0
    %255 = vmatpush1.msra.mxu0 0.0
    %256 = vmatprep.subr.mxu0 0.0
    %257 = vmatpush1.msra.mxu0 0.0
    %258 = vmatprep.subr.mxu0 0.0
    %259 = vmatpush1.msra.mxu0 0.0
    %260 = vmatprep.subr.mxu0 0.0
    %261 = vmatpush1.msra.mxu0 0.0
    %262 = vmatprep.subr.mxu0 0.0
    %263 = vmatpush1.msra.mxu0 0.0
    %264 = vmatprep.subr.mxu0 0.0
    %265 = vmatpush1.msra.mxu0 0.0
    %266 = vmatprep.subr.mxu0 0.0
    %267 = vmatpush1.msra.mxu0 0.0
    %268 = vmatprep.subr.mxu0 0.0
    %269 = vmatpush1.msra.mxu0 0.0
    %270 = vmatprep.subr.mxu0 0.0
    %271 = vmatpush1.msra.mxu0 0.0
    %272 = vmatprep.subr.mxu0 0.0
    %273 = vmatpush1.msra.mxu0 0.0
    %274 = vmatprep.subr.mxu0 0.0
    %275 = vmatpush1.msra.mxu0 0.0
    %276 = vmatprep.subr.mxu0 0.0
    %277 = vmatpush1.msra.mxu0 0.0
    %278 = vmatprep.subr.mxu0 0.0
    %279 = vmatpush1.msra.mxu0 0.0
    %280 = vmatprep.subr.mxu0 0.0
    %281 = vmatpush1.msra.mxu0 0.0
    %282 = vmatprep.subr.mxu0 0.0
    %283 = vmatpush1.msra.mxu0 0.0
    %284 = vmatprep.subr.mxu0 0.0
    %285 = vmatpush1.msra.mxu0 0.0
    %286 = vmatprep.subr.mxu0 0.0
    %287 = vmatpush1.msra.mxu0 0.0
    %288 = vmatprep.mubr.f32.mxu0 0.0
    %289 = vmatmul.mubr.f32.gmra.mrb[0].mxu0 %v54
    %v290 = vpop.f32.mrb[0].mxu0
    %v291 = vadd.f32 0.0, %v290
    %v292 = vpop.f32.mrb[0].mxu0
    %293 = vdwg.mxu0
    %v294 = vadd.f32 %v218, %v291
    %v295 = vtanh.pop %v294
    %s296 = scalar_lea.vmem [#allocation2], 48
    %v297 = vld [vmem:[%s296] sm:$0x3]
    %s298 = scalar_lea.vmem [#allocation5], 96
    %v299 = vld [vmem:[%s298] sm:$0xff]
    %v300 = vld [vmem:[%s298 + $0x8] sm:$0xff]
    %v301 = vld [vmem:[%s298 + $0x10] sm:$0xff]
    %v302 = vld [vmem:[%s298 + $0x18] sm:$0xff]
    %303 = vmatprep.subr.mxu0 0.0
    %304 = vmatpush1.msra.mxu0 %v299
    %305 = vmatprep.subr.mxu0 0.0
    %306 = vmatpush1.msra.mxu0 %v300
    %307 = vmatprep.subr.mxu0 0.0
    %308 = vmatpush1.msra.mxu0 %v301
    %309 = vmatprep.subr.mxu0 0.0
    %310 = vmatpush1.msra.mxu0 %v302
    %311 = vmatprep.subr.mxu0 0.0
    %312 = vmatpush1.msra.mxu0 0.0
    %313 = vmatprep.subr.mxu0 0.0
    %314 = vmatpush1.msra.mxu0 0.0
    %315 = vmatprep.subr.mxu0 0.0
    %316 = vmatpush1.msra.mxu0 0.0
    %317 = vmatprep.subr.mxu0 0.0
    %318 = vmatpush1.msra.mxu0 0.0
    %319 = vmatprep.subr.mxu0 0.0
    %320 = vmatpush1.msra.mxu0 0.0
    %321 = vmatprep.subr.mxu0 0.0
    %322 = vmatpush1.msra.mxu0 0.0
    %323 = vmatprep.subr.mxu0 0.0
    %324 = vmatpush1.msra.mxu0 0.0
    %325 = vmatprep.subr.mxu0 0.0
    %326 = vmatpush1.msra.mxu0 0.0
    %327 = vmatprep.subr.mxu0 0.0
    %328 = vmatpush1.msra.mxu0 0.0
    %329 = vmatprep.subr.mxu0 0.0
    %330 = vmatpush1.msra.mxu0 0.0
    %331 = vmatprep.subr.mxu0 0.0
    %332 = vmatpush1.msra.mxu0 0.0
    %333 = vmatprep.subr.mxu0 0.0
    %334 = vmatpush1.msra.mxu0 0.0
    %335 = vmatprep.subr.mxu0 0.0
    %336 = vmatpush1.msra.mxu0 0.0
    %337 = vmatprep.subr.mxu0 0.0
    %338 = vmatpush1.msra.mxu0 0.0
    %339 = vmatprep.subr.mxu0 0.0
    %340 = vmatpush1.msra.mxu0 0.0
    %341 = vmatprep.subr.mxu0 0.0
    %342 = vmatpush1.msra.mxu0 0.0
    %343 = vmatprep.subr.mxu0 0.0
    %344 = vmatpush1.msra.mxu0 0.0
    %345 = vmatprep.subr.mxu0 0.0
    %346 = vmatpush1.msra.mxu0 0.0
    %347 = vmatprep.subr.mxu0 0.0
    %348 = vmatpush1.msra.mxu0 0.0
    %349 = vmatprep.subr.mxu0 0.0
    %350 = vmatpush1.msra.mxu0 0.0
    %351 = vmatprep.subr.mxu0 0.0
    %352 = vmatpush1.msra.mxu0 0.0
    %353 = vmatprep.subr.mxu0 0.0
    %354 = vmatpush1.msra.mxu0 0.0
    %355 = vmatprep.subr.mxu0 0.0
    %356 = vmatpush1.msra.mxu0 0.0
    %357 = vmatprep.subr.mxu0 0.0
    %358 = vmatpush1.msra.mxu0 0.0
    %359 = vmatprep.subr.mxu0 0.0
    %360 = vmatpush1.msra.mxu0 0.0
    %361 = vmatprep.subr.mxu0 0.0
    %362 = vmatpush1.msra.mxu0 0.0
    %363 = vmatprep.subr.mxu0 0.0
    %364 = vmatpush1.msra.mxu0 0.0
    %365 = vmatprep.subr.mxu0 0.0
    %366 = vmatpush1.msra.mxu0 0.0
    %367 = vmatprep.mubr.f32.mxu0 0.0
    %368 = vmatmul.mubr.f32.gmra.mrb[0].mxu0 %v54
    %v369 = vpop.f32.mrb[0].mxu0
    %v370 = vadd.f32 0.0, %v369
    %v371 = vpop.f32.mrb[0].mxu0
    %372 = vdwg.mxu0
    %v373 = vadd.f32 %v297, %v370
    %v374 = vxor.u32 %v373, 2147483648
    %v375 = vmul.f32 %v374, 1.442695
    %v376 = vpow.pop %v375
    %v377 = vadd.f32 %v376, 1.0
    %v378 = vrcp.pop %v377
    %v379 = vmul.f32 1.0, %v378
    %v380 = vmul.f32 %v216, 0.0
    %v381 = vmul.f32 %v132, %v295
    %v382 = vadd.f32 %v380, %v381
    %v383 = vtanh.pop %v382
    %v384 = vmul.f32 %v379, %v383
    %386 = vset.pattern.permute.xlu0 0
    %387 = vperm.xlu0 %386, %v46
    %v388 = vpop.permute.xlu0 %387
    %v390 = vmul.f32 %v388, %v382
    %v391 = vadd.f32 %v390, 0.0
    %v392 = vmul.f32 %v388, %v384
    %v395 = vunpack.c.l.s4 1966171168
    %v396 = vunpack.c.0.s8 %v395
    %v397 = vlaneseq
    %v398 = vshrl.u32 %v397, 7
    %v399 = vsub.s32 %v396, %v398
    %v400 = vrot.slane %v392, %v399
    %v401 = vcombine.high %v400, %v400
    %v403 = vunpack.c.l.s4 1966171168
    %v404 = vunpack.c.0.s8 %v403
    %v405 = vlaneseq
    %v406 = vshrl.u32 %v405, 7
    %v407 = vsub.s32 %v404, %v406
    %v408 = vrot.slane %v400, %v407
    %v410 = vunpack.c.l.s4 1966171168
    %v411 = vunpack.c.0.s8 %v410
    %v412 = vlaneseq
    %v413 = vshrl.u32 %v412, 7
    %v414 = vsub.s32 %v411, %v413
    %v415 = vrot.slane %v401, %v414
    %vm418 = vcmask 253952
    %419 = vst.msk [vmem:[#allocation7] sm:$0x1] %vm418, %v408
    %420 = vst.msk [vmem:[#allocation7 + $0x8] sm:$0x1] %vm418, %v415
    %v421 = vadd.f32 %v392, 0.0
    %s422 = scalar_lea.vmem %s1, 2
    %v423 = vld [vmem:[%s422] sm:$0x3]
    %s424 = scalar_lea.vmem [#allocation2], 2
    %v425 = vld [vmem:[%s424] sm:$0x3]
    %v426 = vld [vmem:[#allocation5] sm:$0xff]
    %v427 = vld [vmem:[#allocation5 + $0x8] sm:$0xff]
    %v428 = vld [vmem:[#allocation5 + $0x10] sm:$0xff]
    %v429 = vld [vmem:[#allocation5 + $0x18] sm:$0xff]
    %v431 = vsel %vm52, %v421, 0
    %433 = vmatprep.subr.mxu0 0.0
    %434 = vmatpush1.msra.mxu0 %v426
    %435 = vmatprep.subr.mxu0 0.0
    %436 = vmatpush1.msra.mxu0 %v427
    %437 = vmatprep.subr.mxu0 0.0
    %438 = vmatpush1.msra.mxu0 %v428
    %439 = vmatprep.subr.mxu0 0.0
    %440 = vmatpush1.msra.mxu0 %v429
    %441 = vmatprep.subr.mxu0 0.0
    %442 = vmatpush1.msra.mxu0 0.0
    %443 = vmatprep.subr.mxu0 0.0
    %444 = vmatpush1.msra.mxu0 0.0
    %445 = vmatprep.subr.mxu0 0.0
    %446 = vmatpush1.msra.mxu0 0.0
    %447 = vmatprep.subr.mxu0 0.0
    %448 = vmatpush1.msra.mxu0 0.0
    %449 = vmatprep.subr.mxu0 0.0
    %450 = vmatpush1.msra.mxu0 0.0
    %451 = vmatprep.subr.mxu0 0.0
    %452 = vmatpush1.msra.mxu0 0.0
    %453 = vmatprep.subr.mxu0 0.0
    %454 = vmatpush1.msra.mxu0 0.0
    %455 = vmatprep.subr.mxu0 0.0
    %456 = vmatpush1.msra.mxu0 0.0
    %457 = vmatprep.subr.mxu0 0.0
    %458 = vmatpush1.msra.mxu0 0.0
    %459 = vmatprep.subr.mxu0 0.0
    %460 = vmatpush1.msra.mxu0 0.0
    %461 = vmatprep.subr.mxu0 0.0
    %462 = vmatpush1.msra.mxu0 0.0
    %463 = vmatprep.subr.mxu0 0.0
    %464 = vmatpush1.msra.mxu0 0.0
    %465 = vmatprep.subr.mxu0 0.0
    %466 = vmatpush1.msra.mxu0 0.0
    %467 = vmatprep.subr.mxu0 0.0
    %468 = vmatpush1.msra.mxu0 0.0
    %469 = vmatprep.subr.mxu0 0.0
    %470 = vmatpush1.msra.mxu0 0.0
    %471 = vmatprep.subr.mxu0 0.0
    %472 = vmatpush1.msra.mxu0 0.0
    %473 = vmatprep.subr.mxu0 0.0
    %474 = vmatpush1.msra.mxu0 0.0
    %475 = vmatprep.subr.mxu0 0.0
    %476 = vmatpush1.msra.mxu0 0.0
    %477 = vmatprep.subr.mxu0 0.0
    %478 = vmatpush1.msra.mxu0 0.0
    %479 = vmatprep.subr.mxu0 0.0
    %480 = vmatpush1.msra.mxu0 0.0
    %481 = vmatprep.subr.mxu0 0.0
    %482 = vmatpush1.msra.mxu0 0.0
    %483 = vmatprep.subr.mxu0 0.0
    %484 = vmatpush1.msra.mxu0 0.0
    %485 = vmatprep.subr.mxu0 0.0
    %486 = vmatpush1.msra.mxu0 0.0
    %487 = vmatprep.subr.mxu0 0.0
    %488 = vmatpush1.msra.mxu0 0.0
    %489 = vmatprep.subr.mxu0 0.0
    %490 = vmatpush1.msra.mxu0 0.0
    %491 = vmatprep.subr.mxu0 0.0
    %492 = vmatpush1.msra.mxu0 0.0
    %493 = vmatprep.subr.mxu0 0.0
    %494 = vmatpush1.msra.mxu0 0.0
    %495 = vmatprep.subr.mxu0 0.0
    %496 = vmatpush1.msra.mxu0 0.0
    %497 = vmatprep.mubr.f32.mxu0 0.0
    %498 = vmatmul.mubr.f32.gmra.mrb[0].mxu0 %v431
    %v499 = vpop.f32.mrb[0].mxu0
    %v500 = vadd.f32 0.0, %v499
    %v501 = vpop.f32.mrb[0].mxu0
    %502 = vdwg.mxu0
    %v503 = vadd.f32 %v425, %v500
    %v504 = vxor.u32 %v503, 2147483648
    %v505 = vmul.f32 %v504, 1.442695
    %v506 = vpow.pop %v505
    %v507 = vadd.f32 %v506, 1.0
    %v508 = vrcp.pop %v507
    %v509 = vmul.f32 1.0, %v508
    %s510 = scalar_lea.vmem [#allocation2], 18
    %v511 = vld [vmem:[%s510] sm:$0x3]
    %v512 = vld [vmem:[%s135] sm:$0xff]
    %v513 = vld [vmem:[%s135 + $0x8] sm:$0xff]
    %v514 = vld [vmem:[%s135 + $0x10] sm:$0xff]
    %v515 = vld [vmem:[%s135 + $0x18] sm:$0xff]
    %516 = vmatprep.subr.mxu0 0.0
    %517 = vmatpush1.msra.mxu0 %v512
    %518 = vmatprep.subr.mxu0 0.0
    %519 = vmatpush1.msra.mxu0 %v513
    %520 = vmatprep.subr.mxu0 0.0
    %521 = vmatpush1.msra.mxu0 %v514
    %522 = vmatprep.subr.mxu0 0.0
    %523 = vmatpush1.msra.mxu0 %v515
    %524 = vmatprep.subr.mxu0 0.0
    %525 = vmatpush1.msra.mxu0 0.0
    %526 = vmatprep.subr.mxu0 0.0
    %527 = vmatpush1.msra.mxu0 0.0
    %528 = vmatprep.subr.mxu0 0.0
    %529 = vmatpush1.msra.mxu0 0.0
    %530 = vmatprep.subr.mxu0 0.0
    %531 = vmatpush1.msra.mxu0 0.0
    %532 = vmatprep.subr.mxu0 0.0
    %533 = vmatpush1.msra.mxu0 0.0
    %534 = vmatprep.subr.mxu0 0.0
    %535 = vmatpush1.msra.mxu0 0.0
    %536 = vmatprep.subr.mxu0 0.0
    %537 = vmatpush1.msra.mxu0 0.0
    %538 = vmatprep.subr.mxu0 0.0
    %539 = vmatpush1.msra.mxu0 0.0
    %540 = vmatprep.subr.mxu0 0.0
    %541 = vmatpush1.msra.mxu0 0.0
    %542 = vmatprep.subr.mxu0 0.0
    %543 = vmatpush1.msra.mxu0 0.0
    %544 = vmatprep.subr.mxu0 0.0
    %545 = vmatpush1.msra.mxu0 0.0
    %546 = vmatprep.subr.mxu0 0.0
    %547 = vmatpush1.msra.mxu0 0.0
    %548 = vmatprep.subr.mxu0 0.0
    %549 = vmatpush1.msra.mxu0 0.0
    %550 = vmatprep.subr.mxu0 0.0
    %551 = vmatpush1.msra.mxu0 0.0
    %552 = vmatprep.subr.mxu0 0.0
    %553 = vmatpush1.msra.mxu0 0.0
    %554 = vmatprep.subr.mxu0 0.0
    %555 = vmatpush1.msra.mxu0 0.0
    %556 = vmatprep.subr.mxu0 0.0
    %557 = vmatpush1.msra.mxu0 0.0
    %558 = vmatprep.subr.mxu0 0.0
    %559 = vmatpush1.msra.mxu0 0.0
    %560 = vmatprep.subr.mxu0 0.0
    %561 = vmatpush1.msra.mxu0 0.0
    %562 = vmatprep.subr.mxu0 0.0
    %563 = vmatpush1.msra.mxu0 0.0
    %564 = vmatprep.subr.mxu0 0.0
    %565 = vmatpush1.msra.mxu0 0.0
    %566 = vmatprep.subr.mxu0 0.0
    %567 = vmatpush1.msra.mxu0 0.0
    %568 = vmatprep.subr.mxu0 0.0
    %569 = vmatpush1.msra.mxu0 0.0
    %570 = vmatprep.subr.mxu0 0.0
    %571 = vmatpush1.msra.mxu0 0.0
    %572 = vmatprep.subr.mxu0 0.0
    %573 = vmatpush1.msra.mxu0 0.0
    %574 = vmatprep.subr.mxu0 0.0
    %575 = vmatpush1.msra.mxu0 0.0
    %576 = vmatprep.subr.mxu0 0.0
    %577 = vmatpush1.msra.mxu0 0.0
    %578 = vmatprep.subr.mxu0 0.0
    %579 = vmatpush1.msra.mxu0 0.0
    %580 = vmatprep.mubr.f32.mxu0 0.0
    %581 = vmatmul.mubr.f32.gmra.mrb[0].mxu0 %v431
    %v582 = vpop.f32.mrb[0].mxu0
    %v583 = vadd.f32 0.0, %v582
    %v584 = vpop.f32.mrb[0].mxu0
    %585 = vdwg.mxu0
    %v586 = vadd.f32 %v511, %v583
    %v587 = vxor.u32 %v586, 2147483648
    %v588 = vmul.f32 %v587, 1.442695
    %v589 = vpow.pop %v588
    %v590 = vadd.f32 %v589, 1.0
    %v591 = vrcp.pop %v590
    %v592 = vmul.f32 1.0, %v591
    %s593 = scalar_lea.vmem [#allocation2], 34
    %v594 = vld [vmem:[%s593] sm:$0x3]
    %v595 = vld [vmem:[%s219] sm:$0xff]
    %v596 = vld [vmem:[%s219 + $0x8] sm:$0xff]
    %v597 = vld [vmem:[%s219 + $0x10] sm:$0xff]
    %v598 = vld [vmem:[%s219 + $0x18] sm:$0xff]
    %599 = vmatprep.subr.mxu0 0.0
    %600 = vmatpush1.msra.mxu0 %v595
    %601 = vmatprep.subr.mxu0 0.0
    %602 = vmatpush1.msra.mxu0 %v596
    %603 = vmatprep.subr.mxu0 0.0
    %604 = vmatpush1.msra.mxu0 %v597
    %605 = vmatprep.subr.mxu0 0.0
    %606 = vmatpush1.msra.mxu0 %v598
    %607 = vmatprep.subr.mxu0 0.0
    %608 = vmatpush1.msra.mxu0 0.0
    %609 = vmatprep.subr.mxu0 0.0
    %610 = vmatpush1.msra.mxu0 0.0
    %611 = vmatprep.subr.mxu0 0.0
    %612 = vmatpush1.msra.mxu0 0.0
    %613 = vmatprep.subr.mxu0 0.0
    %614 = vmatpush1.msra.mxu0 0.0
    %615 = vmatprep.subr.mxu0 0.0
    %616 = vmatpush1.msra.mxu0 0.0
    %617 = vmatprep.subr.mxu0 0.0
    %618 = vmatpush1.msra.mxu0 0.0
    %619 = vmatprep.subr.mxu0 0.0
    %620 = vmatpush1.msra.mxu0 0.0
    %621 = vmatprep.subr.mxu0 0.0
    %622 = vmatpush1.msra.mxu0 0.0
    %623 = vmatprep.subr.mxu0 0.0
    %624 = vmatpush1.msra.mxu0 0.0
    %625 = vmatprep.subr.mxu0 0.0
    %626 = vmatpush1.msra.mxu0 0.0
    %627 = vmatprep.subr.mxu0 0.0
    %628 = vmatpush1.msra.mxu0 0.0
    %629 = vmatprep.subr.mxu0 0.0
    %630 = vmatpush1.msra.mxu0 0.0
    %631 = vmatprep.subr.mxu0 0.0
    %632 = vmatpush1.msra.mxu0 0.0
    %633 = vmatprep.subr.mxu0 0.0
    %634 = vmatpush1.msra.mxu0 0.0
    %635 = vmatprep.subr.mxu0 0.0
    %636 = vmatpush1.msra.mxu0 0.0
    %637 = vmatprep.subr.mxu0 0.0
    %638 = vmatpush1.msra.mxu0 0.0
    %639 = vmatprep.subr.mxu0 0.0
    %640 = vmatpush1.msra.mxu0 0.0
    %641 = vmatprep.subr.mxu0 0.0
    %642 = vmatpush1.msra.mxu0 0.0
    %643 = vmatprep.subr.mxu0 0.0
    %644 = vmatpush1.msra.mxu0 0.0
    %645 = vmatprep.subr.mxu0 0.0
    %646 = vmatpush1.msra.mxu0 0.0
    %647 = vmatprep.subr.mxu0 0.0
    %648 = vmatpush1.msra.mxu0 0.0
    %649 = vmatprep.subr.mxu0 0.0
    %650 = vmatpush1.msra.mxu0 0.0
    %651 = vmatprep.subr.mxu0 0.0
    %652 = vmatpush1.msra.mxu0 0.0
    %653 = vmatprep.subr.mxu0 0.0
    %654 = vmatpush1.msra.mxu0 0.0
    %655 = vmatprep.subr.mxu0 0.0
    %656 = vmatpush1.msra.mxu0 0.0
    %657 = vmatprep.subr.mxu0 0.0
    %658 = vmatpush1.msra.mxu0 0.0
    %659 = vmatprep.subr.mxu0 0.0
    %660 = vmatpush1.msra.mxu0 0.0
    %661 = vmatprep.subr.mxu0 0.0
    %662 = vmatpush1.msra.mxu0 0.0
    %663 = vmatprep.mubr.f32.mxu0 0.0
    %664 = vmatmul.mubr.f32.gmra.mrb[0].mxu0 %v431
    %v665 = vpop.f32.mrb[0].mxu0
    %v666 = vadd.f32 0.0, %v665
    %v667 = vpop.f32.mrb[0].mxu0
    %668 = vdwg.mxu0
    %v669 = vadd.f32 %v594, %v666
    %v670 = vtanh.pop %v669
    %s671 = scalar_lea.vmem [#allocation2], 50
    %v672 = vld [vmem:[%s671] sm:$0x3]
    %v673 = vld [vmem:[%s298] sm:$0xff]
    %v674 = vld [vmem:[%s298 + $0x8] sm:$0xff]
    %v675 = vld [vmem:[%s298 + $0x10] sm:$0xff]
    %v676 = vld [vmem:[%s298 + $0x18] sm:$0xff]
    %677 = vmatprep.subr.mxu0 0.0
    %678 = vmatpush1.msra.mxu0 %v673
    %679 = vmatprep.subr.mxu0 0.0
    %680 = vmatpush1.msra.mxu0 %v674
    %681 = vmatprep.subr.mxu0 0.0
    %682 = vmatpush1.msra.mxu0 %v675
    %683 = vmatprep.subr.mxu0 0.0
    %684 = vmatpush1.msra.mxu0 %v676
    %685 = vmatprep.subr.mxu0 0.0
    %686 = vmatpush1.msra.mxu0 0.0
    %687 = vmatprep.subr.mxu0 0.0
    %688 = vmatpush1.msra.mxu0 0.0
    %689 = vmatprep.subr.mxu0 0.0
    %690 = vmatpush1.msra.mxu0 0.0
    %691 = vmatprep.subr.mxu0 0.0
    %692 = vmatpush1.msra.mxu0 0.0
    %693 = vmatprep.subr.mxu0 0.0
    %694 = vmatpush1.msra.mxu0 0.0
    %695 = vmatprep.subr.mxu0 0.0
    %696 = vmatpush1.msra.mxu0 0.0
    %697 = vmatprep.subr.mxu0 0.0
    %698 = vmatpush1.msra.mxu0 0.0
    %699 = vmatprep.subr.mxu0 0.0
    %700 = vmatpush1.msra.mxu0 0.0
    %701 = vmatprep.subr.mxu0 0.0
    %702 = vmatpush1.msra.mxu0 0.0
    %703 = vmatprep.subr.mxu0 0.0
    %704 = vmatpush1.msra.mxu0 0.0
    %705 = vmatprep.subr.mxu0 0.0
    %706 = vmatpush1.msra.mxu0 0.0
    %707 = vmatprep.subr.mxu0 0.0
    %708 = vmatpush1.msra.mxu0 0.0
    %709 = vmatprep.subr.mxu0 0.0
    %710 = vmatpush1.msra.mxu0 0.0
    %711 = vmatprep.subr.mxu0 0.0
    %712 = vmatpush1.msra.mxu0 0.0
    %713 = vmatprep.subr.mxu0 0.0
    %714 = vmatpush1.msra.mxu0 0.0
    %715 = vmatprep.subr.mxu0 0.0
    %716 = vmatpush1.msra.mxu0 0.0
    %717 = vmatprep.subr.mxu0 0.0
    %718 = vmatpush1.msra.mxu0 0.0
    %719 = vmatprep.subr.mxu0 0.0
    %720 = vmatpush1.msra.mxu0 0.0
    %721 = vmatprep.subr.mxu0 0.0
    %722 = vmatpush1.msra.mxu0 0.0
    %723 = vmatprep.subr.mxu0 0.0
    %724 = vmatpush1.msra.mxu0 0.0
    %725 = vmatprep.subr.mxu0 0.0
    %726 = vmatpush1.msra.mxu0 0.0
    %727 = vmatprep.subr.mxu0 0.0
    %728 = vmatpush1.msra.mxu0 0.0
    %729 = vmatprep.subr.mxu0 0.0
    %730 = vmatpush1.msra.mxu0 0.0
    %731 = vmatprep.subr.mxu0 0.0
    %732 = vmatpush1.msra.mxu0 0.0
    %733 = vmatprep.subr.mxu0 0.0
    %734 = vmatpush1.msra.mxu0 0.0
    %735 = vmatprep.subr.mxu0 0.0
    %736 = vmatpush1.msra.mxu0 0.0
    %737 = vmatprep.subr.mxu0 0.0
    %738 = vmatpush1.msra.mxu0 0.0
    %739 = vmatprep.subr.mxu0 0.0
    %740 = vmatpush1.msra.mxu0 0.0
    %741 = vmatprep.mubr.f32.mxu0 0.0
    %742 = vmatmul.mubr.f32.gmra.mrb[0].mxu0 %v431
    %v743 = vpop.f32.mrb[0].mxu0
    %v744 = vadd.f32 0.0, %v743
    %v745 = vpop.f32.mrb[0].mxu0
    %746 = vdwg.mxu0
    %v747 = vadd.f32 %v672, %v744
    %v748 = vxor.u32 %v747, 2147483648
    %v749 = vmul.f32 %v748, 1.442695
    %v750 = vpow.pop %v749
    %v751 = vadd.f32 %v750, 1.0
    %v752 = vrcp.pop %v751
    %v753 = vmul.f32 1.0, %v752
    %v754 = vmul.f32 %v592, %v391
    %v755 = vmul.f32 %v509, %v670
    %v756 = vadd.f32 %v754, %v755
    %v757 = vtanh.pop %v756
    %v758 = vmul.f32 %v753, %v757
    %v759 = vsub.f32 %v756, %v391
    %761 = vset.pattern.permute.xlu0 0
    %762 = vperm.xlu0 %761, %v423
    %v763 = vpop.permute.xlu0 %762
    %v765 = vmul.f32 %v763, %v759
    %v766 = vadd.f32 %v391, %v765
    %v767 = vmul.f32 %v763, %v758
    %v770 = vunpack.c.l.s4 1966171168
    %v771 = vunpack.c.0.s8 %v770
    %v772 = vlaneseq
    %v773 = vshrl.u32 %v772, 7
    %v774 = vsub.s32 %v771, %v773
    %v775 = vrot.slane %v767, %v774
    %v776 = vcombine.high %v775, %v775
    %v778 = vunpack.c.l.s4 1966171168
    %v779 = vunpack.c.0.s8 %v778
    %v780 = vlaneseq
    %v781 = vshrl.u32 %v780, 7
    %v782 = vsub.s32 %v779, %v781
    %v783 = vrot.slane %v775, %v782
    %v785 = vunpack.c.l.s4 1966171168
    %v786 = vunpack.c.0.s8 %v785
    %v787 = vlaneseq
    %v788 = vshrl.u32 %v787, 7
    %v789 = vsub.s32 %v786, %v788
    %v790 = vrot.slane %v776, %v789
    %793 = vst.msk [vmem:[#allocation7 + $0x1] sm:$0x1] %vm418, %v783
    %794 = vst.msk [vmem:[#allocation7 + $0x9] sm:$0x1] %vm418, %v790
    %v795 = vsub.f32 %v758, %v421
    %v796 = vmul.f32 %v763, %v795
    %v797 = vadd.f32 %v421, %v796
    %s798 = scalar_lea.vmem %s1, 4
    %v799 = vld [vmem:[%s798] sm:$0x3]
    %s800 = scalar_lea.vmem [#allocation2], 4
    %v801 = vld [vmem:[%s800] sm:$0x3]
    %v802 = vld [vmem:[#allocation5] sm:$0xff]
    %v803 = vld [vmem:[#allocation5 + $0x8] sm:$0xff]
    %v804 = vld [vmem:[#allocation5 + $0x10] sm:$0xff]
    %v805 = vld [vmem:[#allocation5 + $0x18] sm:$0xff]
    %v807 = vsel %vm52, %v797, 0
    %809 = vmatprep.subr.mxu0 0.0
    %810 = vmatpush1.msra.mxu0 %v802
    %811 = vmatprep.subr.mxu0 0.0
    %812 = vmatpush1.msra.mxu0 %v803
    %813 = vmatprep.subr.mxu0 0.0
    %814 = vmatpush1.msra.mxu0 %v804
    %815 = vmatprep.subr.mxu0 0.0
    %816 = vmatpush1.msra.mxu0 %v805
    %817 = vmatprep.subr.mxu0 0.0
    %818 = vmatpush1.msra.mxu0 0.0
    %819 = vmatprep.subr.mxu0 0.0
    %820 = vmatpush1.msra.mxu0 0.0
    %821 = vmatprep.subr.mxu0 0.0
    %822 = vmatpush1.msra.mxu0 0.0
    %823 = vmatprep.subr.mxu0 0.0
    %824 = vmatpush1.msra.mxu0 0.0
    %825 = vmatprep.subr.mxu0 0.0
    %826 = vmatpush1.msra.mxu0 0.0
    %827 = vmatprep.subr.mxu0 0.0
    %828 = vmatpush1.msra.mxu0 0.0
    %829 = vmatprep.subr.mxu0 0.0
    %830 = vmatpush1.msra.mxu0 0.0
    %831 = vmatprep.subr.mxu0 0.0
    %832 = vmatpush1.msra.mxu0 0.0
    %833 = vmatprep.subr.mxu0 0.0
    %834 = vmatpush1.msra.mxu0 0.0
    %835 = vmatprep.subr.mxu0 0.0
    %836 = vmatpush1.msra.mxu0 0.0
    %837 = vmatprep.subr.mxu0 0.0
    %838 = vmatpush1.msra.mxu0 0.0
    %839 = vmatprep.subr.mxu0 0.0
    %840 = vmatpush1.msra.mxu0 0.0
    %841 = vmatprep.subr.mxu0 0.0
    %842 = vmatpush1.msra.mxu0 0.0
    %843 = vmatprep.subr.mxu0 0.0
    %844 = vmatpush1.msra.mxu0 0.0
    %845 = vmatprep.subr.mxu0 0.0
    %846 = vmatpush1.msra.mxu0 0.0
    %847 = vmatprep.subr.mxu0 0.0
    %848 = vmatpush1.msra.mxu0 0.0
    %849 = vmatprep.subr.mxu0 0.0
    %850 = vmatpush1.msra.mxu0 0.0
    %851 = vmatprep.subr.mxu0 0.0
    %852 = vmatpush1.msra.mxu0 0.0
    %853 = vmatprep.subr.mxu0 0.0
    %854 = vmatpush1.msra.mxu0 0.0
    %855 = vmatprep.subr.mxu0 0.0
    %856 = vmatpush1.msra.mxu0 0.0
    %857 = vmatprep.subr.mxu0 0.0
    %858 = vmatpush1.msra.mxu0 0.0
    %859 = vmatprep.subr.mxu0 0.0
    %860 = vmatpush1.msra.mxu0 0.0
    %861 = vmatprep.subr.mxu0 0.0
    %862 = vmatpush1.msra.mxu0 0.0
    %863 = vmatprep.subr.mxu0 0.0
    %864 = vmatpush1.msra.mxu0 0.0
    %865 = vmatprep.subr.mxu0 0.0
    %866 = vmatpush1.msra.mxu0 0.0
    %867 = vmatprep.subr.mxu0 0.0
    %868 = vmatpush1.msra.mxu0 0.0
    %869 = vmatprep.subr.mxu0 0.0
    %870 = vmatpush1.msra.mxu0 0.0
    %871 = vmatprep.subr.mxu0 0.0
    %872 = vmatpush1.msra.mxu0 0.0
    %873 = vmatprep.mubr.f32.mxu0 0.0
    %874 = vmatmul.mubr.f32.gmra.mrb[0].mxu0 %v807
    %v875 = vpop.f32.mrb[0].mxu0
    %v876 = vadd.f32 0.0, %v875
    %v877 = vpop.f32.mrb[0].mxu0
    %878 = vdwg.mxu0
    %v879 = vadd.f32 %v801, %v876
    %v880 = vxor.u32 %v879, 2147483648
    %v881 = vmul.f32 %v880, 1.442695
    %v882 = vpow.pop %v881
    %v883 = vadd.f32 %v882, 1.0
    %v884 = vrcp.pop %v883
    %v885 = vmul.f32 1.0, %v884
    %s886 = scalar_lea.vmem [#allocation2], 20
    %v887 = vld [vmem:[%s886] sm:$0x3]
    %v888 = vld [vmem:[%s135] sm:$0xff]
    %v889 = vld [vmem:[%s135 + $0x8] sm:$0xff]
    %v890 = vld [vmem:[%s135 + $0x10] sm:$0xff]
    %v891 = vld [vmem:[%s135 + $0x18] sm:$0xff]
    %892 = vmatprep.subr.mxu0 0.0
    %893 = vmatpush1.msra.mxu0 %v888
    %894 = vmatprep.subr.mxu0 0.0
    %895 = vmatpush1.msra.mxu0 %v889
    %896 = vmatprep.subr.mxu0 0.0
    %897 = vmatpush1.msra.mxu0 %v890
    %898 = vmatprep.subr.mxu0 0.0
    %899 = vmatpush1.msra.mxu0 %v891
    %900 = vmatprep.subr.mxu0 0.0
    %901 = vmatpush1.msra.mxu0 0.0
    %902 = vmatprep.subr.mxu0 0.0
    %903 = vmatpush1.msra.mxu0 0.0
    %904 = vmatprep.subr.mxu0 0.0
    %905 = vmatpush1.msra.mxu0 0.0
    %906 = vmatprep.subr.mxu0 0.0
    %907 = vmatpush1.msra.mxu0 0.0
    %908 = vmatprep.subr.mxu0 0.0
    %909 = vmatpush1.msra.mxu0 0.0
    %910 = vmatprep.subr.mxu0 0.0
    %911 = vmatpush1.msra.mxu0 0.0
    %912 = vmatprep.subr.mxu0 0.0
    %913 = vmatpush1.msra.mxu0 0.0
    %914 = vmatprep.subr.mxu0 0.0
    %915 = vmatpush1.msra.mxu0 0.0
    %916 = vmatprep.subr.mxu0 0.0
    %917 = vmatpush1.msra.mxu0 0.0
    %918 = vmatprep.subr.mxu0 0.0
    %919 = vmatpush1.msra.mxu0 0.0
    %920 = vmatprep.subr.mxu0 0.0
    %921 = vmatpush1.msra.mxu0 0.0
    %922 = vmatprep.subr.mxu0 0.0
    %923 = vmatpush1.msra.mxu0 0.0
    %924 = vmatprep.subr.mxu0 0.0
    %925 = vmatpush1.msra.mxu0 0.0
    %926 = vmatprep.subr.mxu0 0.0
    %927 = vmatpush1.msra.mxu0 0.0
    %928 = vmatprep.subr.mxu0 0.0
    %929 = vmatpush1.msra.mxu0 0.0
    %930 = vmatprep.subr.mxu0 0.0
    %931 = vmatpush1.msra.mxu0 0.0
    %932 = vmatprep.subr.mxu0 0.0
    %933 = vmatpush1.msra.mxu0 0.0
    %934 = vmatprep.subr.mxu0 0.0
    %935 = vmatpush1.msra.mxu0 0.0
    %936 = vmatprep.subr.mxu0 0.0
    %937 = vmatpush1.msra.mxu0 0.0
    %938 = vmatprep.subr.mxu0 0.0
    %939 = vmatpush1.msra.mxu0 0.0
    %940 = vmatprep.subr.mxu0 0.0
    %941 = vmatpush1.msra.mxu0 0.0
    %942 = vmatprep.subr.mxu0 0.0
    %943 = vmatpush1.msra.mxu0 0.0
    %944 = vmatprep.subr.mxu0 0.0
    %945 = vmatpush1.msra.mxu0 0.0
    %946 = vmatprep.subr.mxu0 0.0
    %947 = vmatpush1.msra.mxu0 0.0
    %948 = vmatprep.subr.mxu0 0.0
    %949 = vmatpush1.msra.mxu0 0.0
    %950 = vmatprep.subr.mxu0 0.0
    %951 = vmatpush1.msra.mxu0 0.0
    %952 = vmatprep.subr.mxu0 0.0
    %953 = vmatpush1.msra.mxu0 0.0
    %954 = vmatprep.subr.mxu0 0.0
    %955 = vmatpush1.msra.mxu0 0.0
    %956 = vmatprep.mubr.f32.mxu0 0.0
    %957 = vmatmul.mubr.f32.gmra.mrb[0].mxu0 %v807
    %v958 = vpop.f32.mrb[0].mxu0
    %v959 = vadd.f32 0.0, %v958
    %v960 = vpop.f32.mrb[0].mxu0
    %961 = vdwg.mxu0
    %v962 = vadd.f32 %v887, %v959
    %v963 = vxor.u32 %v962, 2147483648
    %v964 = vmul.f32 %v963, 1.442695
    %v965 = vpow.pop %v964
    %v966 = vadd.f32 %v965, 1.0
    %v967 = vrcp.pop %v966
    %v968 = vmul.f32 1.0, %v967
    %s969 = scalar_lea.vmem [#allocation2], 36
    %v970 = vld [vmem:[%s969] sm:$0x3]
    %v971 = vld [vmem:[%s219] sm:$0xff]
    %v972 = vld [vmem:[%s219 + $0x8] sm:$0xff]
    %v973 = vld [vmem:[%s219 + $0x10] sm:$0xff]
    %v974 = vld [vmem:[%s219 + $0x18] sm:$0xff]
    %975 = vmatprep.subr.mxu0 0.0
    %976 = vmatpush1.msra.mxu0 %v971
    %977 = vmatprep.subr.mxu0 0.0
    %978 = vmatpush1.msra.mxu0 %v972
    %979 = vmatprep.subr.mxu0 0.0
    %980 = vmatpush1.msra.mxu0 %v973
    %981 = vmatprep.subr.mxu0 0.0
    %982 = vmatpush1.msra.mxu0 %v974
    %983 = vmatprep.subr.mxu0 0.0
    %984 = vmatpush1.msra.mxu0 0.0
    %985 = vmatprep.subr.mxu0 0.0
    %986 = vmatpush1.msra.mxu0 0.0
    %987 = vmatprep.subr.mxu0 0.0
    %988 = vmatpush1.msra.mxu0 0.0
    %989 = vmatprep.subr.mxu0 0.0
    %990 = vmatpush1.msra.mxu0 0.0
    %991 = vmatprep.subr.mxu0 0.0
    %992 = vmatpush1.msra.mxu0 0.0
    %993 = vmatprep.subr.mxu0 0.0
    %994 = vmatpush1.msra.mxu0 0.0
    %995 = vmatprep.subr.mxu0 0.0
    %996 = vmatpush1.msra.mxu0 0.0
    %997 = vmatprep.subr.mxu0 0.0
    %998 = vmatpush1.msra.mxu0 0.0
    %999 = vmatprep.subr.mxu0 0.0
    %1000 = vmatpush1.msra.mxu0 0.0
    %1001 = vmatprep.subr.mxu0 0.0
    %1002 = vmatpush1.msra.mxu0 0.0
    %1003 = vmatprep.subr.mxu0 0.0
    %1004 = vmatpush1.msra.mxu0 0.0
    %1005 = vmatprep.subr.mxu0 0.0
    %1006 = vmatpush1.msra.mxu0 0.0
    %1007 = vmatprep.subr.mxu0 0.0
    %1008 = vmatpush1.msra.mxu0 0.0
    %1009 = vmatprep.subr.mxu0 0.0
    %1010 = vmatpush1.msra.mxu0 0.0
    %1011 = vmatprep.subr.mxu0 0.0
    %1012 = vmatpush1.msra.mxu0 0.0
    %1013 = vmatprep.subr.mxu0 0.0
    %1014 = vmatpush1.msra.mxu0 0.0
    %1015 = vmatprep.subr.mxu0 0.0
    %1016 = vmatpush1.msra.mxu0 0.0
    %1017 = vmatprep.subr.mxu0 0.0
    %1018 = vmatpush1.msra.mxu0 0.0
    %1019 = vmatprep.subr.mxu0 0.0
    %1020 = vmatpush1.msra.mxu0 0.0
    %1021 = vmatprep.subr.mxu0 0.0
    %1022 = vmatpush1.msra.mxu0 0.0
    %1023 = vmatprep.subr.mxu0 0.0
    %1024 = vmatpush1.msra.mxu0 0.0
    %1025 = vmatprep.subr.mxu0 0.0
    %1026 = vmatpush1.msra.mxu0 0.0
    %1027 = vmatprep.subr.mxu0 0.0
    %1028 = vmatpush1.msra.mxu0 0.0
    %1029 = vmatprep.subr.mxu0 0.0
    %1030 = vmatpush1.msra.mxu0 0.0
    %1031 = vmatprep.subr.mxu0 0.0
    %1032 = vmatpush1.msra.mxu0 0.0
    %1033 = vmatprep.subr.mxu0 0.0
    %1034 = vmatpush1.msra.mxu0 0.0
    %1035 = vmatprep.subr.mxu0 0.0
    %1036 = vmatpush1.msra.mxu0 0.0
    %1037 = vmatprep.subr.mxu0 0.0
    %1038 = vmatpush1.msra.mxu0 0.0
    %1039 = vmatprep.mubr.f32.mxu0 0.0
    %1040 = vmatmul.mubr.f32.gmra.mrb[0].mxu0 %v807
    %v1041 = vpop.f32.mrb[0].mxu0
    %v1042 = vadd.f32 0.0, %v1041
    %v1043 = vpop.f32.mrb[0].mxu0
    %1044 = vdwg.mxu0
    %v1045 = vadd.f32 %v970, %v1042
    %v1046 = vtanh.pop %v1045
    %s1047 = scalar_lea.vmem [#allocation2], 52
    %v1048 = vld [vmem:[%s1047] sm:$0x3]
    %v1049 = vld [vmem:[%s298] sm:$0xff]
    %v1050 = vld [vmem:[%s298 + $0x8] sm:$0xff]
    %v1051 = vld [vmem:[%s298 + $0x10] sm:$0xff]
    %v1052 = vld [vmem:[%s298 + $0x18] sm:$0xff]
    %1053 = vmatprep.subr.mxu0 0.0
    %1054 = vmatpush1.msra.mxu0 %v1049
    %1055 = vmatprep.subr.mxu0 0.0
    %1056 = vmatpush1.msra.mxu0 %v1050
    %1057 = vmatprep.subr.mxu0 0.0
    %1058 = vmatpush1.msra.mxu0 %v1051
    %1059 = vmatprep.subr.mxu0 0.0
    %1060 = vmatpush1.msra.mxu0 %v1052
    %1061 = vmatprep.subr.mxu0 0.0
    %1062 = vmatpush1.msra.mxu0 0.0
    %1063 = vmatprep.subr.mxu0 0.0
    %1064 = vmatpush1.msra.mxu0 0.0
    %1065 = vmatprep.subr.mxu0 0.0
    %1066 = vmatpush1.msra.mxu0 0.0
    %1067 = vmatprep.subr.mxu0 0.0
    %1068 = vmatpush1.msra.mxu0 0.0
    %1069 = vmatprep.subr.mxu0 0.0
    %1070 = vmatpush1.msra.mxu0 0.0
    %1071 = vmatprep.subr.mxu0 0.0
    %1072 = vmatpush1.msra.mxu0 0.0
    %1073 = vmatprep.subr.mxu0 0.0
    %1074 = vmatpush1.msra.mxu0 0.0
    %1075 = vmatprep.subr.mxu0 0.0
    %1076 = vmatpush1.msra.mxu0 0.0
    %1077 = vmatprep.subr.mxu0 0.0
    %1078 = vmatpush1.msra.mxu0 0.0
    %1079 = vmatprep.subr.mxu0 0.0
    %1080 = vmatpush1.msra.mxu0 0.0
    %1081 = vmatprep.subr.mxu0 0.0
    %1082 = vmatpush1.msra.mxu0 0.0
    %1083 = vmatprep.subr.mxu0 0.0
    %1084 = vmatpush1.msra.mxu0 0.0
    %1085 = vmatprep.subr.mxu0 0.0
    %1086 = vmatpush1.msra.mxu0 0.0
    %1087 = vmatprep.subr.mxu0 0.0
    %1088 = vmatpush1.msra.mxu0 0.0
    %1089 = vmatprep.subr.mxu0 0.0
    %1090 = vmatpush1.msra.mxu0 0.0
    %1091 = vmatprep.subr.mxu0 0.0
    %1092 = vmatpush1.msra.mxu0 0.0
    %1093 = vmatprep.subr.mxu0 0.0
    %1094 = vmatpush1.msra.mxu0 0.0
    %1095 = vmatprep.subr.mxu0 0.0
    %1096 = vmatpush1.msra.mxu0 0.0
    %1097 = vmatprep.subr.mxu0 0.0
    %1098 = vmatpush1.msra.mxu0 0.0
    %1099 = vmatprep.subr.mxu0 0.0
    %1100 = vmatpush1.msra.mxu0 0.0
    %1101 = vmatprep.subr.mxu0 0.0
    %1102 = vmatpush1.msra.mxu0 0.0
    %1103 = vmatprep.subr.mxu0 0.0
    %1104 = vmatpush1.msra.mxu0 0.0
    %1105 = vmatprep.subr.mxu0 0.0
    %1106 = vmatpush1.msra.mxu0 0.0
    %1107 = vmatprep.subr.mxu0 0.0
    %1108 = vmatpush1.msra.mxu0 0.0
    %1109 = vmatprep.subr.mxu0 0.0
    %1110 = vmatpush1.msra.mxu0 0.0
    %1111 = vmatprep.subr.mxu0 0.0
    %1112 = vmatpush1.msra.mxu0 0.0
    %1113 = vmatprep.subr.mxu0 0.0
    %1114 = vmatpush1.msra.mxu0 0.0
    %1115 = vmatprep.subr.mxu0 0.0
    %1116 = vmatpush1.msra.mxu0 0.0
    %1117 = vmatprep.mubr.f32.mxu0 0.0
    %1118 = vmatmul.mubr.f32.gmra.mrb[0].mxu0 %v807
    %v1119 = vpop.f32.mrb[0].mxu0
    %v1120 = vadd.f32 0.0, %v1119
    %v1121 = vpop.f32.mrb[0].mxu0
    %1122 = vdwg.mxu0
    %v1123 = vadd.f32 %v1048, %v1120
    %v1124 = vxor.u32 %v1123, 2147483648
    %v1125 = vmul.f32 %v1124, 1.442695
    %v1126 = vpow.pop %v1125
    %v1127 = vadd.f32 %v1126, 1.0
    %v1128 = vrcp.pop %v1127
    %v1129 = vmul.f32 1.0, %v1128
    %v1130 = vmul.f32 %v968, %v766
    %v1131 = vmul.f32 %v885, %v1046
    %v1132 = vadd.f32 %v1130, %v1131
    %v1133 = vtanh.pop %v1132
    %v1134 = vmul.f32 %v1129, %v1133
    %v1135 = vsub.f32 %v1132, %v766
    %1137 = vset.pattern.permute.xlu0 0
    %1138 = vperm.xlu0 %1137, %v799
    %v1139 = vpop.permute.xlu0 %1138
    %v1141 = vmul.f32 %v1139, %v1135
    %v1142 = vadd.f32 %v766, %v1141
    %v1143 = vmul.f32 %v1139, %v1134
    %v1146 = vunpack.c.l.s4 1966171168
    %v1147 = vunpack.c.0.s8 %v1146
    %v1148 = vlaneseq
    %v1149 = vshrl.u32 %v1148, 7
    %v1150 = vsub.s32 %v1147, %v1149
    %v1151 = vrot.slane %v1143, %v1150
    %v1152 = vcombine.high %v1151, %v1151
    %v1154 = vunpack.c.l.s4 1966171168
    %v1155 = vunpack.c.0.s8 %v1154
    %v1156 = vlaneseq
    %v1157 = vshrl.u32 %v1156, 7
    %v1158 = vsub.s32 %v1155, %v1157
    %v1159 = vrot.slane %v1151, %v1158
    %v1161 = vunpack.c.l.s4 1966171168
    %v1162 = vunpack.c.0.s8 %v1161
    %v1163 = vlaneseq
    %v1164 = vshrl.u32 %v1163, 7
    %v1165 = vsub.s32 %v1162, %v1164
    %v1166 = vrot.slane %v1152, %v1165
    %1169 = vst.msk [vmem:[#allocation7 + $0x2] sm:$0x1] %vm418, %v1159
    %1170 = vst.msk [vmem:[#allocation7 + $0xa] sm:$0x1] %vm418, %v1166
    %v1171 = vsub.f32 %v1134, %v797
    %v1172 = vmul.f32 %v1139, %v1171
    %v1173 = vadd.f32 %v797, %v1172
    %s1174 = scalar_lea.vmem %s1, 6
    %v1175 = vld [vmem:[%s1174] sm:$0x3]
    %s1176 = scalar_lea.vmem [#allocation2], 6
    %v1177 = vld [vmem:[%s1176] sm:$0x3]
    %v1178 = vld [vmem:[#allocation5] sm:$0xff]
    %v1179 = vld [vmem:[#allocation5 + $0x8] sm:$0xff]
    %v1180 = vld [vmem:[#allocation5 + $0x10] sm:$0xff]
    %v1181 = vld [vmem:[#allocation5 + $0x18] sm:$0xff]
    %v1183 = vsel %vm52, %v1173, 0
    %1185 = vmatprep.subr.mxu0 0.0
    %1186 = vmatpush1.msra.mxu0 %v1178
    %1187 = vmatprep.subr.mxu0 0.0
    %1188 = vmatpush1.msra.mxu0 %v1179
    %1189 = vmatprep.subr.mxu0 0.0
    %1190 = vmatpush1.msra.mxu0 %v1180
    %1191 = vmatprep.subr.mxu0 0.0
    %1192 = vmatpush1.msra.mxu0 %v1181
    %1193 = vmatprep.subr.mxu0 0.0
    %1194 = vmatpush1.msra.mxu0 0.0
    %1195 = vmatprep.subr.mxu0 0.0
    %1196 = vmatpush1.msra.mxu0 0.0
    %1197 = vmatprep.subr.mxu0 0.0
    %1198 = vmatpush1.msra.mxu0 0.0
    %1199 = vmatprep.subr.mxu0 0.0
    %1200 = vmatpush1.msra.mxu0 0.0
    %1201 = vmatprep.subr.mxu0 0.0
    %1202 = vmatpush1.msra.mxu0 0.0
    %1203 = vmatprep.subr.mxu0 0.0
    %1204 = vmatpush1.msra.mxu0 0.0
    %1205 = vmatprep.subr.mxu0 0.0
    %1206 = vmatpush1.msra.mxu0 0.0
    %1207 = vmatprep.subr.mxu0 0.0
    %1208 = vmatpush1.msra.mxu0 0.0
    %1209 = vmatprep.subr.mxu0 0.0
    %1210 = vmatpush1.msra.mxu0 0.0
    %1211 = vmatprep.subr.mxu0 0.0
    %1212 = vmatpush1.msra.mxu0 0.0
    %1213 = vmatprep.subr.mxu0 0.0
    %1214 = vmatpush1.msra.mxu0 0.0
    %1215 = vmatprep.subr.mxu0 0.0
    %1216 = vmatpush1.msra.mxu0 0.0
    %1217 = vmatprep.subr.mxu0 0.0
    %1218 = vmatpush1.msra.mxu0 0.0
    %1219 = vmatprep.subr.mxu0 0.0
    %1220 = vmatpush1.msra.mxu0 0.0
    %1221 = vmatprep.subr.mxu0 0.0
    %1222 = vmatpush1.msra.mxu0 0.0
    %1223 = vmatprep.subr.mxu0 0.0
    %1224 = vmatpush1.msra.mxu0 0.0
    %1225 = vmatprep.subr.mxu0 0.0
    %1226 = vmatpush1.msra.mxu0 0.0
    %1227 = vmatprep.subr.mxu0 0.0
    %1228 = vmatpush1.msra.mxu0 0.0
    %1229 = vmatprep.subr.mxu0 0.0
    %1230 = vmatpush1.msra.mxu0 0.0
    %1231 = vmatprep.subr.mxu0 0.0
    %1232 = vmatpush1.msra.mxu0 0.0
    %1233 = vmatprep.subr.mxu0 0.0
    %1234 = vmatpush1.msra.mxu0 0.0
    %1235 = vmatprep.subr.mxu0 0.0
    %1236 = vmatpush1.msra.mxu0 0.0
    %1237 = vmatprep.subr.mxu0 0.0
    %1238 = vmatpush1.msra.mxu0 0.0
    %1239 = vmatprep.subr.mxu0 0.0
    %1240 = vmatpush1.msra.mxu0 0.0
    %1241 = vmatprep.subr.mxu0 0.0
    %1242 = vmatpush1.msra.mxu0 0.0
    %1243 = vmatprep.subr.mxu0 0.0
    %1244 = vmatpush1.msra.mxu0 0.0
    %1245 = vmatprep.subr.mxu0 0.0
    %1246 = vmatpush1.msra.mxu0 0.0
    %1247 = vmatprep.subr.mxu0 0.0
    %1248 = vmatpush1.msra.mxu0 0.0
    %1249 = vmatprep.mubr.f32.mxu0 0.0
    %1250 = vmatmul.mubr.f32.gmra.mrb[0].mxu0 %v1183
    %v1251 = vpop.f32.mrb[0].mxu0
    %v1252 = vadd.f32 0.0, %v1251
    %v1253 = vpop.f32.mrb[0].mxu0
    %1254 = vdwg.mxu0
    %v1255 = vadd.f32 %v1177, %v1252
    %v1256 = vxor.u32 %v1255, 2147483648
    %v1257 = vmul.f32 %v1256, 1.442695
    %v1258 = vpow.pop %v1257
    %v1259 = vadd.f32 %v1258, 1.0
    %v1260 = vrcp.pop %v1259
    %v1261 = vmul.f32 1.0, %v1260
    %s1262 = scalar_lea.vmem [#allocation2], 22
    %v1263 = vld [vmem:[%s1262] sm:$0x3]
    %v1264 = vld [vmem:[%s135] sm:$0xff]
    %v1265 = vld [vmem:[%s135 + $0x8] sm:$0xff]
    %v1266 = vld [vmem:[%s135 + $0x10] sm:$0xff]
    %v1267 = vld [vmem:[%s135 + $0x18] sm:$0xff]
    %1268 = vmatprep.subr.mxu0 0.0
    %1269 = vmatpush1.msra.mxu0 %v1264
    %1270 = vmatprep.subr.mxu0 0.0
    %1271 = vmatpush1.msra.mxu0 %v1265
    %1272 = vmatprep.subr.mxu0 0.0
    %1273 = vmatpush1.msra.mxu0 %v1266
    %1274 = vmatprep.subr.mxu0 0.0
    %1275 = vmatpush1.msra.mxu0 %v1267
    %1276 = vmatprep.subr.mxu0 0.0
    %1277 = vmatpush1.msra.mxu0 0.0
    %1278 = vmatprep.subr.mxu0 0.0
    %1279 = vmatpush1.msra.mxu0 0.0
    %1280 = vmatprep.subr.mxu0 0.0
    %1281 = vmatpush1.msra.mxu0 0.0
    %1282 = vmatprep.subr.mxu0 0.0
    %1283 = vmatpush1.msra.mxu0 0.0
    %1284 = vmatprep.subr.mxu0 0.0
    %1285 = vmatpush1.msra.mxu0 0.0
    %1286 = vmatprep.subr.mxu0 0.0
    %1287 = vmatpush1.msra.mxu0 0.0
    %1288 = vmatprep.subr.mxu0 0.0
    %1289 = vmatpush1.msra.mxu0 0.0
    %1290 = vmatprep.subr.mxu0 0.0
    %1291 = vmatpush1.msra.mxu0 0.0
    %1292 = vmatprep.subr.mxu0 0.0
    %1293 = vmatpush1.msra.mxu0 0.0
    %1294 = vmatprep.subr.mxu0 0.0
    %1295 = vmatpush1.msra.mxu0 0.0
    %1296 = vmatprep.subr.mxu0 0.0
    %1297 = vmatpush1.msra.mxu0 0.0
    %1298 = vmatprep.subr.mxu0 0.0
    %1299 = vmatpush1.msra.mxu0 0.0
    %1300 = vmatprep.subr.mxu0 0.0
    %1301 = vmatpush1.msra.mxu0 0.0
    %1302 = vmatprep.subr.mxu0 0.0
    %1303 = vmatpush1.msra.mxu0 0.0
    %1304 = vmatprep.subr.mxu0 0.0
    %1305 = vmatpush1.msra.mxu0 0.0
    %1306 = vmatprep.subr.mxu0 0.0
    %1307 = vmatpush1.msra.mxu0 0.0
    %1308 = vmatprep.subr.mxu0 0.0
    %1309 = vmatpush1.msra.mxu0 0.0
    %1310 = vmatprep.subr.mxu0 0.0
    %1311 = vmatpush1.msra.mxu0 0.0
    %1312 = vmatprep.subr.mxu0 0.0
    %1313 = vmatpush1.msra.mxu0 0.0
    %1314 = vmatprep.subr.mxu0 0.0
    %1315 = vmatpush1.msra.mxu0 0.0
    %1316 = vmatprep.subr.mxu0 0.0
    %1317 = vmatpush1.msra.mxu0 0.0
    %1318 = vmatprep.subr.mxu0 0.0
    %1319 = vmatpush1.msra.mxu0 0.0
    %1320 = vmatprep.subr.mxu0 0.0
    %1321 = vmatpush1.msra.mxu0 0.0
    %1322 = vmatprep.subr.mxu0 0.0
    %1323 = vmatpush1.msra.mxu0 0.0
    %1324 = vmatprep.subr.mxu0 0.0
    %1325 = vmatpush1.msra.mxu0 0.0
    %1326 = vmatprep.subr.mxu0 0.0
    %1327 = vmatpush1.msra.mxu0 0.0
    %1328 = vmatprep.subr.mxu0 0.0
    %1329 = vmatpush1.msra.mxu0 0.0
    %1330 = vmatprep.subr.mxu0 0.0
    %1331 = vmatpush1.msra.mxu0 0.0
    %1332 = vmatprep.mubr.f32.mxu0 0.0
    %1333 = vmatmul.mubr.f32.gmra.mrb[0].mxu0 %v1183
    %v1334 = vpop.f32.mrb[0].mxu0
    %v1335 = vadd.f32 0.0, %v1334
    %v1336 = vpop.f32.mrb[0].mxu0
    %1337 = vdwg.mxu0
    %v1338 = vadd.f32 %v1263, %v1335
    %v1339 = vxor.u32 %v1338, 2147483648
    %v1340 = vmul.f32 %v1339, 1.442695
    %v1341 = vpow.pop %v1340
    %v1342 = vadd.f32 %v1341, 1.0
    %v1343 = vrcp.pop %v1342
    %v1344 = vmul.f32 1.0, %v1343
    %s1345 = scalar_lea.vmem [#allocation2], 38
    %v1346 = vld [vmem:[%s1345] sm:$0x3]
    %v1347 = vld [vmem:[%s219] sm:$0xff]
    %v1348 = vld [vmem:[%s219 + $0x8] sm:$0xff]
    %v1349 = vld [vmem:[%s219 + $0x10] sm:$0xff]
    %v1350 = vld [vmem:[%s219 + $0x18] sm:$0xff]
    %1351 = vmatprep.subr.mxu0 0.0
    %1352 = vmatpush1.msra.mxu0 %v1347
    %1353 = vmatprep.subr.mxu0 0.0
    %1354 = vmatpush1.msra.mxu0 %v1348
    %1355 = vmatprep.subr.mxu0 0.0
    %1356 = vmatpush1.msra.mxu0 %v1349
    %1357 = vmatprep.subr.mxu0 0.0
    %1358 = vmatpush1.msra.mxu0 %v1350
    %1359 = vmatprep.subr.mxu0 0.0
    %1360 = vmatpush1.msra.mxu0 0.0
    %1361 = vmatprep.subr.mxu0 0.0
    %1362 = vmatpush1.msra.mxu0 0.0
    %1363 = vmatprep.subr.mxu0 0.0
    %1364 = vmatpush1.msra.mxu0 0.0
    %1365 = vmatprep.subr.mxu0 0.0
    %1366 = vmatpush1.msra.mxu0 0.0
    %1367 = vmatprep.subr.mxu0 0.0
    %1368 = vmatpush1.msra.mxu0 0.0
    %1369 = vmatprep.subr.mxu0 0.0
    %1370 = vmatpush1.msra.mxu0 0.0
    %1371 = vmatprep.subr.mxu0 0.0
    %1372 = vmatpush1.msra.mxu0 0.0
    %1373 = vmatprep.subr.mxu0 0.0
    %1374 = vmatpush1.msra.mxu0 0.0
    %1375 = vmatprep.subr.mxu0 0.0
    %1376 = vmatpush1.msra.mxu0 0.0
    %1377 = vmatprep.subr.mxu0 0.0
    %1378 = vmatpush1.msra.mxu0 0.0
    %1379 = vmatprep.subr.mxu0 0.0
    %1380 = vmatpush1.msra.mxu0 0.0
    %1381 = vmatprep.subr.mxu0 0.0
    %1382 = vmatpush1.msra.mxu0 0.0
    %1383 = vmatprep.subr.mxu0 0.0
    %1384 = vmatpush1.msra.mxu0 0.0
    %1385 = vmatprep.subr.mxu0 0.0
    %1386 = vmatpush1.msra.mxu0 0.0
    %1387 = vmatprep.subr.mxu0 0.0
    %1388 = vmatpush1.msra.mxu0 0.0
    %1389 = vmatprep.subr.mxu0 0.0
    %1390 = vmatpush1.msra.mxu0 0.0
    %1391 = vmatprep.subr.mxu0 0.0
    %1392 = vmatpush1.msra.mxu0 0.0
    %1393 = vmatprep.subr.mxu0 0.0
    %1394 = vmatpush1.msra.mxu0 0.0
    %1395 = vmatprep.subr.mxu0 0.0
    %1396 = vmatpush1.msra.mxu0 0.0
    %1397 = vmatprep.subr.mxu0 0.0
    %1398 = vmatpush1.msra.mxu0 0.0
    %1399 = vmatprep.subr.mxu0 0.0
    %1400 = vmatpush1.msra.mxu0 0.0
    %1401 = vmatprep.subr.mxu0 0.0
    %1402 = vmatpush1.msra.mxu0 0.0
    %1403 = vmatprep.subr.mxu0 0.0
    %1404 = vmatpush1.msra.mxu0 0.0
    %1405 = vmatprep.subr.mxu0 0.0
    %1406 = vmatpush1.msra.mxu0 0.0
    %1407 = vmatprep.subr.mxu0 0.0
    %1408 = vmatpush1.msra.mxu0 0.0
    %1409 = vmatprep.subr.mxu0 0.0
    %1410 = vmatpush1.msra.mxu0 0.0
    %1411 = vmatprep.subr.mxu0 0.0
    %1412 = vmatpush1.msra.mxu0 0.0
    %1413 = vmatprep.subr.mxu0 0.0
    %1414 = vmatpush1.msra.mxu0 0.0
    %1415 = vmatprep.mubr.f32.mxu0 0.0
    %1416 = vmatmul.mubr.f32.gmra.mrb[0].mxu0 %v1183
    %v1417 = vpop.f32.mrb[0].mxu0
    %v1418 = vadd.f32 0.0, %v1417
    %v1419 = vpop.f32.mrb[0].mxu0
    %1420 = vdwg.mxu0
    %v1421 = vadd.f32 %v1346, %v1418
    %v1422 = vtanh.pop %v1421
    %s1423 = scalar_lea.vmem [#allocation2], 54
    %v1424 = vld [vmem:[%s1423] sm:$0x3]
    %v1425 = vld [vmem:[%s298] sm:$0xff]
    %v1426 = vld [vmem:[%s298 + $0x8] sm:$0xff]
    %v1427 = vld [vmem:[%s298 + $0x10] sm:$0xff]
    %v1428 = vld [vmem:[%s298 + $0x18] sm:$0xff]
    %1429 = vmatprep.subr.mxu0 0.0
    %1430 = vmatpush1.msra.mxu0 %v1425
    %1431 = vmatprep.subr.mxu0 0.0
    %1432 = vmatpush1.msra.mxu0 %v1426
    %1433 = vmatprep.subr.mxu0 0.0
    %1434 = vmatpush1.msra.mxu0 %v1427
    %1435 = vmatprep.subr.mxu0 0.0
    %1436 = vmatpush1.msra.mxu0 %v1428
    %1437 = vmatprep.subr.mxu0 0.0
    %1438 = vmatpush1.msra.mxu0 0.0
    %1439 = vmatprep.subr.mxu0 0.0
    %1440 = vmatpush1.msra.mxu0 0.0
    %1441 = vmatprep.subr.mxu0 0.0
    %1442 = vmatpush1.msra.mxu0 0.0
    %1443 = vmatprep.subr.mxu0 0.0
    %1444 = vmatpush1.msra.mxu0 0.0
    %1445 = vmatprep.subr.mxu0 0.0
    %1446 = vmatpush1.msra.mxu0 0.0
    %1447 = vmatprep.subr.mxu0 0.0
    %1448 = vmatpush1.msra.mxu0 0.0
    %1449 = vmatprep.subr.mxu0 0.0
    %1450 = vmatpush1.msra.mxu0 0.0
    %1451 = vmatprep.subr.mxu0 0.0
    %1452 = vmatpush1.msra.mxu0 0.0
    %1453 = vmatprep.subr.mxu0 0.0
    %1454 = vmatpush1.msra.mxu0 0.0
    %1455 = vmatprep.subr.mxu0 0.0
    %1456 = vmatpush1.msra.mxu0 0.0
    %1457 = vmatprep.subr.mxu0 0.0
    %1458 = vmatpush1.msra.mxu0 0.0
    %1459 = vmatprep.subr.mxu0 0.0
    %1460 = vmatpush1.msra.mxu0 0.0
    %1461 = vmatprep.subr.mxu0 0.0
    %1462 = vmatpush1.msra.mxu0 0.0
    %1463 = vmatprep.subr.mxu0 0.0
    %1464 = vmatpush1.msra.mxu0 0.0
    %1465 = vmatprep.subr.mxu0 0.0
    %1466 = vmatpush1.msra.mxu0 0.0
    %1467 = vmatprep.subr.mxu0 0.0
    %1468 = vmatpush1.msra.mxu0 0.0
    %1469 = vmatprep.subr.mxu0 0.0
    %1470 = vmatpush1.msra.mxu0 0.0
    %1471 = vmatprep.subr.mxu0 0.0
    %1472 = vmatpush1.msra.mxu0 0.0
    %1473 = vmatprep.subr.mxu0 0.0
    %1474 = vmatpush1.msra.mxu0 0.0
    %1475 = vmatprep.subr.mxu0 0.0
    %1476 = vmatpush1.msra.mxu0 0.0
    %1477 = vmatprep.subr.mxu0 0.0
    %1478 = vmatpush1.msra.mxu0 0.0
    %1479 = vmatprep.subr.mxu0 0.0
    %1480 = vmatpush1.msra.mxu0 0.0
    %1481 = vmatprep.subr.mxu0 0.0
    %1482 = vmatpush1.msra.mxu0 0.0
    %1483 = vmatprep.subr.mxu0 0.0
    %1484 = vmatpush1.msra.mxu0 0.0
    %1485 = vmatprep.subr.mxu0 0.0
    %1486 = vmatpush1.msra.mxu0 0.0
    %1487 = vmatprep.subr.mxu0 0.0
    %1488 = vmatpush1.msra.mxu0 0.0
    %1489 = vmatprep.subr.mxu0 0.0
    %1490 = vmatpush1.msra.mxu0 0.0
    %1491 = vmatprep.subr.mxu0 0.0
    %1492 = vmatpush1.msra.mxu0 0.0
    %1493 = vmatprep.mubr.f32.mxu0 0.0
    %1494 = vmatmul.mubr.f32.gmra.mrb[0].mxu0 %v1183
    %v1495 = vpop.f32.mrb[0].mxu0
    %v1496 = vadd.f32 0.0, %v1495
    %v1497 = vpop.f32.mrb[0].mxu0
    %1498 = vdwg.mxu0
    %v1499 = vadd.f32 %v1424, %v1496
    %v1500 = vxor.u32 %v1499, 2147483648
    %v1501 = vmul.f32 %v1500, 1.442695
    %v1502 = vpow.pop %v1501
    %v1503 = vadd.f32 %v1502, 1.0
    %v1504 = vrcp.pop %v1503
    %v1505 = vmul.f32 1.0, %v1504
    %v1506 = vmul.f32 %v1344, %v1142
    %v1507 = vmul.f32 %v1261, %v1422
    %v1508 = vadd.f32 %v1506, %v1507
    %v1509 = vtanh.pop %v1508
    %v1510 = vmul.f32 %v1505, %v1509
    %v1511 = vsub.f32 %v1508, %v1142
    %1513 = vset.pattern.permute.xlu0 0
    %1514 = vperm.xlu0 %1513, %v1175
    %v1515 = vpop.permute.xlu0 %1514
    %v1517 = vmul.f32 %v1515, %v1511
    %v1518 = vadd.f32 %v1142, %v1517
    %v1519 = vmul.f32 %v1515, %v1510
    %v1522 = vunpack.c.l.s4 1966171168
    %v1523 = vunpack.c.0.s8 %v1522
    %v1524 = vlaneseq
    %v1525 = vshrl.u32 %v1524, 7
    %v1526 = vsub.s32 %v1523, %v1525
    %v1527 = vrot.slane %v1519, %v1526
    %v1528 = vcombine.high %v1527, %v1527
    %v1530 = vunpack.c.l.s4 1966171168
    %v1531 = vunpack.c.0.s8 %v1530
    %v1532 = vlaneseq
    %v1533 = vshrl.u32 %v1532, 7
    %v1534 = vsub.s32 %v1531, %v1533
    %v1535 = vrot.slane %v1527, %v1534
    %v1537 = vunpack.c.l.s4 1966171168
    %v1538 = vunpack.c.0.s8 %v1537
    %v1539 = vlaneseq
    %v1540 = vshrl.u32 %v1539, 7
    %v1541 = vsub.s32 %v1538, %v1540
    %v1542 = vrot.slane %v1528, %v1541
    %1545 = vst.msk [vmem:[#allocation7 + $0x3] sm:$0x1] %vm418, %v1535
    %1546 = vst.msk [vmem:[#allocation7 + $0xb] sm:$0x1] %vm418, %v1542
    %v1547 = vsub.f32 %v1510, %v1173
    %v1548 = vmul.f32 %v1515, %v1547
    %v1549 = vadd.f32 %v1173, %v1548
    %s1550 = scalar_lea.vmem %s1, 8
    %v1551 = vld [vmem:[%s1550] sm:$0x3]
    %s1552 = scalar_lea.vmem [#allocation2], 8
    %v1553 = vld [vmem:[%s1552] sm:$0x3]
    %v1554 = vld [vmem:[#allocation5] sm:$0xff]
    %v1555 = vld [vmem:[#allocation5 + $0x8] sm:$0xff]
    %v1556 = vld [vmem:[#allocation5 + $0x10] sm:$0xff]
    %v1557 = vld [vmem:[#allocation5 + $0x18] sm:$0xff]
    %v1559 = vsel %vm52, %v1549, 0
    %1561 = vmatprep.subr.mxu0 0.0
    %1562 = vmatpush1.msra.mxu0 %v1554
    %1563 = vmatprep.subr.mxu0 0.0
    %1564 = vmatpush1.msra.mxu0 %v1555
    %1565 = vmatprep.subr.mxu0 0.0
    %1566 = vmatpush1.msra.mxu0 %v1556
    %1567 = vmatprep.subr.mxu0 0.0
    %1568 = vmatpush1.msra.mxu0 %v1557
    %1569 = vmatprep.subr.mxu0 0.0
    %1570 = vmatpush1.msra.mxu0 0.0
    %1571 = vmatprep.subr.mxu0 0.0
    %1572 = vmatpush1.msra.mxu0 0.0
    %1573 = vmatprep.subr.mxu0 0.0
    %1574 = vmatpush1.msra.mxu0 0.0
    %1575 = vmatprep.subr.mxu0 0.0
    %1576 = vmatpush1.msra.mxu0 0.0
    %1577 = vmatprep.subr.mxu0 0.0
    %1578 = vmatpush1.msra.mxu0 0.0
    %1579 = vmatprep.subr.mxu0 0.0
    %1580 = vmatpush1.msra.mxu0 0.0
    %1581 = vmatprep.subr.mxu0 0.0
    %1582 = vmatpush1.msra.mxu0 0.0
    %1583 = vmatprep.subr.mxu0 0.0
    %1584 = vmatpush1.msra.mxu0 0.0
    %1585 = vmatprep.subr.mxu0 0.0
    %1586 = vmatpush1.msra.mxu0 0.0
    %1587 = vmatprep.subr.mxu0 0.0
    %1588 = vmatpush1.msra.mxu0 0.0
    %1589 = vmatprep.subr.mxu0 0.0
    %1590 = vmatpush1.msra.mxu0 0.0
    %1591 = vmatprep.subr.mxu0 0.0
    %1592 = vmatpush1.msra.mxu0 0.0
    %1593 = vmatprep.subr.mxu0 0.0
    %1594 = vmatpush1.msra.mxu0 0.0
    %1595 = vmatprep.subr.mxu0 0.0
    %1596 = vmatpush1.msra.mxu0 0.0
    %1597 = vmatprep.subr.mxu0 0.0
    %1598 = vmatpush1.msra.mxu0 0.0
    %1599 = vmatprep.subr.mxu0 0.0
    %1600 = vmatpush1.msra.mxu0 0.0
    %1601 = vmatprep.subr.mxu0 0.0
    %1602 = vmatpush1.msra.mxu0 0.0
    %1603 = vmatprep.subr.mxu0 0.0
    %1604 = vmatpush1.msra.mxu0 0.0
    %1605 = vmatprep.subr.mxu0 0.0
    %1606 = vmatpush1.msra.mxu0 0.0
    %1607 = vmatprep.subr.mxu0 0.0
    %1608 = vmatpush1.msra.mxu0 0.0
    %1609 = vmatprep.subr.mxu0 0.0
    %1610 = vmatpush1.msra.mxu0 0.0
    %1611 = vmatprep.subr.mxu0 0.0
    %1612 = vmatpush1.msra.mxu0 0.0
    %1613 = vmatprep.subr.mxu0 0.0
    %1614 = vmatpush1.msra.mxu0 0.0
    %1615 = vmatprep.subr.mxu0 0.0
    %1616 = vmatpush1.msra.mxu0 0.0
    %1617 = vmatprep.subr.mxu0 0.0
    %1618 = vmatpush1.msra.mxu0 0.0
    %1619 = vmatprep.subr.mxu0 0.0
    %1620 = vmatpush1.msra.mxu0 0.0
    %1621 = vmatprep.subr.mxu0 0.0
    %1622 = vmatpush1.msra.mxu0 0.0
    %1623 = vmatprep.subr.mxu0 0.0
    %1624 = vmatpush1.msra.mxu0 0.0
    %1625 = vmatprep.mubr.f32.mxu0 0.0
    %1626 = vmatmul.mubr.f32.gmra.mrb[0].mxu0 %v1559
    %v1627 = vpop.f32.mrb[0].mxu0
    %v1628 = vadd.f32 0.0, %v1627
    %v1629 = vpop.f32.mrb[0].mxu0
    %1630 = vdwg.mxu0
    %v1631 = vadd.f32 %v1553, %v1628
    %v1632 = vxor.u32 %v1631, 2147483648
    %v1633 = vmul.f32 %v1632, 1.442695
    %v1634 = vpow.pop %v1633
    %v1635 = vadd.f32 %v1634, 1.0
    %v1636 = vrcp.pop %v1635
    %v1637 = vmul.f32 1.0, %v1636
    %s1638 = scalar_lea.vmem [#allocation2], 24
    %v1639 = vld [vmem:[%s1638] sm:$0x3]
    %v1640 = vld [vmem:[%s135] sm:$0xff]
    %v1641 = vld [vmem:[%s135 + $0x8] sm:$0xff]
    %v1642 = vld [vmem:[%s135 + $0x10] sm:$0xff]
    %v1643 = vld [vmem:[%s135 + $0x18] sm:$0xff]
    %1644 = vmatprep.subr.mxu0 0.0
    %1645 = vmatpush1.msra.mxu0 %v1640
    %1646 = vmatprep.subr.mxu0 0.0
    %1647 = vmatpush1.msra.mxu0 %v1641
    %1648 = vmatprep.subr.mxu0 0.0
    %1649 = vmatpush1.msra.mxu0 %v1642
    %1650 = vmatprep.subr.mxu0 0.0
    %1651 = vmatpush1.msra.mxu0 %v1643
    %1652 = vmatprep.subr.mxu0 0.0
    %1653 = vmatpush1.msra.mxu0 0.0
    %1654 = vmatprep.subr.mxu0 0.0
    %1655 = vmatpush1.msra.mxu0 0.0
    %1656 = vmatprep.subr.mxu0 0.0
    %1657 = vmatpush1.msra.mxu0 0.0
    %1658 = vmatprep.subr.mxu0 0.0
    %1659 = vmatpush1.msra.mxu0 0.0
    %1660 = vmatprep.subr.mxu0 0.0
    %1661 = vmatpush1.msra.mxu0 0.0
    %1662 = vmatprep.subr.mxu0 0.0
    %1663 = vmatpush1.msra.mxu0 0.0
    %1664 = vmatprep.subr.mxu0 0.0
    %1665 = vmatpush1.msra.mxu0 0.0
    %1666 = vmatprep.subr.mxu0 0.0
    %1667 = vmatpush1.msra.mxu0 0.0
    %1668 = vmatprep.subr.mxu0 0.0
    %1669 = vmatpush1.msra.mxu0 0.0
    %1670 = vmatprep.subr.mxu0 0.0
    %1671 = vmatpush1.msra.mxu0 0.0
    %1672 = vmatprep.subr.mxu0 0.0
    %1673 = vmatpush1.msra.mxu0 0.0
    %1674 = vmatprep.subr.mxu0 0.0
    %1675 = vmatpush1.msra.mxu0 0.0
    %1676 = vmatprep.subr.mxu0 0.0
    %1677 = vmatpush1.msra.mxu0 0.0
    %1678 = vmatprep.subr.mxu0 0.0
    %1679 = vmatpush1.msra.mxu0 0.0
    %1680 = vmatprep.subr.mxu0 0.0
    %1681 = vmatpush1.msra.mxu0 0.0
    %1682 = vmatprep.subr.mxu0 0.0
    %1683 = vmatpush1.msra.mxu0 0.0
    %1684 = vmatprep.subr.mxu0 0.0
    %1685 = vmatpush1.msra.mxu0 0.0
    %1686 = vmatprep.subr.mxu0 0.0
    %1687 = vmatpush1.msra.mxu0 0.0
    %1688 = vmatprep.subr.mxu0 0.0
    %1689 = vmatpush1.msra.mxu0 0.0
    %1690 = vmatprep.subr.mxu0 0.0
    %1691 = vmatpush1.msra.mxu0 0.0
    %1692 = vmatprep.subr.mxu0 0.0
    %1693 = vmatpush1.msra.mxu0 0.0
    %1694 = vmatprep.subr.mxu0 0.0
    %1695 = vmatpush1.msra.mxu0 0.0
    %1696 = vmatprep.subr.mxu0 0.0
    %1697 = vmatpush1.msra.mxu0 0.0
    %1698 = vmatprep.subr.mxu0 0.0
    %1699 = vmatpush1.msra.mxu0 0.0
    %1700 = vmatprep.subr.mxu0 0.0
    %1701 = vmatpush1.msra.mxu0 0.0
    %1702 = vmatprep.subr.mxu0 0.0
    %1703 = vmatpush1.msra.mxu0 0.0
    %1704 = vmatprep.subr.mxu0 0.0
    %1705 = vmatpush1.msra.mxu0 0.0
    %1706 = vmatprep.subr.mxu0 0.0
    %1707 = vmatpush1.msra.mxu0 0.0
    %1708 = vmatprep.mubr.f32.mxu0 0.0
    %1709 = vmatmul.mubr.f32.gmra.mrb[0].mxu0 %v1559
    %v1710 = vpop.f32.mrb[0].mxu0
    %v1711 = vadd.f32 0.0, %v1710
    %v1712 = vpop.f32.mrb[0].mxu0
    %1713 = vdwg.mxu0
    %v1714 = vadd.f32 %v1639, %v1711
    %v1715 = vxor.u32 %v1714, 2147483648
    %v1716 = vmul.f32 %v1715, 1.442695
    %v1717 = vpow.pop %v1716
    %v1718 = vadd.f32 %v1717, 1.0
    %v1719 = vrcp.pop %v1718
    %v1720 = vmul.f32 1.0, %v1719
    %s1721 = scalar_lea.vmem [#allocation2], 40
    %v1722 = vld [vmem:[%s1721] sm:$0x3]
    %v1723 = vld [vmem:[%s219] sm:$0xff]
    %v1724 = vld [vmem:[%s219 + $0x8] sm:$0xff]
    %v1725 = vld [vmem:[%s219 + $0x10] sm:$0xff]
    %v1726 = vld [vmem:[%s219 + $0x18] sm:$0xff]
    %1727 = vmatprep.subr.mxu0 0.0
    %1728 = vmatpush1.msra.mxu0 %v1723
    %1729 = vmatprep.subr.mxu0 0.0
    %1730 = vmatpush1.msra.mxu0 %v1724
    %1731 = vmatprep.subr.mxu0 0.0
    %1732 = vmatpush1.msra.mxu0 %v1725
    %1733 = vmatprep.subr.mxu0 0.0
    %1734 = vmatpush1.msra.mxu0 %v1726
    %1735 = vmatprep.subr.mxu0 0.0
    %1736 = vmatpush1.msra.mxu0 0.0
    %1737 = vmatprep.subr.mxu0 0.0
    %1738 = vmatpush1.msra.mxu0 0.0
    %1739 = vmatprep.subr.mxu0 0.0
    %1740 = vmatpush1.msra.mxu0 0.0
    %1741 = vmatprep.subr.mxu0 0.0
    %1742 = vmatpush1.msra.mxu0 0.0
    %1743 = vmatprep.subr.mxu0 0.0
    %1744 = vmatpush1.msra.mxu0 0.0
    %1745 = vmatprep.subr.mxu0 0.0
    %1746 = vmatpush1.msra.mxu0 0.0
    %1747 = vmatprep.subr.mxu0 0.0
    %1748 = vmatpush1.msra.mxu0 0.0
    %1749 = vmatprep.subr.mxu0 0.0
    %1750 = vmatpush1.msra.mxu0 0.0
    %1751 = vmatprep.subr.mxu0 0.0
    %1752 = vmatpush1.msra.mxu0 0.0
    %1753 = vmatprep.subr.mxu0 0.0
    %1754 = vmatpush1.msra.mxu0 0.0
    %1755 = vmatprep.subr.mxu0 0.0
    %1756 = vmatpush1.msra.mxu0 0.0
    %1757 = vmatprep.subr.mxu0 0.0
    %1758 = vmatpush1.msra.mxu0 0.0
    %1759 = vmatprep.subr.mxu0 0.0
    %1760 = vmatpush1.msra.mxu0 0.0
    %1761 = vmatprep.subr.mxu0 0.0
    %1762 = vmatpush1.msra.mxu0 0.0
    %1763 = vmatprep.subr.mxu0 0.0
    %1764 = vmatpush1.msra.mxu0 0.0
    %1765 = vmatprep.subr.mxu0 0.0
    %1766 = vmatpush1.msra.mxu0 0.0
    %1767 = vmatprep.subr.mxu0 0.0
    %1768 = vmatpush1.msra.mxu0 0.0
    %1769 = vmatprep.subr.mxu0 0.0
    %1770 = vmatpush1.msra.mxu0 0.0
    %1771 = vmatprep.subr.mxu0 0.0
    %1772 = vmatpush1.msra.mxu0 0.0
    %1773 = vmatprep.subr.mxu0 0.0
    %1774 = vmatpush1.msra.mxu0 0.0
    %1775 = vmatprep.subr.mxu0 0.0
    %1776 = vmatpush1.msra.mxu0 0.0
    %1777 = vmatprep.subr.mxu0 0.0
    %1778 = vmatpush1.msra.mxu0 0.0
    %1779 = vmatprep.subr.mxu0 0.0
    %1780 = vmatpush1.msra.mxu0 0.0
    %1781 = vmatprep.subr.mxu0 0.0
    %1782 = vmatpush1.msra.mxu0 0.0
    %1783 = vmatprep.subr.mxu0 0.0
    %1784 = vmatpush1.msra.mxu0 0.0
    %1785 = vmatprep.subr.mxu0 0.0
    %1786 = vmatpush1.msra.mxu0 0.0
    %1787 = vmatprep.subr.mxu0 0.0
    %1788 = vmatpush1.msra.mxu0 0.0
    %1789 = vmatprep.subr.mxu0 0.0
    %1790 = vmatpush1.msra.mxu0 0.0
    %1791 = vmatprep.mubr.f32.mxu0 0.0
    %1792 = vmatmul.mubr.f32.gmra.mrb[0].mxu0 %v1559
    %v1793 = vpop.f32.mrb[0].mxu0
    %v1794 = vadd.f32 0.0, %v1793
    %v1795 = vpop.f32.mrb[0].mxu0
    %1796 = vdwg.mxu0
    %v1797 = vadd.f32 %v1722, %v1794
    %v1798 = vtanh.pop %v1797
    %s1799 = scalar_lea.vmem [#allocation2], 56
    %v1800 = vld [vmem:[%s1799] sm:$0x3]
    %v1801 = vld [vmem:[%s298] sm:$0xff]
    %v1802 = vld [vmem:[%s298 + $0x8] sm:$0xff]
    %v1803 = vld [vmem:[%s298 + $0x10] sm:$0xff]
    %v1804 = vld [vmem:[%s298 + $0x18] sm:$0xff]
    %1805 = vmatprep.subr.mxu0 0.0
    %1806 = vmatpush1.msra.mxu0 %v1801
    %1807 = vmatprep.subr.mxu0 0.0
    %1808 = vmatpush1.msra.mxu0 %v1802
    %1809 = vmatprep.subr.mxu0 0.0
    %1810 = vmatpush1.msra.mxu0 %v1803
    %1811 = vmatprep.subr.mxu0 0.0
    %1812 = vmatpush1.msra.mxu0 %v1804
    %1813 = vmatprep.subr.mxu0 0.0
    %1814 = vmatpush1.msra.mxu0 0.0
    %1815 = vmatprep.subr.mxu0 0.0
    %1816 = vmatpush1.msra.mxu0 0.0
    %1817 = vmatprep.subr.mxu0 0.0
    %1818 = vmatpush1.msra.mxu0 0.0
    %1819 = vmatprep.subr.mxu0 0.0
    %1820 = vmatpush1.msra.mxu0 0.0
    %1821 = vmatprep.subr.mxu0 0.0
    %1822 = vmatpush1.msra.mxu0 0.0
    %1823 = vmatprep.subr.mxu0 0.0
    %1824 = vmatpush1.msra.mxu0 0.0
    %1825 = vmatprep.subr.mxu0 0.0
    %1826 = vmatpush1.msra.mxu0 0.0
    %1827 = vmatprep.subr.mxu0 0.0
    %1828 = vmatpush1.msra.mxu0 0.0
    %1829 = vmatprep.subr.mxu0 0.0
    %1830 = vmatpush1.msra.mxu0 0.0
    %1831 = vmatprep.subr.mxu0 0.0
    %1832 = vmatpush1.msra.mxu0 0.0
    %1833 = vmatprep.subr.mxu0 0.0
    %1834 = vmatpush1.msra.mxu0 0.0
    %1835 = vmatprep.subr.mxu0 0.0
    %1836 = vmatpush1.msra.mxu0 0.0
    %1837 = vmatprep.subr.mxu0 0.0
    %1838 = vmatpush1.msra.mxu0 0.0
    %1839 = vmatprep.subr.mxu0 0.0
    %1840 = vmatpush1.msra.mxu0 0.0
    %1841 = vmatprep.subr.mxu0 0.0
    %1842 = vmatpush1.msra.mxu0 0.0
    %1843 = vmatprep.subr.mxu0 0.0
    %1844 = vmatpush1.msra.mxu0 0.0
    %1845 = vmatprep.subr.mxu0 0.0
    %1846 = vmatpush1.msra.mxu0 0.0
    %1847 = vmatprep.subr.mxu0 0.0
    %1848 = vmatpush1.msra.mxu0 0.0
    %1849 = vmatprep.subr.mxu0 0.0
    %1850 = vmatpush1.msra.mxu0 0.0
    %1851 = vmatprep.subr.mxu0 0.0
    %1852 = vmatpush1.msra.mxu0 0.0
    %1853 = vmatprep.subr.mxu0 0.0
    %1854 = vmatpush1.msra.mxu0 0.0
    %1855 = vmatprep.subr.mxu0 0.0
    %1856 = vmatpush1.msra.mxu0 0.0
    %1857 = vmatprep.subr.mxu0 0.0
    %1858 = vmatpush1.msra.mxu0 0.0
    %1859 = vmatprep.subr.mxu0 0.0
    %1860 = vmatpush1.msra.mxu0 0.0
    %1861 = vmatprep.subr.mxu0 0.0
    %1862 = vmatpush1.msra.mxu0 0.0
    %1863 = vmatprep.subr.mxu0 0.0
    %1864 = vmatpush1.msra.mxu0 0.0
    %1865 = vmatprep.subr.mxu0 0.0
    %1866 = vmatpush1.msra.mxu0 0.0
    %1867 = vmatprep.subr.mxu0 0.0
    %1868 = vmatpush1.msra.mxu0 0.0
    %1869 = vmatprep.mubr.f32.mxu0 0.0
    %1870 = vmatmul.mubr.f32.gmra.mrb[0].mxu0 %v1559
    %v1871 = vpop.f32.mrb[0].mxu0
    %v1872 = vadd.f32 0.0, %v1871
    %v1873 = vpop.f32.mrb[0].mxu0
    %1874 = vdwg.mxu0
    %v1875 = vadd.f32 %v1800, %v1872
    %v1876 = vxor.u32 %v1875, 2147483648
    %v1877 = vmul.f32 %v1876, 1.442695
    %v1878 = vpow.pop %v1877
    %v1879 = vadd.f32 %v1878, 1.0
    %v1880 = vrcp.pop %v1879
    %v1881 = vmul.f32 1.0, %v1880
    %v1882 = vmul.f32 %v1720, %v1518
    %v1883 = vmul.f32 %v1637, %v1798
    %v1884 = vadd.f32 %v1882, %v1883
    %v1885 = vtanh.pop %v1884
    %v1886 = vmul.f32 %v1881, %v1885
    %v1887 = vsub.f32 %v1884, %v1518
    %1889 = vset.pattern.permute.xlu0 0
    %1890 = vperm.xlu0 %1889, %v1551
    %v1891 = vpop.permute.xlu0 %1890
    %v1893 = vmul.f32 %v1891, %v1887
    %v1894 = vadd.f32 %v1518, %v1893
    %v1895 = vmul.f32 %v1891, %v1886
    %v1898 = vunpack.c.l.s4 1966171168
    %v1899 = vunpack.c.0.s8 %v1898
    %v1900 = vlaneseq
    %v1901 = vshrl.u32 %v1900, 7
    %v1902 = vsub.s32 %v1899, %v1901
    %v1903 = vrot.slane %v1895, %v1902
    %v1904 = vcombine.high %v1903, %v1903
    %v1906 = vunpack.c.l.s4 1966171168
    %v1907 = vunpack.c.0.s8 %v1906
    %v1908 = vlaneseq
    %v1909 = vshrl.u32 %v1908, 7
    %v1910 = vsub.s32 %v1907, %v1909
    %v1911 = vrot.slane %v1903, %v1910
    %v1913 = vunpack.c.l.s4 1966171168
    %v1914 = vunpack.c.0.s8 %v1913
    %v1915 = vlaneseq
    %v1916 = vshrl.u32 %v1915, 7
    %v1917 = vsub.s32 %v1914, %v1916
    %v1918 = vrot.slane %v1904, %v1917
    %1921 = vst.msk [vmem:[#allocation7 + $0x4] sm:$0x1] %vm418, %v1911
    %1922 = vst.msk [vmem:[#allocation7 + $0xc] sm:$0x1] %vm418, %v1918
    %v1923 = vsub.f32 %v1886, %v1549
    %v1924 = vmul.f32 %v1891, %v1923
    %v1925 = vadd.f32 %v1549, %v1924
    %s1926 = scalar_lea.vmem %s1, 10
    %v1927 = vld [vmem:[%s1926] sm:$0x3]
    %s1928 = scalar_lea.vmem [#allocation2], 10
    %v1929 = vld [vmem:[%s1928] sm:$0x3]
    %v1930 = vld [vmem:[#allocation5] sm:$0xff]
    %v1931 = vld [vmem:[#allocation5 + $0x8] sm:$0xff]
    %v1932 = vld [vmem:[#allocation5 + $0x10] sm:$0xff]
    %v1933 = vld [vmem:[#allocation5 + $0x18] sm:$0xff]
    %v1935 = vsel %vm52, %v1925, 0
    %1937 = vmatprep.subr.mxu0 0.0
    %1938 = vmatpush1.msra.mxu0 %v1930
    %1939 = vmatprep.subr.mxu0 0.0
    %1940 = vmatpush1.msra.mxu0 %v1931
    %1941 = vmatprep.subr.mxu0 0.0
    %1942 = vmatpush1.msra.mxu0 %v1932
    %1943 = vmatprep.subr.mxu0 0.0
    %1944 = vmatpush1.msra.mxu0 %v1933
    %1945 = vmatprep.subr.mxu0 0.0
    %1946 = vmatpush1.msra.mxu0 0.0
    %1947 = vmatprep.subr.mxu0 0.0
    %1948 = vmatpush1.msra.mxu0 0.0
    %1949 = vmatprep.subr.mxu0 0.0
    %1950 = vmatpush1.msra.mxu0 0.0
    %1951 = vmatprep.subr.mxu0 0.0
    %1952 = vmatpush1.msra.mxu0 0.0
    %1953 = vmatprep.subr.mxu0 0.0
    %1954 = vmatpush1.msra.mxu0 0.0
    %1955 = vmatprep.subr.mxu0 0.0
    %1956 = vmatpush1.msra.mxu0 0.0
    %1957 = vmatprep.subr.mxu0 0.0
    %1958 = vmatpush1.msra.mxu0 0.0
    %1959 = vmatprep.subr.mxu0 0.0
    %1960 = vmatpush1.msra.mxu0 0.0
    %1961 = vmatprep.subr.mxu0 0.0
    %1962 = vmatpush1.msra.mxu0 0.0
    %1963 = vmatprep.subr.mxu0 0.0
    %1964 = vmatpush1.msra.mxu0 0.0
    %1965 = vmatprep.subr.mxu0 0.0
    %1966 = vmatpush1.msra.mxu0 0.0
    %1967 = vmatprep.subr.mxu0 0.0
    %1968 = vmatpush1.msra.mxu0 0.0
    %1969 = vmatprep.subr.mxu0 0.0
    %1970 = vmatpush1.msra.mxu0 0.0
    %1971 = vmatprep.subr.mxu0 0.0
    %1972 = vmatpush1.msra.mxu0 0.0
    %1973 = vmatprep.subr.mxu0 0.0
    %1974 = vmatpush1.msra.mxu0 0.0
    %1975 = vmatprep.subr.mxu0 0.0
    %1976 = vmatpush1.msra.mxu0 0.0
    %1977 = vmatprep.subr.mxu0 0.0
    %1978 = vmatpush1.msra.mxu0 0.0
    %1979 = vmatprep.subr.mxu0 0.0
    %1980 = vmatpush1.msra.mxu0 0.0
    %1981 = vmatprep.subr.mxu0 0.0
    %1982 = vmatpush1.msra.mxu0 0.0
    %1983 = vmatprep.subr.mxu0 0.0
    %1984 = vmatpush1.msra.mxu0 0.0
    %1985 = vmatprep.subr.mxu0 0.0
    %1986 = vmatpush1.msra.mxu0 0.0
    %1987 = vmatprep.subr.mxu0 0.0
    %1988 = vmatpush1.msra.mxu0 0.0
    %1989 = vmatprep.subr.mxu0 0.0
    %1990 = vmatpush1.msra.mxu0 0.0
    %1991 = vmatprep.subr.mxu0 0.0
    %1992 = vmatpush1.msra.mxu0 0.0
    %1993 = vmatprep.subr.mxu0 0.0
    %1994 = vmatpush1.msra.mxu0 0.0
    %1995 = vmatprep.subr.mxu0 0.0
    %1996 = vmatpush1.msra.mxu0 0.0
    %1997 = vmatprep.subr.mxu0 0.0
    %1998 = vmatpush1.msra.mxu0 0.0
    %1999 = vmatprep.subr.mxu0 0.0
    %2000 = vmatpush1.msra.mxu0 0.0
    %2001 = vmatprep.mubr.f32.mxu0 0.0
    %2002 = vmatmul.mubr.f32.gmra.mrb[0].mxu0 %v1935
    %v2003 = vpop.f32.mrb[0].mxu0
    %v2004 = vadd.f32 0.0, %v2003
    %v2005 = vpop.f32.mrb[0].mxu0
    %2006 = vdwg.mxu0
    %v2007 = vadd.f32 %v1929, %v2004
    %v2008 = vxor.u32 %v2007, 2147483648
    %v2009 = vmul.f32 %v2008, 1.442695
    %v2010 = vpow.pop %v2009
    %v2011 = vadd.f32 %v2010, 1.0
    %v2012 = vrcp.pop %v2011
    %v2013 = vmul.f32 1.0, %v2012
    %s2014 = scalar_lea.vmem [#allocation2], 26
    %v2015 = vld [vmem:[%s2014] sm:$0x3]
    %v2016 = vld [vmem:[%s135] sm:$0xff]
    %v2017 = vld [vmem:[%s135 + $0x8] sm:$0xff]
    %v2018 = vld [vmem:[%s135 + $0x10] sm:$0xff]
    %v2019 = vld [vmem:[%s135 + $0x18] sm:$0xff]
    %2020 = vmatprep.subr.mxu0 0.0
    %2021 = vmatpush1.msra.mxu0 %v2016
    %2022 = vmatprep.subr.mxu0 0.0
    %2023 = vmatpush1.msra.mxu0 %v2017
    %2024 = vmatprep.subr.mxu0 0.0
    %2025 = vmatpush1.msra.mxu0 %v2018
    %2026 = vmatprep.subr.mxu0 0.0
    %2027 = vmatpush1.msra.mxu0 %v2019
    %2028 = vmatprep.subr.mxu0 0.0
    %2029 = vmatpush1.msra.mxu0 0.0
    %2030 = vmatprep.subr.mxu0 0.0
    %2031 = vmatpush1.msra.mxu0 0.0
    %2032 = vmatprep.subr.mxu0 0.0
    %2033 = vmatpush1.msra.mxu0 0.0
    %2034 = vmatprep.subr.mxu0 0.0
    %2035 = vmatpush1.msra.mxu0 0.0
    %2036 = vmatprep.subr.mxu0 0.0
    %2037 = vmatpush1.msra.mxu0 0.0
    %2038 = vmatprep.subr.mxu0 0.0
    %2039 = vmatpush1.msra.mxu0 0.0
    %2040 = vmatprep.subr.mxu0 0.0
    %2041 = vmatpush1.msra.mxu0 0.0
    %2042 = vmatprep.subr.mxu0 0.0
    %2043 = vmatpush1.msra.mxu0 0.0
    %2044 = vmatprep.subr.mxu0 0.0
    %2045 = vmatpush1.msra.mxu0 0.0
    %2046 = vmatprep.subr.mxu0 0.0
    %2047 = vmatpush1.msra.mxu0 0.0
    %2048 = vmatprep.subr.mxu0 0.0
    %2049 = vmatpush1.msra.mxu0 0.0
    %2050 = vmatprep.subr.mxu0 0.0
    %2051 = vmatpush1.msra.mxu0 0.0
    %2052 = vmatprep.subr.mxu0 0.0
    %2053 = vmatpush1.msra.mxu0 0.0
    %2054 = vmatprep.subr.mxu0 0.0
    %2055 = vmatpush1.msra.mxu0 0.0
    %2056 = vmatprep.subr.mxu0 0.0
    %2057 = vmatpush1.msra.mxu0 0.0
    %2058 = vmatprep.subr.mxu0 0.0
    %2059 = vmatpush1.msra.mxu0 0.0
    %2060 = vmatprep.subr.mxu0 0.0
    %2061 = vmatpush1.msra.mxu0 0.0
    %2062 = vmatprep.subr.mxu0 0.0
    %2063 = vmatpush1.msra.mxu0 0.0
    %2064 = vmatprep.subr.mxu0 0.0
    %2065 = vmatpush1.msra.mxu0 0.0
    %2066 = vmatprep.subr.mxu0 0.0
    %2067 = vmatpush1.msra.mxu0 0.0
    %2068 = vmatprep.subr.mxu0 0.0
    %2069 = vmatpush1.msra.mxu0 0.0
    %2070 = vmatprep.subr.mxu0 0.0
    %2071 = vmatpush1.msra.mxu0 0.0
    %2072 = vmatprep.subr.mxu0 0.0
    %2073 = vmatpush1.msra.mxu0 0.0
    %2074 = vmatprep.subr.mxu0 0.0
    %2075 = vmatpush1.msra.mxu0 0.0
    %2076 = vmatprep.subr.mxu0 0.0
    %2077 = vmatpush1.msra.mxu0 0.0
    %2078 = vmatprep.subr.mxu0 0.0
    %2079 = vmatpush1.msra.mxu0 0.0
    %2080 = vmatprep.subr.mxu0 0.0
    %2081 = vmatpush1.msra.mxu0 0.0
    %2082 = vmatprep.subr.mxu0 0.0
    %2083 = vmatpush1.msra.mxu0 0.0
    %2084 = vmatprep.mubr.f32.mxu0 0.0
    %2085 = vmatmul.mubr.f32.gmra.mrb[0].mxu0 %v1935
    %v2086 = vpop.f32.mrb[0].mxu0
    %v2087 = vadd.f32 0.0, %v2086
    %v2088 = vpop.f32.mrb[0].mxu0
    %2089 = vdwg.mxu0
    %v2090 = vadd.f32 %v2015, %v2087
    %v2091 = vxor.u32 %v2090, 2147483648
    %v2092 = vmul.f32 %v2091, 1.442695
    %v2093 = vpow.pop %v2092
    %v2094 = vadd.f32 %v2093, 1.0
    %v2095 = vrcp.pop %v2094
    %v2096 = vmul.f32 1.0, %v2095
    %s2097 = scalar_lea.vmem [#allocation2], 42
    %v2098 = vld [vmem:[%s2097] sm:$0x3]
    %v2099 = vld [vmem:[%s219] sm:$0xff]
    %v2100 = vld [vmem:[%s219 + $0x8] sm:$0xff]
    %v2101 = vld [vmem:[%s219 + $0x10] sm:$0xff]
    %v2102 = vld [vmem:[%s219 + $0x18] sm:$0xff]
    %2103 = vmatprep.subr.mxu0 0.0
    %2104 = vmatpush1.msra.mxu0 %v2099
    %2105 = vmatprep.subr.mxu0 0.0
    %2106 = vmatpush1.msra.mxu0 %v2100
    %2107 = vmatprep.subr.mxu0 0.0
    %2108 = vmatpush1.msra.mxu0 %v2101
    %2109 = vmatprep.subr.mxu0 0.0
    %2110 = vmatpush1.msra.mxu0 %v2102
    %2111 = vmatprep.subr.mxu0 0.0
    %2112 = vmatpush1.msra.mxu0 0.0
    %2113 = vmatprep.subr.mxu0 0.0
    %2114 = vmatpush1.msra.mxu0 0.0
    %2115 = vmatprep.subr.mxu0 0.0
    %2116 = vmatpush1.msra.mxu0 0.0
    %2117 = vmatprep.subr.mxu0 0.0
    %2118 = vmatpush1.msra.mxu0 0.0
    %2119 = vmatprep.subr.mxu0 0.0
    %2120 = vmatpush1.msra.mxu0 0.0
    %2121 = vmatprep.subr.mxu0 0.0
    %2122 = vmatpush1.msra.mxu0 0.0
    %2123 = vmatprep.subr.mxu0 0.0
    %2124 = vmatpush1.msra.mxu0 0.0
    %2125 = vmatprep.subr.mxu0 0.0
    %2126 = vmatpush1.msra.mxu0 0.0
    %2127 = vmatprep.subr.mxu0 0.0
    %2128 = vmatpush1.msra.mxu0 0.0
    %2129 = vmatprep.subr.mxu0 0.0
    %2130 = vmatpush1.msra.mxu0 0.0
    %2131 = vmatprep.subr.mxu0 0.0
    %2132 = vmatpush1.msra.mxu0 0.0
    %2133 = vmatprep.subr.mxu0 0.0
    %2134 = vmatpush1.msra.mxu0 0.0
    %2135 = vmatprep.subr.mxu0 0.0
    %2136 = vmatpush1.msra.mxu0 0.0
    %2137 = vmatprep.subr.mxu0 0.0
    %2138 = vmatpush1.msra.mxu0 0.0
    %2139 = vmatprep.subr.mxu0 0.0
    %2140 = vmatpush1.msra.mxu0 0.0
    %2141 = vmatprep.subr.mxu0 0.0
    %2142 = vmatpush1.msra.mxu0 0.0
    %2143 = vmatprep.subr.mxu0 0.0
    %2144 = vmatpush1.msra.mxu0 0.0
    %2145 = vmatprep.subr.mxu0 0.0
    %2146 = vmatpush1.msra.mxu0 0.0
    %2147 = vmatprep.subr.mxu0 0.0
    %2148 = vmatpush1.msra.mxu0 0.0
    %2149 = vmatprep.subr.mxu0 0.0
    %2150 = vmatpush1.msra.mxu0 0.0
    %2151 = vmatprep.subr.mxu0 0.0
    %2152 = vmatpush1.msra.mxu0 0.0
    %2153 = vmatprep.subr.mxu0 0.0
    %2154 = vmatpush1.msra.mxu0 0.0
    %2155 = vmatprep.subr.mxu0 0.0
    %2156 = vmatpush1.msra.mxu0 0.0
    %2157 = vmatprep.subr.mxu0 0.0
    %2158 = vmatpush1.msra.mxu0 0.0
    %2159 = vmatprep.subr.mxu0 0.0
    %2160 = vmatpush1.msra.mxu0 0.0
    %2161 = vmatprep.subr.mxu0 0.0
    %2162 = vmatpush1.msra.mxu0 0.0
    %2163 = vmatprep.subr.mxu0 0.0
    %2164 = vmatpush1.msra.mxu0 0.0
    %2165 = vmatprep.subr.mxu0 0.0
    %2166 = vmatpush1.msra.mxu0 0.0
    %2167 = vmatprep.mubr.f32.mxu0 0.0
    %2168 = vmatmul.mubr.f32.gmra.mrb[0].mxu0 %v1935
    %v2169 = vpop.f32.mrb[0].mxu0
    %v2170 = vadd.f32 0.0, %v2169
    %v2171 = vpop.f32.mrb[0].mxu0
    %2172 = vdwg.mxu0
    %v2173 = vadd.f32 %v2098, %v2170
    %v2174 = vtanh.pop %v2173
    %s2175 = scalar_lea.vmem [#allocation2], 58
    %v2176 = vld [vmem:[%s2175] sm:$0x3]
    %v2177 = vld [vmem:[%s298] sm:$0xff]
    %v2178 = vld [vmem:[%s298 + $0x8] sm:$0xff]
    %v2179 = vld [vmem:[%s298 + $0x10] sm:$0xff]
    %v2180 = vld [vmem:[%s298 + $0x18] sm:$0xff]
    %2181 = vmatprep.subr.mxu0 0.0
    %2182 = vmatpush1.msra.mxu0 %v2177
    %2183 = vmatprep.subr.mxu0 0.0
    %2184 = vmatpush1.msra.mxu0 %v2178
    %2185 = vmatprep.subr.mxu0 0.0
    %2186 = vmatpush1.msra.mxu0 %v2179
    %2187 = vmatprep.subr.mxu0 0.0
    %2188 = vmatpush1.msra.mxu0 %v2180
    %2189 = vmatprep.subr.mxu0 0.0
    %2190 = vmatpush1.msra.mxu0 0.0
    %2191 = vmatprep.subr.mxu0 0.0
    %2192 = vmatpush1.msra.mxu0 0.0
    %2193 = vmatprep.subr.mxu0 0.0
    %2194 = vmatpush1.msra.mxu0 0.0
    %2195 = vmatprep.subr.mxu0 0.0
    %2196 = vmatpush1.msra.mxu0 0.0
    %2197 = vmatprep.subr.mxu0 0.0
    %2198 = vmatpush1.msra.mxu0 0.0
    %2199 = vmatprep.subr.mxu0 0.0
    %2200 = vmatpush1.msra.mxu0 0.0
    %2201 = vmatprep.subr.mxu0 0.0
    %2202 = vmatpush1.msra.mxu0 0.0
    %2203 = vmatprep.subr.mxu0 0.0
    %2204 = vmatpush1.msra.mxu0 0.0
    %2205 = vmatprep.subr.mxu0 0.0
    %2206 = vmatpush1.msra.mxu0 0.0
    %2207 = vmatprep.subr.mxu0 0.0
    %2208 = vmatpush1.msra.mxu0 0.0
    %2209 = vmatprep.subr.mxu0 0.0
    %2210 = vmatpush1.msra.mxu0 0.0
    %2211 = vmatprep.subr.mxu0 0.0
    %2212 = vmatpush1.msra.mxu0 0.0
    %2213 = vmatprep.subr.mxu0 0.0
    %2214 = vmatpush1.msra.mxu0 0.0
    %2215 = vmatprep.subr.mxu0 0.0
    %2216 = vmatpush1.msra.mxu0 0.0
    %2217 = vmatprep.subr.mxu0 0.0
    %2218 = vmatpush1.msra.mxu0 0.0
    %2219 = vmatprep.subr.mxu0 0.0
    %2220 = vmatpush1.msra.mxu0 0.0
    %2221 = vmatprep.subr.mxu0 0.0
    %2222 = vmatpush1.msra.mxu0 0.0
    %2223 = vmatprep.subr.mxu0 0.0
    %2224 = vmatpush1.msra.mxu0 0.0
    %2225 = vmatprep.subr.mxu0 0.0
    %2226 = vmatpush1.msra.mxu0 0.0
    %2227 = vmatprep.subr.mxu0 0.0
    %2228 = vmatpush1.msra.mxu0 0.0
    %2229 = vmatprep.subr.mxu0 0.0
    %2230 = vmatpush1.msra.mxu0 0.0
    %2231 = vmatprep.subr.mxu0 0.0
    %2232 = vmatpush1.msra.mxu0 0.0
    %2233 = vmatprep.subr.mxu0 0.0
    %2234 = vmatpush1.msra.mxu0 0.0
    %2235 = vmatprep.subr.mxu0 0.0
    %2236 = vmatpush1.msra.mxu0 0.0
    %2237 = vmatprep.subr.mxu0 0.0
    %2238 = vmatpush1.msra.mxu0 0.0
    %2239 = vmatprep.subr.mxu0 0.0
    %2240 = vmatpush1.msra.mxu0 0.0
    %2241 = vmatprep.subr.mxu0 0.0
    %2242 = vmatpush1.msra.mxu0 0.0
    %2243 = vmatprep.subr.mxu0 0.0
    %2244 = vmatpush1.msra.mxu0 0.0
    %2245 = vmatprep.mubr.f32.mxu0 0.0
    %2246 = vmatmul.mubr.f32.gmra.mrb[0].mxu0 %v1935
    %v2247 = vpop.f32.mrb[0].mxu0
    %v2248 = vadd.f32 0.0, %v2247
    %v2249 = vpop.f32.mrb[0].mxu0
    %2250 = vdwg.mxu0
    %v2251 = vadd.f32 %v2176, %v2248
    %v2252 = vxor.u32 %v2251, 2147483648
    %v2253 = vmul.f32 %v2252, 1.442695
    %v2254 = vpow.pop %v2253
    %v2255 = vadd.f32 %v2254, 1.0
    %v2256 = vrcp.pop %v2255
    %v2257 = vmul.f32 1.0, %v2256
    %v2258 = vmul.f32 %v2096, %v1894
    %v2259 = vmul.f32 %v2013, %v2174
    %v2260 = vadd.f32 %v2258, %v2259
    %v2261 = vtanh.pop %v2260
    %v2262 = vmul.f32 %v2257, %v2261
    %v2263 = vsub.f32 %v2260, %v1894
    %2265 = vset.pattern.permute.xlu0 0
    %2266 = vperm.xlu0 %2265, %v1927
    %v2267 = vpop.permute.xlu0 %2266
    %v2269 = vmul.f32 %v2267, %v2263
    %v2270 = vadd.f32 %v1894, %v2269
    %v2271 = vmul.f32 %v2267, %v2262
    %v2274 = vunpack.c.l.s4 1966171168
    %v2275 = vunpack.c.0.s8 %v2274
    %v2276 = vlaneseq
    %v2277 = vshrl.u32 %v2276, 7
    %v2278 = vsub.s32 %v2275, %v2277
    %v2279 = vrot.slane %v2271, %v2278
    %v2280 = vcombine.high %v2279, %v2279
    %v2282 = vunpack.c.l.s4 1966171168
    %v2283 = vunpack.c.0.s8 %v2282
    %v2284 = vlaneseq
    %v2285 = vshrl.u32 %v2284, 7
    %v2286 = vsub.s32 %v2283, %v2285
    %v2287 = vrot.slane %v2279, %v2286
    %v2289 = vunpack.c.l.s4 1966171168
    %v2290 = vunpack.c.0.s8 %v2289
    %v2291 = vlaneseq
    %v2292 = vshrl.u32 %v2291, 7
    %v2293 = vsub.s32 %v2290, %v2292
    %v2294 = vrot.slane %v2280, %v2293
    %2297 = vst.msk [vmem:[#allocation7 + $0x5] sm:$0x1] %vm418, %v2287
    %2298 = vst.msk [vmem:[#allocation7 + $0xd] sm:$0x1] %vm418, %v2294
    %v2299 = vsub.f32 %v2262, %v1925
    %v2300 = vmul.f32 %v2267, %v2299
    %v2301 = vadd.f32 %v1925, %v2300
    %s2302 = scalar_lea.vmem %s1, 12
    %v2303 = vld [vmem:[%s2302] sm:$0x3]
    %s2304 = scalar_lea.vmem [#allocation2], 12
    %v2305 = vld [vmem:[%s2304] sm:$0x3]
    %v2306 = vld [vmem:[#allocation5] sm:$0xff]
    %v2307 = vld [vmem:[#allocation5 + $0x8] sm:$0xff]
    %v2308 = vld [vmem:[#allocation5 + $0x10] sm:$0xff]
    %v2309 = vld [vmem:[#allocation5 + $0x18] sm:$0xff]
    %v2311 = vsel %vm52, %v2301, 0
    %2313 = vmatprep.subr.mxu0 0.0
    %2314 = vmatpush1.msra.mxu0 %v2306
    %2315 = vmatprep.subr.mxu0 0.0
    %2316 = vmatpush1.msra.mxu0 %v2307
    %2317 = vmatprep.subr.mxu0 0.0
    %2318 = vmatpush1.msra.mxu0 %v2308
    %2319 = vmatprep.subr.mxu0 0.0
    %2320 = vmatpush1.msra.mxu0 %v2309
    %2321 = vmatprep.subr.mxu0 0.0
    %2322 = vmatpush1.msra.mxu0 0.0
    %2323 = vmatprep.subr.mxu0 0.0
    %2324 = vmatpush1.msra.mxu0 0.0
    %2325 = vmatprep.subr.mxu0 0.0
    %2326 = vmatpush1.msra.mxu0 0.0
    %2327 = vmatprep.subr.mxu0 0.0
    %2328 = vmatpush1.msra.mxu0 0.0
    %2329 = vmatprep.subr.mxu0 0.0
    %2330 = vmatpush1.msra.mxu0 0.0
    %2331 = vmatprep.subr.mxu0 0.0
    %2332 = vmatpush1.msra.mxu0 0.0
    %2333 = vmatprep.subr.mxu0 0.0
    %2334 = vmatpush1.msra.mxu0 0.0
    %2335 = vmatprep.subr.mxu0 0.0
    %2336 = vmatpush1.msra.mxu0 0.0
    %2337 = vmatprep.subr.mxu0 0.0
    %2338 = vmatpush1.msra.mxu0 0.0
    %2339 = vmatprep.subr.mxu0 0.0
    %2340 = vmatpush1.msra.mxu0 0.0
    %2341 = vmatprep.subr.mxu0 0.0
    %2342 = vmatpush1.msra.mxu0 0.0
    %2343 = vmatprep.subr.mxu0 0.0
    %2344 = vmatpush1.msra.mxu0 0.0
    %2345 = vmatprep.subr.mxu0 0.0
    %2346 = vmatpush1.msra.mxu0 0.0
    %2347 = vmatprep.subr.mxu0 0.0
    %2348 = vmatpush1.msra.mxu0 0.0
    %2349 = vmatprep.subr.mxu0 0.0
    %2350 = vmatpush1.msra.mxu0 0.0
    %2351 = vmatprep.subr.mxu0 0.0
    %2352 = vmatpush1.msra.mxu0 0.0
    %2353 = vmatprep.subr.mxu0 0.0
    %2354 = vmatpush1.msra.mxu0 0.0
    %2355 = vmatprep.subr.mxu0 0.0
    %2356 = vmatpush1.msra.mxu0 0.0
    %2357 = vmatprep.subr.mxu0 0.0
    %2358 = vmatpush1.msra.mxu0 0.0
    %2359 = vmatprep.subr.mxu0 0.0
    %2360 = vmatpush1.msra.mxu0 0.0
    %2361 = vmatprep.subr.mxu0 0.0
    %2362 = vmatpush1.msra.mxu0 0.0
    %2363 = vmatprep.subr.mxu0 0.0
    %2364 = vmatpush1.msra.mxu0 0.0
    %2365 = vmatprep.subr.mxu0 0.0
    %2366 = vmatpush1.msra.mxu0 0.0
    %2367 = vmatprep.subr.mxu0 0.0
    %2368 = vmatpush1.msra.mxu0 0.0
    %2369 = vmatprep.subr.mxu0 0.0
    %2370 = vmatpush1.msra.mxu0 0.0
    %2371 = vmatprep.subr.mxu0 0.0
    %2372 = vmatpush1.msra.mxu0 0.0
    %2373 = vmatprep.subr.mxu0 0.0
    %2374 = vmatpush1.msra.mxu0 0.0
    %2375 = vmatprep.subr.mxu0 0.0
    %2376 = vmatpush1.msra.mxu0 0.0
    %2377 = vmatprep.mubr.f32.mxu0 0.0
    %2378 = vmatmul.mubr.f32.gmra.mrb[0].mxu0 %v2311
    %v2379 = vpop.f32.mrb[0].mxu0
    %v2380 = vadd.f32 0.0, %v2379
    %v2381 = vpop.f32.mrb[0].mxu0
    %2382 = vdwg.mxu0
    %v2383 = vadd.f32 %v2305, %v2380
    %v2384 = vxor.u32 %v2383, 2147483648
    %v2385 = vmul.f32 %v2384, 1.442695
    %v2386 = vpow.pop %v2385
    %v2387 = vadd.f32 %v2386, 1.0
    %v2388 = vrcp.pop %v2387
    %v2389 = vmul.f32 1.0, %v2388
    %s2390 = scalar_lea.vmem [#allocation2], 28
    %v2391 = vld [vmem:[%s2390] sm:$0x3]
    %v2392 = vld [vmem:[%s135] sm:$0xff]
    %v2393 = vld [vmem:[%s135 + $0x8] sm:$0xff]
    %v2394 = vld [vmem:[%s135 + $0x10] sm:$0xff]
    %v2395 = vld [vmem:[%s135 + $0x18] sm:$0xff]
    %2396 = vmatprep.subr.mxu0 0.0
    %2397 = vmatpush1.msra.mxu0 %v2392
    %2398 = vmatprep.subr.mxu0 0.0
    %2399 = vmatpush1.msra.mxu0 %v2393
    %2400 = vmatprep.subr.mxu0 0.0
    %2401 = vmatpush1.msra.mxu0 %v2394
    %2402 = vmatprep.subr.mxu0 0.0
    %2403 = vmatpush1.msra.mxu0 %v2395
    %2404 = vmatprep.subr.mxu0 0.0
    %2405 = vmatpush1.msra.mxu0 0.0
    %2406 = vmatprep.subr.mxu0 0.0
    %2407 = vmatpush1.msra.mxu0 0.0
    %2408 = vmatprep.subr.mxu0 0.0
    %2409 = vmatpush1.msra.mxu0 0.0
    %2410 = vmatprep.subr.mxu0 0.0
    %2411 = vmatpush1.msra.mxu0 0.0
    %2412 = vmatprep.subr.mxu0 0.0
    %2413 = vmatpush1.msra.mxu0 0.0
    %2414 = vmatprep.subr.mxu0 0.0
    %2415 = vmatpush1.msra.mxu0 0.0
    %2416 = vmatprep.subr.mxu0 0.0
    %2417 = vmatpush1.msra.mxu0 0.0
    %2418 = vmatprep.subr.mxu0 0.0
    %2419 = vmatpush1.msra.mxu0 0.0
    %2420 = vmatprep.subr.mxu0 0.0
    %2421 = vmatpush1.msra.mxu0 0.0
    %2422 = vmatprep.subr.mxu0 0.0
    %2423 = vmatpush1.msra.mxu0 0.0
    %2424 = vmatprep.subr.mxu0 0.0
    %2425 = vmatpush1.msra.mxu0 0.0
    %2426 = vmatprep.subr.mxu0 0.0
    %2427 = vmatpush1.msra.mxu0 0.0
    %2428 = vmatprep.subr.mxu0 0.0
    %2429 = vmatpush1.msra.mxu0 0.0
    %2430 = vmatprep.subr.mxu0 0.0
    %2431 = vmatpush1.msra.mxu0 0.0
    %2432 = vmatprep.subr.mxu0 0.0
    %2433 = vmatpush1.msra.mxu0 0.0
    %2434 = vmatprep.subr.mxu0 0.0
    %2435 = vmatpush1.msra.mxu0 0.0
    %2436 = vmatprep.subr.mxu0 0.0
    %2437 = vmatpush1.msra.mxu0 0.0
    %2438 = vmatprep.subr.mxu0 0.0
    %2439 = vmatpush1.msra.mxu0 0.0
    %2440 = vmatprep.subr.mxu0 0.0
    %2441 = vmatpush1.msra.mxu0 0.0
    %2442 = vmatprep.subr.mxu0 0.0
    %2443 = vmatpush1.msra.mxu0 0.0
    %2444 = vmatprep.subr.mxu0 0.0
    %2445 = vmatpush1.msra.mxu0 0.0
    %2446 = vmatprep.subr.mxu0 0.0
    %2447 = vmatpush1.msra.mxu0 0.0
    %2448 = vmatprep.subr.mxu0 0.0
    %2449 = vmatpush1.msra.mxu0 0.0
    %2450 = vmatprep.subr.mxu0 0.0
    %2451 = vmatpush1.msra.mxu0 0.0
    %2452 = vmatprep.subr.mxu0 0.0
    %2453 = vmatpush1.msra.mxu0 0.0
    %2454 = vmatprep.subr.mxu0 0.0
    %2455 = vmatpush1.msra.mxu0 0.0
    %2456 = vmatprep.subr.mxu0 0.0
    %2457 = vmatpush1.msra.mxu0 0.0
    %2458 = vmatprep.subr.mxu0 0.0
    %2459 = vmatpush1.msra.mxu0 0.0
    %2460 = vmatprep.mubr.f32.mxu0 0.0
    %2461 = vmatmul.mubr.f32.gmra.mrb[0].mxu0 %v2311
    %v2462 = vpop.f32.mrb[0].mxu0
    %v2463 = vadd.f32 0.0, %v2462
    %v2464 = vpop.f32.mrb[0].mxu0
    %2465 = vdwg.mxu0
    %v2466 = vadd.f32 %v2391, %v2463
    %v2467 = vxor.u32 %v2466, 2147483648
    %v2468 = vmul.f32 %v2467, 1.442695
    %v2469 = vpow.pop %v2468
    %v2470 = vadd.f32 %v2469, 1.0
    %v2471 = vrcp.pop %v2470
    %v2472 = vmul.f32 1.0, %v2471
    %s2473 = scalar_lea.vmem [#allocation2], 44
    %v2474 = vld [vmem:[%s2473] sm:$0x3]
    %v2475 = vld [vmem:[%s219] sm:$0xff]
    %v2476 = vld [vmem:[%s219 + $0x8] sm:$0xff]
    %v2477 = vld [vmem:[%s219 + $0x10] sm:$0xff]
    %v2478 = vld [vmem:[%s219 + $0x18] sm:$0xff]
    %2479 = vmatprep.subr.mxu0 0.0
    %2480 = vmatpush1.msra.mxu0 %v2475
    %2481 = vmatprep.subr.mxu0 0.0
    %2482 = vmatpush1.msra.mxu0 %v2476
    %2483 = vmatprep.subr.mxu0 0.0
    %2484 = vmatpush1.msra.mxu0 %v2477
    %2485 = vmatprep.subr.mxu0 0.0
    %2486 = vmatpush1.msra.mxu0 %v2478
    %2487 = vmatprep.subr.mxu0 0.0
    %2488 = vmatpush1.msra.mxu0 0.0
    %2489 = vmatprep.subr.mxu0 0.0
    %2490 = vmatpush1.msra.mxu0 0.0
    %2491 = vmatprep.subr.mxu0 0.0
    %2492 = vmatpush1.msra.mxu0 0.0
    %2493 = vmatprep.subr.mxu0 0.0
    %2494 = vmatpush1.msra.mxu0 0.0
    %2495 = vmatprep.subr.mxu0 0.0
    %2496 = vmatpush1.msra.mxu0 0.0
    %2497 = vmatprep.subr.mxu0 0.0
    %2498 = vmatpush1.msra.mxu0 0.0
    %2499 = vmatprep.subr.mxu0 0.0
    %2500 = vmatpush1.msra.mxu0 0.0
    %2501 = vmatprep.subr.mxu0 0.0
    %2502 = vmatpush1.msra.mxu0 0.0
    %2503 = vmatprep.subr.mxu0 0.0
    %2504 = vmatpush1.msra.mxu0 0.0
    %2505 = vmatprep.subr.mxu0 0.0
    %2506 = vmatpush1.msra.mxu0 0.0
    %2507 = vmatprep.subr.mxu0 0.0
    %2508 = vmatpush1.msra.mxu0 0.0
    %2509 = vmatprep.subr.mxu0 0.0
    %2510 = vmatpush1.msra.mxu0 0.0
    %2511 = vmatprep.subr.mxu0 0.0
    %2512 = vmatpush1.msra.mxu0 0.0
    %2513 = vmatprep.subr.mxu0 0.0
    %2514 = vmatpush1.msra.mxu0 0.0
    %2515 = vmatprep.subr.mxu0 0.0
    %2516 = vmatpush1.msra.mxu0 0.0
    %2517 = vmatprep.subr.mxu0 0.0
    %2518 = vmatpush1.msra.mxu0 0.0
    %2519 = vmatprep.subr.mxu0 0.0
    %2520 = vmatpush1.msra.mxu0 0.0
    %2521 = vmatprep.subr.mxu0 0.0
    %2522 = vmatpush1.msra.mxu0 0.0
    %2523 = vmatprep.subr.mxu0 0.0
    %2524 = vmatpush1.msra.mxu0 0.0
    %2525 = vmatprep.subr.mxu0 0.0
    %2526 = vmatpush1.msra.mxu0 0.0
    %2527 = vmatprep.subr.mxu0 0.0
    %2528 = vmatpush1.msra.mxu0 0.0
    %2529 = vmatprep.subr.mxu0 0.0
    %2530 = vmatpush1.msra.mxu0 0.0
    %2531 = vmatprep.subr.mxu0 0.0
    %2532 = vmatpush1.msra.mxu0 0.0
    %2533 = vmatprep.subr.mxu0 0.0
    %2534 = vmatpush1.msra.mxu0 0.0
    %2535 = vmatprep.subr.mxu0 0.0
    %2536 = vmatpush1.msra.mxu0 0.0
    %2537 = vmatprep.subr.mxu0 0.0
    %2538 = vmatpush1.msra.mxu0 0.0
    %2539 = vmatprep.subr.mxu0 0.0
    %2540 = vmatpush1.msra.mxu0 0.0
    %2541 = vmatprep.subr.mxu0 0.0
    %2542 = vmatpush1.msra.mxu0 0.0
    %2543 = vmatprep.mubr.f32.mxu0 0.0
    %2544 = vmatmul.mubr.f32.gmra.mrb[0].mxu0 %v2311
    %v2545 = vpop.f32.mrb[0].mxu0
    %v2546 = vadd.f32 0.0, %v2545
    %v2547 = vpop.f32.mrb[0].mxu0
    %2548 = vdwg.mxu0
    %v2549 = vadd.f32 %v2474, %v2546
    %v2550 = vtanh.pop %v2549
    %s2551 = scalar_lea.vmem [#allocation2], 60
    %v2552 = vld [vmem:[%s2551] sm:$0x3]
    %v2553 = vld [vmem:[%s298] sm:$0xff]
    %v2554 = vld [vmem:[%s298 + $0x8] sm:$0xff]
    %v2555 = vld [vmem:[%s298 + $0x10] sm:$0xff]
    %v2556 = vld [vmem:[%s298 + $0x18] sm:$0xff]
    %2557 = vmatprep.subr.mxu0 0.0
    %2558 = vmatpush1.msra.mxu0 %v2553
    %2559 = vmatprep.subr.mxu0 0.0
    %2560 = vmatpush1.msra.mxu0 %v2554
    %2561 = vmatprep.subr.mxu0 0.0
    %2562 = vmatpush1.msra.mxu0 %v2555
    %2563 = vmatprep.subr.mxu0 0.0
    %2564 = vmatpush1.msra.mxu0 %v2556
    %2565 = vmatprep.subr.mxu0 0.0
    %2566 = vmatpush1.msra.mxu0 0.0
    %2567 = vmatprep.subr.mxu0 0.0
    %2568 = vmatpush1.msra.mxu0 0.0
    %2569 = vmatprep.subr.mxu0 0.0
    %2570 = vmatpush1.msra.mxu0 0.0
    %2571 = vmatprep.subr.mxu0 0.0
    %2572 = vmatpush1.msra.mxu0 0.0
    %2573 = vmatprep.subr.mxu0 0.0
    %2574 = vmatpush1.msra.mxu0 0.0
    %2575 = vmatprep.subr.mxu0 0.0
    %2576 = vmatpush1.msra.mxu0 0.0
    %2577 = vmatprep.subr.mxu0 0.0
    %2578 = vmatpush1.msra.mxu0 0.0
    %2579 = vmatprep.subr.mxu0 0.0
    %2580 = vmatpush1.msra.mxu0 0.0
    %2581 = vmatprep.subr.mxu0 0.0
    %2582 = vmatpush1.msra.mxu0 0.0
    %2583 = vmatprep.subr.mxu0 0.0
    %2584 = vmatpush1.msra.mxu0 0.0
    %2585 = vmatprep.subr.mxu0 0.0
    %2586 = vmatpush1.msra.mxu0 0.0
    %2587 = vmatprep.subr.mxu0 0.0
    %2588 = vmatpush1.msra.mxu0 0.0
    %2589 = vmatprep.subr.mxu0 0.0
    %2590 = vmatpush1.msra.mxu0 0.0
    %2591 = vmatprep.subr.mxu0 0.0
    %2592 = vmatpush1.msra.mxu0 0.0
    %2593 = vmatprep.subr.mxu0 0.0
    %2594 = vmatpush1.msra.mxu0 0.0
    %2595 = vmatprep.subr.mxu0 0.0
    %2596 = vmatpush1.msra.mxu0 0.0
    %2597 = vmatprep.subr.mxu0 0.0
    %2598 = vmatpush1.msra.mxu0 0.0
    %2599 = vmatprep.subr.mxu0 0.0
    %2600 = vmatpush1.msra.mxu0 0.0
    %2601 = vmatprep.subr.mxu0 0.0
    %2602 = vmatpush1.msra.mxu0 0.0
    %2603 = vmatprep.subr.mxu0 0.0
    %2604 = vmatpush1.msra.mxu0 0.0
    %2605 = vmatprep.subr.mxu0 0.0
    %2606 = vmatpush1.msra.mxu0 0.0
    %2607 = vmatprep.subr.mxu0 0.0
    %2608 = vmatpush1.msra.mxu0 0.0
    %2609 = vmatprep.subr.mxu0 0.0
    %2610 = vmatpush1.msra.mxu0 0.0
    %2611 = vmatprep.subr.mxu0 0.0
    %2612 = vmatpush1.msra.mxu0 0.0
    %2613 = vmatprep.subr.mxu0 0.0
    %2614 = vmatpush1.msra.mxu0 0.0
    %2615 = vmatprep.subr.mxu0 0.0
    %2616 = vmatpush1.msra.mxu0 0.0
    %2617 = vmatprep.subr.mxu0 0.0
    %2618 = vmatpush1.msra.mxu0 0.0
    %2619 = vmatprep.subr.mxu0 0.0
    %2620 = vmatpush1.msra.mxu0 0.0
    %2621 = vmatprep.mubr.f32.mxu0 0.0
    %2622 = vmatmul.mubr.f32.gmra.mrb[0].mxu0 %v2311
    %v2623 = vpop.f32.mrb[0].mxu0
    %v2624 = vadd.f32 0.0, %v2623
    %v2625 = vpop.f32.mrb[0].mxu0
    %2626 = vdwg.mxu0
    %v2627 = vadd.f32 %v2552, %v2624
    %v2628 = vxor.u32 %v2627, 2147483648
    %v2629 = vmul.f32 %v2628, 1.442695
    %v2630 = vpow.pop %v2629
    %v2631 = vadd.f32 %v2630, 1.0
    %v2632 = vrcp.pop %v2631
    %v2633 = vmul.f32 1.0, %v2632
    %v2634 = vmul.f32 %v2472, %v2270
    %v2635 = vmul.f32 %v2389, %v2550
    %v2636 = vadd.f32 %v2634, %v2635
    %v2637 = vtanh.pop %v2636
    %v2638 = vmul.f32 %v2633, %v2637
    %v2639 = vsub.f32 %v2636, %v2270
    %2641 = vset.pattern.permute.xlu0 0
    %2642 = vperm.xlu0 %2641, %v2303
    %v2643 = vpop.permute.xlu0 %2642
    %v2645 = vmul.f32 %v2643, %v2639
    %v2646 = vadd.f32 %v2270, %v2645
    %v2647 = vmul.f32 %v2643, %v2638
    %v2650 = vunpack.c.l.s4 1966171168
    %v2651 = vunpack.c.0.s8 %v2650
    %v2652 = vlaneseq
    %v2653 = vshrl.u32 %v2652, 7
    %v2654 = vsub.s32 %v2651, %v2653
    %v2655 = vrot.slane %v2647, %v2654
    %v2656 = vcombine.high %v2655, %v2655
    %v2658 = vunpack.c.l.s4 1966171168
    %v2659 = vunpack.c.0.s8 %v2658
    %v2660 = vlaneseq
    %v2661 = vshrl.u32 %v2660, 7
    %v2662 = vsub.s32 %v2659, %v2661
    %v2663 = vrot.slane %v2655, %v2662
    %v2665 = vunpack.c.l.s4 1966171168
    %v2666 = vunpack.c.0.s8 %v2665
    %v2667 = vlaneseq
    %v2668 = vshrl.u32 %v2667, 7
    %v2669 = vsub.s32 %v2666, %v2668
    %v2670 = vrot.slane %v2656, %v2669
    %2673 = vst.msk [vmem:[#allocation7 + $0x6] sm:$0x1] %vm418, %v2663
    %2674 = vst.msk [vmem:[#allocation7 + $0xe] sm:$0x1] %vm418, %v2670
    %v2675 = vsub.f32 %v2638, %v2301
    %v2676 = vmul.f32 %v2643, %v2675
    %v2677 = vadd.f32 %v2301, %v2676
    %s2678 = scalar_lea.vmem %s1, 14
    %v2679 = vld [vmem:[%s2678] sm:$0x3]
    %s2680 = scalar_lea.vmem [#allocation2], 14
    %v2681 = vld [vmem:[%s2680] sm:$0x3]
    %v2682 = vld [vmem:[#allocation5] sm:$0xff]
    %v2683 = vld [vmem:[#allocation5 + $0x8] sm:$0xff]
    %v2684 = vld [vmem:[#allocation5 + $0x10] sm:$0xff]
    %v2685 = vld [vmem:[#allocation5 + $0x18] sm:$0xff]
    %v2687 = vsel %vm52, %v2677, 0
    %2689 = vmatprep.subr.mxu0 0.0
    %2690 = vmatpush1.msra.mxu0 %v2682
    %2691 = vmatprep.subr.mxu0 0.0
    %2692 = vmatpush1.msra.mxu0 %v2683
    %2693 = vmatprep.subr.mxu0 0.0
    %2694 = vmatpush1.msra.mxu0 %v2684
    %2695 = vmatprep.subr.mxu0 0.0
    %2696 = vmatpush1.msra.mxu0 %v2685
    %2697 = vmatprep.subr.mxu0 0.0
    %2698 = vmatpush1.msra.mxu0 0.0
    %2699 = vmatprep.subr.mxu0 0.0
    %2700 = vmatpush1.msra.mxu0 0.0
    %2701 = vmatprep.subr.mxu0 0.0
    %2702 = vmatpush1.msra.mxu0 0.0
    %2703 = vmatprep.subr.mxu0 0.0
    %2704 = vmatpush1.msra.mxu0 0.0
    %2705 = vmatprep.subr.mxu0 0.0
    %2706 = vmatpush1.msra.mxu0 0.0
    %2707 = vmatprep.subr.mxu0 0.0
    %2708 = vmatpush1.msra.mxu0 0.0
    %2709 = vmatprep.subr.mxu0 0.0
    %2710 = vmatpush1.msra.mxu0 0.0
    %2711 = vmatprep.subr.mxu0 0.0
    %2712 = vmatpush1.msra.mxu0 0.0
    %2713 = vmatprep.subr.mxu0 0.0
    %2714 = vmatpush1.msra.mxu0 0.0
    %2715 = vmatprep.subr.mxu0 0.0
    %2716 = vmatpush1.msra.mxu0 0.0
    %2717 = vmatprep.subr.mxu0 0.0
    %2718 = vmatpush1.msra.mxu0 0.0
    %2719 = vmatprep.subr.mxu0 0.0
    %2720 = vmatpush1.msra.mxu0 0.0
    %2721 = vmatprep.subr.mxu0 0.0
    %2722 = vmatpush1.msra.mxu0 0.0
    %2723 = vmatprep.subr.mxu0 0.0
    %2724 = vmatpush1.msra.mxu0 0.0
    %2725 = vmatprep.subr.mxu0 0.0
    %2726 = vmatpush1.msra.mxu0 0.0
    %2727 = vmatprep.subr.mxu0 0.0
    %2728 = vmatpush1.msra.mxu0 0.0
    %2729 = vmatprep.subr.mxu0 0.0
    %2730 = vmatpush1.msra.mxu0 0.0
    %2731 = vmatprep.subr.mxu0 0.0
    %2732 = vmatpush1.msra.mxu0 0.0
    %2733 = vmatprep.subr.mxu0 0.0
    %2734 = vmatpush1.msra.mxu0 0.0
    %2735 = vmatprep.subr.mxu0 0.0
    %2736 = vmatpush1.msra.mxu0 0.0
    %2737 = vmatprep.subr.mxu0 0.0
    %2738 = vmatpush1.msra.mxu0 0.0
    %2739 = vmatprep.subr.mxu0 0.0
    %2740 = vmatpush1.msra.mxu0 0.0
    %2741 = vmatprep.subr.mxu0 0.0
    %2742 = vmatpush1.msra.mxu0 0.0
    %2743 = vmatprep.subr.mxu0 0.0
    %2744 = vmatpush1.msra.mxu0 0.0
    %2745 = vmatprep.subr.mxu0 0.0
    %2746 = vmatpush1.msra.mxu0 0.0
    %2747 = vmatprep.subr.mxu0 0.0
    %2748 = vmatpush1.msra.mxu0 0.0
    %2749 = vmatprep.subr.mxu0 0.0
    %2750 = vmatpush1.msra.mxu0 0.0
    %2751 = vmatprep.subr.mxu0 0.0
    %2752 = vmatpush1.msra.mxu0 0.0
    %2753 = vmatprep.mubr.f32.mxu0 0.0
    %2754 = vmatmul.mubr.f32.gmra.mrb[0].mxu0 %v2687
    %v2755 = vpop.f32.mrb[0].mxu0
    %v2756 = vadd.f32 0.0, %v2755
    %v2757 = vpop.f32.mrb[0].mxu0
    %2758 = vdwg.mxu0
    %v2759 = vadd.f32 %v2681, %v2756
    %v2760 = vxor.u32 %v2759, 2147483648
    %v2761 = vmul.f32 %v2760, 1.442695
    %v2762 = vpow.pop %v2761
    %v2763 = vadd.f32 %v2762, 1.0
    %v2764 = vrcp.pop %v2763
    %v2765 = vmul.f32 1.0, %v2764
    %s2766 = scalar_lea.vmem [#allocation2], 30
    %v2767 = vld [vmem:[%s2766] sm:$0x3]
    %v2768 = vld [vmem:[%s135] sm:$0xff]
    %v2769 = vld [vmem:[%s135 + $0x8] sm:$0xff]
    %v2770 = vld [vmem:[%s135 + $0x10] sm:$0xff]
    %v2771 = vld [vmem:[%s135 + $0x18] sm:$0xff]
    %2772 = vmatprep.subr.mxu0 0.0
    %2773 = vmatpush1.msra.mxu0 %v2768
    %2774 = vmatprep.subr.mxu0 0.0
    %2775 = vmatpush1.msra.mxu0 %v2769
    %2776 = vmatprep.subr.mxu0 0.0
    %2777 = vmatpush1.msra.mxu0 %v2770
    %2778 = vmatprep.subr.mxu0 0.0
    %2779 = vmatpush1.msra.mxu0 %v2771
    %2780 = vmatprep.subr.mxu0 0.0
    %2781 = vmatpush1.msra.mxu0 0.0
    %2782 = vmatprep.subr.mxu0 0.0
    %2783 = vmatpush1.msra.mxu0 0.0
    %2784 = vmatprep.subr.mxu0 0.0
    %2785 = vmatpush1.msra.mxu0 0.0
    %2786 = vmatprep.subr.mxu0 0.0
    %2787 = vmatpush1.msra.mxu0 0.0
    %2788 = vmatprep.subr.mxu0 0.0
    %2789 = vmatpush1.msra.mxu0 0.0
    %2790 = vmatprep.subr.mxu0 0.0
    %2791 = vmatpush1.msra.mxu0 0.0
    %2792 = vmatprep.subr.mxu0 0.0
    %2793 = vmatpush1.msra.mxu0 0.0
    %2794 = vmatprep.subr.mxu0 0.0
    %2795 = vmatpush1.msra.mxu0 0.0
    %2796 = vmatprep.subr.mxu0 0.0
    %2797 = vmatpush1.msra.mxu0 0.0
    %2798 = vmatprep.subr.mxu0 0.0
    %2799 = vmatpush1.msra.mxu0 0.0
    %2800 = vmatprep.subr.mxu0 0.0
    %2801 = vmatpush1.msra.mxu0 0.0
    %2802 = vmatprep.subr.mxu0 0.0
    %2803 = vmatpush1.msra.mxu0 0.0
    %2804 = vmatprep.subr.mxu0 0.0
    %2805 = vmatpush1.msra.mxu0 0.0
    %2806 = vmatprep.subr.mxu0 0.0
    %2807 = vmatpush1.msra.mxu0 0.0
    %2808 = vmatprep.subr.mxu0 0.0
    %2809 = vmatpush1.msra.mxu0 0.0
    %2810 = vmatprep.subr.mxu0 0.0
    %2811 = vmatpush1.msra.mxu0 0.0
    %2812 = vmatprep.subr.mxu0 0.0
    %2813 = vmatpush1.msra.mxu0 0.0
    %2814 = vmatprep.subr.mxu0 0.0
    %2815 = vmatpush1.msra.mxu0 0.0
    %2816 = vmatprep.subr.mxu0 0.0
    %2817 = vmatpush1.msra.mxu0 0.0
    %2818 = vmatprep.subr.mxu0 0.0
    %2819 = vmatpush1.msra.mxu0 0.0
    %2820 = vmatprep.subr.mxu0 0.0
    %2821 = vmatpush1.msra.mxu0 0.0
    %2822 = vmatprep.subr.mxu0 0.0
    %2823 = vmatpush1.msra.mxu0 0.0
    %2824 = vmatprep.subr.mxu0 0.0
    %2825 = vmatpush1.msra.mxu0 0.0
    %2826 = vmatprep.subr.mxu0 0.0
    %2827 = vmatpush1.msra.mxu0 0.0
    %2828 = vmatprep.subr.mxu0 0.0
    %2829 = vmatpush1.msra.mxu0 0.0
    %2830 = vmatprep.subr.mxu0 0.0
    %2831 = vmatpush1.msra.mxu0 0.0
    %2832 = vmatprep.subr.mxu0 0.0
    %2833 = vmatpush1.msra.mxu0 0.0
    %2834 = vmatprep.subr.mxu0 0.0
    %2835 = vmatpush1.msra.mxu0 0.0
    %2836 = vmatprep.mubr.f32.mxu0 0.0
    %2837 = vmatmul.mubr.f32.gmra.mrb[0].mxu0 %v2687
    %v2838 = vpop.f32.mrb[0].mxu0
    %v2839 = vadd.f32 0.0, %v2838
    %v2840 = vpop.f32.mrb[0].mxu0
    %2841 = vdwg.mxu0
    %v2842 = vadd.f32 %v2767, %v2839
    %v2843 = vxor.u32 %v2842, 2147483648
    %v2844 = vmul.f32 %v2843, 1.442695
    %v2845 = vpow.pop %v2844
    %v2846 = vadd.f32 %v2845, 1.0
    %v2847 = vrcp.pop %v2846
    %v2848 = vmul.f32 1.0, %v2847
    %s2849 = scalar_lea.vmem [#allocation2], 46
    %v2850 = vld [vmem:[%s2849] sm:$0x3]
    %v2851 = vld [vmem:[%s219] sm:$0xff]
    %v2852 = vld [vmem:[%s219 + $0x8] sm:$0xff]
    %v2853 = vld [vmem:[%s219 + $0x10] sm:$0xff]
    %v2854 = vld [vmem:[%s219 + $0x18] sm:$0xff]
    %2855 = vmatprep.subr.mxu0 0.0
    %2856 = vmatpush1.msra.mxu0 %v2851
    %2857 = vmatprep.subr.mxu0 0.0
    %2858 = vmatpush1.msra.mxu0 %v2852
    %2859 = vmatprep.subr.mxu0 0.0
    %2860 = vmatpush1.msra.mxu0 %v2853
    %2861 = vmatprep.subr.mxu0 0.0
    %2862 = vmatpush1.msra.mxu0 %v2854
    %2863 = vmatprep.subr.mxu0 0.0
    %2864 = vmatpush1.msra.mxu0 0.0
    %2865 = vmatprep.subr.mxu0 0.0
    %2866 = vmatpush1.msra.mxu0 0.0
    %2867 = vmatprep.subr.mxu0 0.0
    %2868 = vmatpush1.msra.mxu0 0.0
    %2869 = vmatprep.subr.mxu0 0.0
    %2870 = vmatpush1.msra.mxu0 0.0
    %2871 = vmatprep.subr.mxu0 0.0
    %2872 = vmatpush1.msra.mxu0 0.0
    %2873 = vmatprep.subr.mxu0 0.0
    %2874 = vmatpush1.msra.mxu0 0.0
    %2875 = vmatprep.subr.mxu0 0.0
    %2876 = vmatpush1.msra.mxu0 0.0
    %2877 = vmatprep.subr.mxu0 0.0
    %2878 = vmatpush1.msra.mxu0 0.0
    %2879 = vmatprep.subr.mxu0 0.0
    %2880 = vmatpush1.msra.mxu0 0.0
    %2881 = vmatprep.subr.mxu0 0.0
    %2882 = vmatpush1.msra.mxu0 0.0
    %2883 = vmatprep.subr.mxu0 0.0
    %2884 = vmatpush1.msra.mxu0 0.0
    %2885 = vmatprep.subr.mxu0 0.0
    %2886 = vmatpush1.msra.mxu0 0.0
    %2887 = vmatprep.subr.mxu0 0.0
    %2888 = vmatpush1.msra.mxu0 0.0
    %2889 = vmatprep.subr.mxu0 0.0
    %2890 = vmatpush1.msra.mxu0 0.0
    %2891 = vmatprep.subr.mxu0 0.0
    %2892 = vmatpush1.msra.mxu0 0.0
    %2893 = vmatprep.subr.mxu0 0.0
    %2894 = vmatpush1.msra.mxu0 0.0
    %2895 = vmatprep.subr.mxu0 0.0
    %2896 = vmatpush1.msra.mxu0 0.0
    %2897 = vmatprep.subr.mxu0 0.0
    %2898 = vmatpush1.msra.mxu0 0.0
    %2899 = vmatprep.subr.mxu0 0.0
    %2900 = vmatpush1.msra.mxu0 0.0
    %2901 = vmatprep.subr.mxu0 0.0
    %2902 = vmatpush1.msra.mxu0 0.0
    %2903 = vmatprep.subr.mxu0 0.0
    %2904 = vmatpush1.msra.mxu0 0.0
    %2905 = vmatprep.subr.mxu0 0.0
    %2906 = vmatpush1.msra.mxu0 0.0
    %2907 = vmatprep.subr.mxu0 0.0
    %2908 = vmatpush1.msra.mxu0 0.0
    %2909 = vmatprep.subr.mxu0 0.0
    %2910 = vmatpush1.msra.mxu0 0.0
    %2911 = vmatprep.subr.mxu0 0.0
    %2912 = vmatpush1.msra.mxu0 0.0
    %2913 = vmatprep.subr.mxu0 0.0
    %2914 = vmatpush1.msra.mxu0 0.0
    %2915 = vmatprep.subr.mxu0 0.0
    %2916 = vmatpush1.msra.mxu0 0.0
    %2917 = vmatprep.subr.mxu0 0.0
    %2918 = vmatpush1.msra.mxu0 0.0
    %2919 = vmatprep.mubr.f32.mxu0 0.0
    %2920 = vmatmul.mubr.f32.gmra.mrb[0].mxu0 %v2687
    %v2921 = vpop.f32.mrb[0].mxu0
    %v2922 = vadd.f32 0.0, %v2921
    %v2923 = vpop.f32.mrb[0].mxu0
    %2924 = vdwg.mxu0
    %v2925 = vadd.f32 %v2850, %v2922
    %v2926 = vtanh.pop %v2925
    %s2927 = scalar_lea.vmem [#allocation2], 62
    %v2928 = vld [vmem:[%s2927] sm:$0x3]
    %v2929 = vld [vmem:[%s298] sm:$0xff]
    %v2930 = vld [vmem:[%s298 + $0x8] sm:$0xff]
    %v2931 = vld [vmem:[%s298 + $0x10] sm:$0xff]
    %v2932 = vld [vmem:[%s298 + $0x18] sm:$0xff]
    %2933 = vmatprep.subr.mxu0 0.0
    %2934 = vmatpush1.msra.mxu0 %v2929
    %2935 = vmatprep.subr.mxu0 0.0
    %2936 = vmatpush1.msra.mxu0 %v2930
    %2937 = vmatprep.subr.mxu0 0.0
    %2938 = vmatpush1.msra.mxu0 %v2931
    %2939 = vmatprep.subr.mxu0 0.0
    %2940 = vmatpush1.msra.mxu0 %v2932
    %2941 = vmatprep.subr.mxu0 0.0
    %2942 = vmatpush1.msra.mxu0 0.0
    %2943 = vmatprep.subr.mxu0 0.0
    %2944 = vmatpush1.msra.mxu0 0.0
    %2945 = vmatprep.subr.mxu0 0.0
    %2946 = vmatpush1.msra.mxu0 0.0
    %2947 = vmatprep.subr.mxu0 0.0
    %2948 = vmatpush1.msra.mxu0 0.0
    %2949 = vmatprep.subr.mxu0 0.0
    %2950 = vmatpush1.msra.mxu0 0.0
    %2951 = vmatprep.subr.mxu0 0.0
    %2952 = vmatpush1.msra.mxu0 0.0
    %2953 = vmatprep.subr.mxu0 0.0
    %2954 = vmatpush1.msra.mxu0 0.0
    %2955 = vmatprep.subr.mxu0 0.0
    %2956 = vmatpush1.msra.mxu0 0.0
    %2957 = vmatprep.subr.mxu0 0.0
    %2958 = vmatpush1.msra.mxu0 0.0
    %2959 = vmatprep.subr.mxu0 0.0
    %2960 = vmatpush1.msra.mxu0 0.0
    %2961 = vmatprep.subr.mxu0 0.0
    %2962 = vmatpush1.msra.mxu0 0.0
    %2963 = vmatprep.subr.mxu0 0.0
    %2964 = vmatpush1.msra.mxu0 0.0
    %2965 = vmatprep.subr.mxu0 0.0
    %2966 = vmatpush1.msra.mxu0 0.0
    %2967 = vmatprep.subr.mxu0 0.0
    %2968 = vmatpush1.msra.mxu0 0.0
    %2969 = vmatprep.subr.mxu0 0.0
    %2970 = vmatpush1.msra.mxu0 0.0
    %2971 = vmatprep.subr.mxu0 0.0
    %2972 = vmatpush1.msra.mxu0 0.0
    %2973 = vmatprep.subr.mxu0 0.0
    %2974 = vmatpush1.msra.mxu0 0.0
    %2975 = vmatprep.subr.mxu0 0.0
    %2976 = vmatpush1.msra.mxu0 0.0
    %2977 = vmatprep.subr.mxu0 0.0
    %2978 = vmatpush1.msra.mxu0 0.0
    %2979 = vmatprep.subr.mxu0 0.0
    %2980 = vmatpush1.msra.mxu0 0.0
    %2981 = vmatprep.subr.mxu0 0.0
    %2982 = vmatpush1.msra.mxu0 0.0
    %2983 = vmatprep.subr.mxu0 0.0
    %2984 = vmatpush1.msra.mxu0 0.0
    %2985 = vmatprep.subr.mxu0 0.0
    %2986 = vmatpush1.msra.mxu0 0.0
    %2987 = vmatprep.subr.mxu0 0.0
    %2988 = vmatpush1.msra.mxu0 0.0
    %2989 = vmatprep.subr.mxu0 0.0
    %2990 = vmatpush1.msra.mxu0 0.0
    %2991 = vmatprep.subr.mxu0 0.0
    %2992 = vmatpush1.msra.mxu0 0.0
    %2993 = vmatprep.subr.mxu0 0.0
    %2994 = vmatpush1.msra.mxu0 0.0
    %2995 = vmatprep.subr.mxu0 0.0
    %2996 = vmatpush1.msra.mxu0 0.0
    %2997 = vmatprep.mubr.f32.mxu0 0.0
    %2998 = vmatmul.mubr.f32.gmra.mrb[0].mxu0 %v2687
    %v2999 = vpop.f32.mrb[0].mxu0
    %v3000 = vadd.f32 0.0, %v2999
    %v3001 = vpop.f32.mrb[0].mxu0
    %3002 = vdwg.mxu0
    %v3003 = vadd.f32 %v2928, %v3000
    %v3004 = vxor.u32 %v3003, 2147483648
    %v3005 = vmul.f32 %v3004, 1.442695
    %v3006 = vpow.pop %v3005
    %v3007 = vadd.f32 %v3006, 1.0
    %v3008 = vrcp.pop %v3007
    %v3009 = vmul.f32 1.0, %v3008
    %v3010 = vmul.f32 %v2848, %v2646
    %v3011 = vmul.f32 %v2765, %v2926
    %v3012 = vadd.f32 %v3010, %v3011
    %v3013 = vtanh.pop %v3012
    %v3014 = vmul.f32 %v3009, %v3013
    %3016 = vset.pattern.permute.xlu0 0
    %3017 = vperm.xlu0 %3016, %v2679
    %v3018 = vpop.permute.xlu0 %3017
    %v3020 = vmul.f32 %v3018, %v3014
    %v3023 = vunpack.c.l.s4 1966171168
    %v3024 = vunpack.c.0.s8 %v3023
    %v3025 = vlaneseq
    %v3026 = vshrl.u32 %v3025, 7
    %v3027 = vsub.s32 %v3024, %v3026
    %v3028 = vrot.slane %v3020, %v3027
    %v3029 = vcombine.high %v3028, %v3028
    %v3031 = vunpack.c.l.s4 1966171168
    %v3032 = vunpack.c.0.s8 %v3031
    %v3033 = vlaneseq
    %v3034 = vshrl.u32 %v3033, 7
    %v3035 = vsub.s32 %v3032, %v3034
    %v3036 = vrot.slane %v3028, %v3035
    %v3038 = vunpack.c.l.s4 1966171168
    %v3039 = vunpack.c.0.s8 %v3038
    %v3040 = vlaneseq
    %v3041 = vshrl.u32 %v3040, 7
    %v3042 = vsub.s32 %v3039, %v3041
    %v3043 = vrot.slane %v3029, %v3042
    %3046 = vst.msk [vmem:[#allocation7 + $0x7] sm:$0x1] %vm418, %v3036
    %3047 = vst.msk [vmem:[#allocation7 + $0xf] sm:$0x1] %vm418, %v3043
    %v3048 = vsub.f32 %v3014, %v2677
    %v3049 = vmul.f32 %v3018, %v3048
    %v3050 = vadd.f32 %v2677, %v3049
    %vm3051 = vcmask 254976
    %3052 = vst.msk [vmem:[#allocation8] sm:$0x3] %vm3051, %v3050
    // Predicated region
    $region22: #{tpu_custom_call.1} parent=1 // pred_check
      _
    $region23: #{tpu_custom_call.1} parent=1 // pred_check_branch
      %3054 = sbr.rel (0) target = $region25
    $region24: #{tpu_custom_call.1} parent=1 // pred_region
      %s3056 = ssub.s32 256, 256
      %3057 = vsyncadd [#allocation4], %s3056
      %s3058 = sshll.u32 [#allocation7], 4
      %s3059 = int_to_ptr.vmem [resolvable:$true] %s3058
      %3064 = dma.vmem_to_hbm [thread:$0]  %s3059, 256, %s3, [#allocation4], 128, 128, 8
    $region25: #{tpu_custom_call.1} parent=1 // pred_fallthru
      _
    // Predicated region
    $region26: #{tpu_custom_call.1} parent=1 // pred_check
      _
    $region27: #{tpu_custom_call.1} parent=1 // pred_check_branch
      %3066 = sbr.rel (0) target = $region29
    $region28: #{tpu_custom_call.1} parent=1 // pred_region
      %s3068 = ssub.s32 32, 32
      %3069 = vsyncadd [#allocation9], %s3068
      %s3071 = sshll.u32 [#allocation8], 4
      %s3072 = int_to_ptr.vmem [resolvable:$true] %s3071
      %3074 = dma.vmem_to_hbm [thread:$0]  %s3072, 32, %s4, [#allocation9]
    $region29: #{tpu_custom_call.1} parent=1 // pred_fallthru
      _
    // Predicated region
    $region30: #{tpu_custom_call.1} parent=1 // pred_check
      _
    $region31: #{tpu_custom_call.1} parent=1 // pred_check_branch
      %3076 = sbr.rel (0) target = $region33
    $region32: #{tpu_custom_call.1} parent=1 // pred_region
      %3077 = dma.done [#allocation4], 256
    $region33: #{tpu_custom_call.1} parent=1 // pred_fallthru
      _
    // Predicated region
    $region34: #{tpu_custom_call.1} parent=1 // pred_check
      _
    $region35: #{tpu_custom_call.1} parent=1 // pred_check_branch
      %3079 = sbr.rel (0) target = $region37
    $region36: #{tpu_custom_call.1} parent=1 // pred_region
      %3080 = dma.done [#allocation9], 32
    $region37: #{tpu_custom_call.1} parent=1 // pred_fallthru
      _
    %3081 = vsyncpa [#allocation3], 1
    %3082 = vsyncpa [#allocation6], 1
    %3083 = vsyncpa [#allocation4], 1
    %3084 = vsyncpa [#allocation9], 1

</llo_original>
